<compile_context>
chip_gen: v6e
topology: v6e:2x2x1
jax: 0.10.0
libtpu: 0.0.40
codegen_flags: <defaults>
</compile_context>

<pallas_src>
import math

import jax
import jax.numpy as jnp
from jax.experimental import pallas as pl
from jax.experimental.pallas import tpu as pltpu

_LN_EPS = 1e-5  # torch.nn.LayerNorm default


# ----------------------------------------------------------------------------
# Literal forward() of ServerDeepFM
# ----------------------------------------------------------------------------
def server_deepfm_literal_forward():
    # torch: return torch.tensor(0.0)
    return jnp.array(0.0, dtype=jnp.float32)


# ----------------------------------------------------------------------------
# LayerNorm (single-pass statistics), f32 math
# ----------------------------------------------------------------------------
def _layernorm_f32(h, gamma, beta):
    mu = jnp.mean(h, axis=-1, keepdims=True)
    ms = jnp.mean(h * h, axis=-1, keepdims=True)
    var = ms - mu * mu
    return (h - mu) * jax.lax.rsqrt(var + _LN_EPS) * gamma + beta


# ----------------------------------------------------------------------------
# Fused DeepFM MLP kernel (one batch tile of TM rows per grid step)
# ----------------------------------------------------------------------------
def deepfm_mlp_kernel(
    x_ref,       # (TM, 2E)  bf16
    w1_ref,      # (2E, 64)  bf16
    ln1_ref,     # (3, 64)   f32  rows: [b1, gamma1, beta1]
    w2_ref,      # (64, 32)  bf16
    ln2_ref,     # (3, 32)   f32  rows: [b2, gamma2, beta2]
    w3_ref,      # (32, 16)  bf16
    w4_ref,      # (16, 8)   bf16
    w5_ref,      # (1, 8)    bf16  (torch Linear(8,1).weight layout)
    tail_ref,    # (3, 16)   f32  rows: [b3, b4(pad), b5(pad)]
    bias_ref,    # (1, 1)    f32 in SMEM (global bias parameter)
    out_ref,     # (1, TM)   f32  (lane-dense scores for this tile)
):
    f32 = jnp.float32
    bf16 = jnp.bfloat16

    ln1 = ln1_ref[...]
    ln2 = ln2_ref[...]
    tail = tail_ref[...]
    b1, g1, bt1 = ln1[0:1, :], ln1[1:2, :], ln1[2:3, :]
    b2, g2, bt2 = ln2[0:1, :], ln2[1:2, :], ln2[2:3, :]
    b3 = tail[0:1, :]        # (1, 16)
    b4 = tail[1:2, 0:8]      # (1, 8)
    b5 = tail[2:3, 0:1]      # (1, 1)

    x = x_ref[...]           # bf16 (TM, 2E)

    # Block 1: Linear -> ReLU -> (Dropout = identity in eval) -> LayerNorm
    h = jnp.dot(x, w1_ref[...], preferred_element_type=f32) + b1
    h = jnp.maximum(h, 0.0)
    h = _layernorm_f32(h, g1, bt1)

    # Block 2: Linear -> ReLU -> (Dropout = identity) -> LayerNorm
    h = jnp.dot(h.astype(bf16), w2_ref[...], preferred_element_type=f32) + b2
    h = jnp.maximum(h, 0.0)
    h = _layernorm_f32(h, g2, bt2)

    # Linear(32,16) -> ReLU
    h = jnp.dot(h.astype(bf16), w3_ref[...], preferred_element_type=f32) + b3
    h = jnp.maximum(h, 0.0)

    # Linear(16,8) -> ReLU
    h = jnp.dot(h.astype(bf16), w4_ref[...], preferred_element_type=f32) + b4
    h = jnp.maximum(h, 0.0)                      # (TM, 8) f32

    # Linear(8,1) as a transposed contraction: (1,8) . (TM,8)^T -> (1, TM).
    # This yields a lane-dense score row directly (no (TM,1) masked stores).
    scores = jax.lax.dot_general(
        w5_ref[...], h.astype(bf16),
        dimension_numbers=(((1,), (1,)), ((), ())),
        preferred_element_type=f32)              # (1, TM)

    out_ref[...] = scores + b5 + bias_ref[0, 0]


def deepfm_mlp_forward(x, params, *, tile_m=512):
    """x: [B, 2E] (any float dtype) -> [B, 1] float32 scores."""
    B, F = x.shape
    assert tile_m % 128 == 0, "tile_m must be a multiple of 128 (lane-dense out)"

    x = x.astype(jnp.bfloat16)
    b_pad = ((B + tile_m - 1) // tile_m) * tile_m
    if b_pad != B:
        x = jnp.pad(x, ((0, b_pad - B), (0, 0)))
    n_tiles = b_pad // tile_m

    const2d = lambda i: (0, 0)  # resident weights: same block every grid step
    in_specs = [
        pl.BlockSpec((tile_m, F), lambda i: (i, 0)),            # x tile
        pl.BlockSpec(params["w1"].shape, const2d),
        pl.BlockSpec(params["ln1"].shape, const2d),
        pl.BlockSpec(params["w2"].shape, const2d),
        pl.BlockSpec(params["ln2"].shape, const2d),
        pl.BlockSpec(params["w3"].shape, const2d),
        pl.BlockSpec(params["w4"].shape, const2d),
        pl.BlockSpec(params["w5"].shape, const2d),
        pl.BlockSpec(params["tail"].shape, const2d),
        pl.BlockSpec(memory_space=pltpu.MemorySpace.SMEM),      # scalar bias
    ]
    out_specs = pl.BlockSpec((1, tile_m), lambda i: (0, i))

    out = pl.pallas_call(
        deepfm_mlp_kernel,
        out_shape=jax.ShapeDtypeStruct((1, b_pad), jnp.float32),
        grid=(n_tiles,),
        in_specs=in_specs,
        out_specs=out_specs,
        compiler_params=pltpu.CompilerParams(
            dimension_semantics=("parallel",),  # v7x: shard tiles across 2 TCs
        ),
    )(
        x,
        params["w1"], params["ln1"],
        params["w2"], params["ln2"],
        params["w3"], params["w4"], params["w5"],
        params["tail"], params["bias"],
    )
    return out[0, :B].reshape(B, 1)


# ----------------------------------------------------------------------------
# Deterministic parameter construction (matches __init__ shapes + init scheme)
# ----------------------------------------------------------------------------
def xavier_uniform(key, fan_in, fan_out, shape):
    bound = math.sqrt(6.0 / (fan_in + fan_out))
    return jax.random.uniform(key, shape, jnp.float32, -bound, bound)


def make_params(key, num_items, embedding_size):
    ks = jax.random.split(key, 8)
    e2 = 2 * embedding_size
    bf16 = jnp.bfloat16
    fill = 0.01

    w1 = xavier_uniform(ks[1], e2, 64, (e2, 64))     # stored [in, out]
    w2 = xavier_uniform(ks[2], 64, 32, (64, 32))
    w3 = xavier_uniform(ks[3], 32, 16, (32, 16))
    w4 = xavier_uniform(ks[4], 16, 8, (16, 8))
    w5 = xavier_uniform(ks[5], 8, 1, (1, 8))         # torch layout (out, in)

    ln1 = jnp.stack([jnp.full((64,), fill), jnp.ones((64,)),
                     jnp.zeros((64,))]).astype(jnp.float32)      # [b1,g1,beta1]
    ln2 = jnp.stack([jnp.full((32,), fill), jnp.ones((32,)),
                     jnp.zeros((32,))]).astype(jnp.float32)      # [b2,g2,beta2]
    tail = jnp.zeros((3, 16), jnp.float32)
    tail = tail.at[0, :].set(fill)      # b3 (16)
    tail = tail.at[1, 0:8].set(fill)    # b4 (8)
    tail = tail.at[2, 0].set(fill)      # b5 (1)

    params = {
        # nn.Embedding(num_items, E) with xavier_uniform_
        "emb": xavier_uniform(ks[0], num_items, embedding_size,
                              (num_items, embedding_size)),
        # self.bias = nn.Parameter(torch.randn(1))
        "bias": jax.random.normal(ks[6], (1, 1), jnp.float32),
        "w1": w1.astype(bf16), "w2": w2.astype(bf16),
        "w3": w3.astype(bf16), "w4": w4.astype(bf16),
        "w5": w5.astype(bf16),
        "ln1": ln1, "ln2": ln2, "tail": tail,
    }
    return params, ks[7]


# Pure-JAX reference replicating the kernel's mixed-precision policy
# (bf16 matmul inputs, f32 accumulation / elementwise).
def deepfm_mlp_ref(x, p):
    f32 = jnp.float32

    def mm(a, w):
        return jnp.dot(a.astype(jnp.bfloat16).astype(f32), w.astype(f32))

    ln1, ln2, tail = p["ln1"], p["ln2"], p["tail"]
    b1, g1, bt1 = ln1[0], ln1[1], ln1[2]
    b2, g2, bt2 = ln2[0], ln2[1], ln2[2]
    b3, b4, b5 = tail[0, :], tail[1, 0:8], tail[2, 0]

    h = jnp.maximum(mm(x, p["w1"]) + b1, 0.0)
    h = _layernorm_f32(h, g1, bt1)
    h = jnp.maximum(mm(h, p["w2"]) + b2, 0.0)
    h = _layernorm_f32(h, g2, bt2)
    h = jnp.maximum(mm(h, p["w3"]) + b3, 0.0)
    h = jnp.maximum(mm(h, p["w4"]) + b4, 0.0)
    return mm(h, p["w5"].T) + b5 + p["bias"][0, 0]


if __name__ == "__main__":
    num_items = 64
    embedding_size = 16        # 2E = 32
    batch = 1024
    tile_m = 512               # grid of 2 batch tiles

    key = jax.random.PRNGKey(0)
    params, key = make_params(key, num_items, embedding_size)

    # Build the MLP input as DeepFM does: concat(user_emb, item_emb) -> [B, 2E].
    # TODO(synk): fold the embedding gather + concat into the kernel via
    # PrefetchScalarGridSpec scalar-prefetched item ids; kept as JAX glue here.
    k_idx, k_user = jax.random.split(key)
    item_ids = jax.random.randint(k_idx, (batch,), 0, num_items)
    item_emb = params["emb"][item_ids]                                  # [B, E]
    user_emb = jax.random.normal(k_user, (batch, embedding_size),
                                 jnp.float32)                           # [B, E]
    x = jnp.concatenate([user_emb, item_emb], axis=-1)                  # [B, 2E]

    # Literal forward() of the module (returns scalar 0.0).
    literal = jax.block_until_ready(server_deepfm_literal_forward())
    assert float(literal) == 0.0

    # Fused, gridded Pallas MLP kernel (the module's actual compute path).
    out = jax.block_until_ready(deepfm_mlp_forward(x, params, tile_m=tile_m))
    ref = deepfm_mlp_ref(x, params)

    assert out.shape == (batch, 1)
    assert bool(jnp.all(jnp.isfinite(out)))
    assert jnp.allclose(out, ref, atol=1e-2, rtol=1e-2), float(
        jnp.max(jnp.abs(out - ref)))

    print("KERNEL_OK")
</pallas_src>

<mosaic_0001>
module attributes {stable_mosaic.version = 11 : i64} {
  func.func @deepfm_mlp_kernel(%arg0: i32, %arg1: memref<512x32xbf16, #tpu.memory_space<vmem>>, %arg2: memref<32x64xbf16, #tpu.memory_space<vmem>>, %arg3: memref<3x64xf32, #tpu.memory_space<vmem>>, %arg4: memref<64x32xbf16, #tpu.memory_space<vmem>>, %arg5: memref<3x32xf32, #tpu.memory_space<vmem>>, %arg6: memref<32x16xbf16, #tpu.memory_space<vmem>>, %arg7: memref<16x8xbf16, #tpu.memory_space<vmem>>, %arg8: memref<1x8xbf16, #tpu.memory_space<vmem>>, %arg9: memref<3x16xf32, #tpu.memory_space<vmem>>, %arg10: memref<1x1xf32, #tpu.memory_space<smem>>, %arg11: memref<1x512xf32, #tpu.memory_space<vmem>>) attributes {dimension_semantics = [#tpu.dimension_semantics<parallel>], iteration_bounds = array<i64: 2>, scalar_prefetch = 0 : i64, scratch_operands = 0 : i64, tpu.core_type = #tpu.core_type<tc>, window_params = [{transform_indices = @transform_0, window_bounds = array<i64: 512, 32>}, {pipeline_mode = #tpu.pipeline_mode<synchronous>, transform_indices = @transform_1, window_bounds = array<i64: 32, 64>}, {pipeline_mode = #tpu.pipeline_mode<synchronous>, transform_indices = @transform_2, window_bounds = array<i64: 3, 64>}, {pipeline_mode = #tpu.pipeline_mode<synchronous>, transform_indices = @transform_3, window_bounds = array<i64: 64, 32>}, {pipeline_mode = #tpu.pipeline_mode<synchronous>, transform_indices = @transform_4, window_bounds = array<i64: 3, 32>}, {pipeline_mode = #tpu.pipeline_mode<synchronous>, transform_indices = @transform_5, window_bounds = array<i64: 32, 16>}, {pipeline_mode = #tpu.pipeline_mode<synchronous>, transform_indices = @transform_6, window_bounds = array<i64: 16, 8>}, {pipeline_mode = #tpu.pipeline_mode<synchronous>, transform_indices = @transform_7, window_bounds = array<i64: 1, 8>}, {pipeline_mode = #tpu.pipeline_mode<synchronous>, transform_indices = @transform_8, window_bounds = array<i64: 3, 16>}, {transform_indices = @transform_9, window_bounds = array<i64: 1, 1>}, {transform_indices = @transform_10, window_bounds = array<i64: 1, 512>}]} {
    %c0 = arith.constant 0 : index
    %c0_0 = arith.constant 0 : index
    %0 = vector.load %arg3[%c0, %c0_0] : memref<3x64xf32, #tpu.memory_space<vmem>>, vector<3x64xf32>
    %c0_1 = arith.constant 0 : index
    %c0_2 = arith.constant 0 : index
    %1 = vector.load %arg5[%c0_1, %c0_2] : memref<3x32xf32, #tpu.memory_space<vmem>>, vector<3x32xf32>
    %c0_3 = arith.constant 0 : index
    %c0_4 = arith.constant 0 : index
    %2 = vector.load %arg9[%c0_3, %c0_4] : memref<3x16xf32, #tpu.memory_space<vmem>>, vector<3x16xf32>
    %3 = vector.extract_strided_slice %0 {offsets = [0, 0], sizes = [1, 64], strides = [1, 1]} : vector<3x64xf32> to vector<1x64xf32>
    %4 = vector.extract_strided_slice %0 {offsets = [1, 0], sizes = [1, 64], strides = [1, 1]} : vector<3x64xf32> to vector<1x64xf32>
    %5 = vector.extract_strided_slice %0 {offsets = [2, 0], sizes = [1, 64], strides = [1, 1]} : vector<3x64xf32> to vector<1x64xf32>
    %6 = vector.extract_strided_slice %1 {offsets = [0, 0], sizes = [1, 32], strides = [1, 1]} : vector<3x32xf32> to vector<1x32xf32>
    %7 = vector.extract_strided_slice %1 {offsets = [1, 0], sizes = [1, 32], strides = [1, 1]} : vector<3x32xf32> to vector<1x32xf32>
    %8 = vector.extract_strided_slice %1 {offsets = [2, 0], sizes = [1, 32], strides = [1, 1]} : vector<3x32xf32> to vector<1x32xf32>
    %9 = vector.extract_strided_slice %2 {offsets = [0, 0], sizes = [1, 16], strides = [1, 1]} : vector<3x16xf32> to vector<1x16xf32>
    %10 = vector.extract_strided_slice %2 {offsets = [1, 0], sizes = [1, 8], strides = [1, 1]} : vector<3x16xf32> to vector<1x8xf32>
    %11 = vector.extract_strided_slice %2 {offsets = [2, 0], sizes = [1, 1], strides = [1, 1]} : vector<3x16xf32> to vector<1x1xf32>
    %c0_5 = arith.constant 0 : index
    %c0_6 = arith.constant 0 : index
    %12 = vector.load %arg1[%c0_5, %c0_6] : memref<512x32xbf16, #tpu.memory_space<vmem>>, vector<512x32xbf16>
    %c0_7 = arith.constant 0 : index
    %c0_8 = arith.constant 0 : index
    %13 = vector.load %arg2[%c0_7, %c0_8] : memref<32x64xbf16, #tpu.memory_space<vmem>>, vector<32x64xbf16>
    %cst = arith.constant dense<0.000000e+00> : vector<512x64xf32>
    %14 = tpu.matmul %12, %13, %cst {dimension_numbers = #tpu.dot_dimension_numbers<[1], [0], [0], [1], [0, 0, 1, 1], [], []>} : vector<512x32xbf16>, vector<32x64xbf16>, vector<512x64xf32> -> vector<512x64xf32>
    %15 = vector.broadcast %3 : vector<1x64xf32> to vector<512x64xf32>
    %16 = arith.addf %14, %15 : vector<512x64xf32>
    %cst_9 = arith.constant 0.000000e+00 : f32
    %17 = vector.broadcast %cst_9 : f32 to vector<512x64xf32>
    %18 = arith.maximumf %16, %17 : vector<512x64xf32>
    %cst_10 = arith.constant dense<0.000000e+00> : vector<512xf32>
    %19 = vector.multi_reduction <add>, %18, %cst_10 [1] : vector<512x64xf32> to vector<512xf32>
    %20 = vector.shape_cast %19 : vector<512xf32> to vector<512x1xf32>
    %cst_11 = arith.constant 6.400000e+01 : f32
    %21 = vector.broadcast %cst_11 : f32 to vector<512x1xf32>
    %22 = arith.divf %20, %21 : vector<512x1xf32>
    %23 = arith.mulf %18, %18 : vector<512x64xf32>
    %cst_12 = arith.constant dense<0.000000e+00> : vector<512xf32>
    %24 = vector.multi_reduction <add>, %23, %cst_12 [1] : vector<512x64xf32> to vector<512xf32>
    %25 = vector.shape_cast %24 : vector<512xf32> to vector<512x1xf32>
    %cst_13 = arith.constant 6.400000e+01 : f32
    %26 = vector.broadcast %cst_13 : f32 to vector<512x1xf32>
    %27 = arith.divf %25, %26 : vector<512x1xf32>
    %28 = arith.mulf %22, %22 : vector<512x1xf32>
    %29 = arith.subf %27, %28 : vector<512x1xf32>
    %30 = vector.broadcast %22 : vector<512x1xf32> to vector<512x64xf32>
    %31 = arith.subf %18, %30 : vector<512x64xf32>
    %cst_14 = arith.constant 9.99999974E-6 : f32
    %32 = vector.broadcast %cst_14 : f32 to vector<512x1xf32>
    %33 = arith.addf %29, %32 : vector<512x1xf32>
    %34 = math.rsqrt %33 : vector<512x1xf32>
    %35 = vector.broadcast %34 : vector<512x1xf32> to vector<512x64xf32>
    %36 = arith.mulf %31, %35 : vector<512x64xf32>
    %37 = vector.broadcast %4 : vector<1x64xf32> to vector<512x64xf32>
    %38 = arith.mulf %36, %37 : vector<512x64xf32>
    %39 = vector.broadcast %5 : vector<1x64xf32> to vector<512x64xf32>
    %40 = arith.addf %38, %39 : vector<512x64xf32>
    %41 = arith.truncf %40 : vector<512x64xf32> to vector<512x64xbf16>
    %c0_15 = arith.constant 0 : index
    %c0_16 = arith.constant 0 : index
    %42 = vector.load %arg4[%c0_15, %c0_16] : memref<64x32xbf16, #tpu.memory_space<vmem>>, vector<64x32xbf16>
    %cst_17 = arith.constant dense<0.000000e+00> : vector<512x32xf32>
    %43 = tpu.matmul %41, %42, %cst_17 {dimension_numbers = #tpu.dot_dimension_numbers<[1], [0], [0], [1], [0, 0, 1, 1], [], []>} : vector<512x64xbf16>, vector<64x32xbf16>, vector<512x32xf32> -> vector<512x32xf32>
    %44 = vector.broadcast %6 : vector<1x32xf32> to vector<512x32xf32>
    %45 = arith.addf %43, %44 : vector<512x32xf32>
    %cst_18 = arith.constant 0.000000e+00 : f32
    %46 = vector.broadcast %cst_18 : f32 to vector<512x32xf32>
    %47 = arith.maximumf %45, %46 : vector<512x32xf32>
    %cst_19 = arith.constant dense<0.000000e+00> : vector<512xf32>
    %48 = vector.multi_reduction <add>, %47, %cst_19 [1] : vector<512x32xf32> to vector<512xf32>
    %49 = vector.shape_cast %48 : vector<512xf32> to vector<512x1xf32>
    %cst_20 = arith.constant 3.200000e+01 : f32
    %50 = vector.broadcast %cst_20 : f32 to vector<512x1xf32>
    %51 = arith.divf %49, %50 : vector<512x1xf32>
    %52 = arith.mulf %47, %47 : vector<512x32xf32>
    %cst_21 = arith.constant dense<0.000000e+00> : vector<512xf32>
    %53 = vector.multi_reduction <add>, %52, %cst_21 [1] : vector<512x32xf32> to vector<512xf32>
    %54 = vector.shape_cast %53 : vector<512xf32> to vector<512x1xf32>
    %cst_22 = arith.constant 3.200000e+01 : f32
    %55 = vector.broadcast %cst_22 : f32 to vector<512x1xf32>
    %56 = arith.divf %54, %55 : vector<512x1xf32>
    %57 = arith.mulf %51, %51 : vector<512x1xf32>
    %58 = arith.subf %56, %57 : vector<512x1xf32>
    %59 = vector.broadcast %51 : vector<512x1xf32> to vector<512x32xf32>
    %60 = arith.subf %47, %59 : vector<512x32xf32>
    %cst_23 = arith.constant 9.99999974E-6 : f32
    %61 = vector.broadcast %cst_23 : f32 to vector<512x1xf32>
    %62 = arith.addf %58, %61 : vector<512x1xf32>
    %63 = math.rsqrt %62 : vector<512x1xf32>
    %64 = vector.broadcast %63 : vector<512x1xf32> to vector<512x32xf32>
    %65 = arith.mulf %60, %64 : vector<512x32xf32>
    %66 = vector.broadcast %7 : vector<1x32xf32> to vector<512x32xf32>
    %67 = arith.mulf %65, %66 : vector<512x32xf32>
    %68 = vector.broadcast %8 : vector<1x32xf32> to vector<512x32xf32>
    %69 = arith.addf %67, %68 : vector<512x32xf32>
    %70 = arith.truncf %69 : vector<512x32xf32> to vector<512x32xbf16>
    %c0_24 = arith.constant 0 : index
    %c0_25 = arith.constant 0 : index
    %71 = vector.load %arg6[%c0_24, %c0_25] : memref<32x16xbf16, #tpu.memory_space<vmem>>, vector<32x16xbf16>
    %cst_26 = arith.constant dense<0.000000e+00> : vector<512x16xf32>
    %72 = tpu.matmul %70, %71, %cst_26 {dimension_numbers = #tpu.dot_dimension_numbers<[1], [0], [0], [1], [0, 0, 1, 1], [], []>} : vector<512x32xbf16>, vector<32x16xbf16>, vector<512x16xf32> -> vector<512x16xf32>
    %73 = vector.broadcast %9 : vector<1x16xf32> to vector<512x16xf32>
    %74 = arith.addf %72, %73 : vector<512x16xf32>
    %cst_27 = arith.constant 0.000000e+00 : f32
    %75 = vector.broadcast %cst_27 : f32 to vector<512x16xf32>
    %76 = arith.maximumf %74, %75 : vector<512x16xf32>
    %77 = arith.truncf %76 : vector<512x16xf32> to vector<512x16xbf16>
    %c0_28 = arith.constant 0 : index
    %c0_29 = arith.constant 0 : index
    %78 = vector.load %arg7[%c0_28, %c0_29] : memref<16x8xbf16, #tpu.memory_space<vmem>>, vector<16x8xbf16>
    %cst_30 = arith.constant dense<0.000000e+00> : vector<512x8xf32>
    %79 = tpu.matmul %77, %78, %cst_30 {dimension_numbers = #tpu.dot_dimension_numbers<[1], [0], [0], [1], [0, 0, 1, 1], [], []>} : vector<512x16xbf16>, vector<16x8xbf16>, vector<512x8xf32> -> vector<512x8xf32>
    %80 = vector.broadcast %10 : vector<1x8xf32> to vector<512x8xf32>
    %81 = arith.addf %79, %80 : vector<512x8xf32>
    %cst_31 = arith.constant 0.000000e+00 : f32
    %82 = vector.broadcast %cst_31 : f32 to vector<512x8xf32>
    %83 = arith.maximumf %81, %82 : vector<512x8xf32>
    %c0_32 = arith.constant 0 : index
    %c0_33 = arith.constant 0 : index
    %84 = vector.load %arg8[%c0_32, %c0_33] : memref<1x8xbf16, #tpu.memory_space<vmem>>, vector<1x8xbf16>
    %85 = arith.truncf %83 : vector<512x8xf32> to vector<512x8xbf16>
    %cst_34 = arith.constant dense<0.000000e+00> : vector<1x512xf32>
    %86 = tpu.matmul %84, %85, %cst_34 {dimension_numbers = #tpu.dot_dimension_numbers<[1], [1], [0], [0], [0, 0, 1, 0], [], []>} : vector<1x8xbf16>, vector<512x8xbf16>, vector<1x512xf32> -> vector<1x512xf32>
    %87 = vector.broadcast %11 : vector<1x1xf32> to vector<1x512xf32>
    %88 = arith.addf %86, %87 : vector<1x512xf32>
    %c0_35 = arith.constant 0 : index
    %c0_36 = arith.constant 0 : index
    %89 = memref.load %arg10[%c0_35, %c0_36] : memref<1x1xf32, #tpu.memory_space<smem>>
    %90 = vector.broadcast %89 : f32 to vector<1x512xf32>
    %91 = arith.addf %88, %90 : vector<1x512xf32>
    %c0_37 = arith.constant 0 : index
    %c0_38 = arith.constant 0 : index
    %92 = vector.load %arg11[%c0_37, %c0_38] : memref<1x512xf32, #tpu.memory_space<vmem>>, vector<1x512xf32>
    tpu.vector_store %arg11[%c0_37, %c0_38], %91 {strides = array<i32>} : memref<1x512xf32, #tpu.memory_space<vmem>>, vector<1x512xf32>,
    return
  }
  func.func @transform_0(%arg0: i32) -> (i32, i32) {
    %c0_i32 = arith.constant 0 : i32
    %c0_i32_0 = arith.constant 0 : i32
    return %arg0, %c0_i32 : i32, i32
  }
  func.func @transform_1(%arg0: i32) -> (i32, i32) {
    %c0_i32 = arith.constant 0 : i32
    %c0_i32_0 = arith.constant 0 : i32
    %c0_i32_1 = arith.constant 0 : i32
    return %c0_i32, %c0_i32_0 : i32, i32
  }
  func.func @transform_2(%arg0: i32) -> (i32, i32) {
    %c0_i32 = arith.constant 0 : i32
    %c0_i32_0 = arith.constant 0 : i32
    %c0_i32_1 = arith.constant 0 : i32
    return %c0_i32, %c0_i32_0 : i32, i32
  }
  func.func @transform_3(%arg0: i32) -> (i32, i32) {
    %c0_i32 = arith.constant 0 : i32
    %c0_i32_0 = arith.constant 0 : i32
    %c0_i32_1 = arith.constant 0 : i32
    return %c0_i32, %c0_i32_0 : i32, i32
  }
  func.func @transform_4(%arg0: i32) -> (i32, i32) {
    %c0_i32 = arith.constant 0 : i32
    %c0_i32_0 = arith.constant 0 : i32
    %c0_i32_1 = arith.constant 0 : i32
    return %c0_i32, %c0_i32_0 : i32, i32
  }
  func.func @transform_5(%arg0: i32) -> (i32, i32) {
    %c0_i32 = arith.constant 0 : i32
    %c0_i32_0 = arith.constant 0 : i32
    %c0_i32_1 = arith.constant 0 : i32
    return %c0_i32, %c0_i32_0 : i32, i32
  }
  func.func @transform_6(%arg0: i32) -> (i32, i32) {
    %c0_i32 = arith.constant 0 : i32
    %c0_i32_0 = arith.constant 0 : i32
    %c0_i32_1 = arith.constant 0 : i32
    return %c0_i32, %c0_i32_0 : i32, i32
  }
  func.func @transform_7(%arg0: i32) -> (i32, i32) {
    %c0_i32 = arith.constant 0 : i32
    %c0_i32_0 = arith.constant 0 : i32
    %c0_i32_1 = arith.constant 0 : i32
    return %c0_i32, %c0_i32_0 : i32, i32
  }
  func.func @transform_8(%arg0: i32) -> (i32, i32) {
    %c0_i32 = arith.constant 0 : i32
    %c0_i32_0 = arith.constant 0 : i32
    %c0_i32_1 = arith.constant 0 : i32
    return %c0_i32, %c0_i32_0 : i32, i32
  }
  func.func @transform_9(%arg0: i32) -> (i32, i32) {
    %c0_i32 = arith.constant 0 : i32
    %c0_i32_0 = arith.constant 0 : i32
    %c0_i32_1 = arith.constant 0 : i32
    return %c0_i32, %c0_i32_0 : i32, i32
  }
  func.func @transform_10(%arg0: i32) -> (i32, i32) {
    %c0_i32 = arith.constant 0 : i32
    %c0_i32_0 = arith.constant 0 : i32
    return %c0_i32, %arg0 : i32, i32
  }
}

</mosaic_0001>

<llo_original>
// kernel: tpu_custom_call.1
$region0: #{tpu_custom_call.1}
  #allocation0 [shape = 'u32[]', space=smem, size = 0x4, offset = 0x4, fixed_abs, tag = 'smem constant byte address 0x4 - core index']
  #allocation1 [shape = 'u32[144,128]{1,0:T(1,128)}', space=vmem, size = 0x12000, scoped, tag = 'internal scratch']
  #allocation2 [shape = 'f32[1,1]{1,0:T(1,128)S(6)}', space=smem, size = 0x200, scoped, tag = 'scoped memory for tpu_custom_call.1']
  %s0 = inlined_call_operand.vmem [shape: bf16[1024,32], index: 0, kind: input, shape index: {}]
  %s1 = inlined_call_operand.vmem [shape: bf16[32,64], index: 1, kind: input, shape index: {}]
  %s2 = inlined_call_operand.vmem [shape: f32[3,64], index: 2, kind: input, shape index: {}]
  %s3 = inlined_call_operand.vmem [shape: bf16[64,32], index: 3, kind: input, shape index: {}]
  %s4 = inlined_call_operand.vmem [shape: f32[3,32], index: 4, kind: input, shape index: {}]
  %s5 = inlined_call_operand.vmem [shape: bf16[32,16], index: 5, kind: input, shape index: {}]
  %s6 = inlined_call_operand.vmem [shape: bf16[16,8], index: 6, kind: input, shape index: {}]
  %s7 = inlined_call_operand.vmem [shape: bf16[1,8], index: 7, kind: input, shape index: {}]
  %s8 = inlined_call_operand.vmem [shape: f32[3,16], index: 8, kind: input, shape index: {}]
  %s9 = inlined_call_operand.<no memory space> [shape: f32[1,1], index: 9, kind: input, shape index: {}]
  %s10 = inlined_call_operand.hbm [shape: f32[1,1024], index: 10, kind: output, shape index: {}]
  %s11 = sld [smem:[#allocation0]]
  $region73: #{tpu_custom_call.1} parent=0
    _
  %s13 = ssub.s32 1, %s11
  %s14 = scalar_select 0, %s13, %s11
  %15 = sst [smem:[#allocation2]] %s9
  $region1: #{tpu_custom_call.1} parent=0
    #allocation3 [shape = 'u8[4096]{0}', space=vmem, size = 0x1000, scoped, tag = 'output window, operand 0']
    #allocation4 [shape = 's32[2]{0}', space=sflag, size = 0x8, scoped, tag = 'scoped memory for tpu_custom_call.1']
    %16 = vsyncpa [#allocation4], 0
    %s17 = scalar_lea.sflag [#allocation4], 1
    %18 = vsyncpa %s17, 0
    loop: start=0, step=1, limit=4
    $region2: #{tpu_custom_call.1} parent=1 // loop_pre_header
      _
    $region3: #{tpu_custom_call.1} parent=1 // loop_header
      %s20 = sphi 0, %s24
      %p21 = scmp.ge.s32.totalorder %s20, 4
      %s30 = sphi 0, %s32
      %s33 = sphi 0, %s30
      %s34 = sphi 0, %s33
      %s50 = sphi 0, %s34
      %s54 = sphi 0, %s54
      %s56 = sphi 0, %s54
      %s57 = sphi 0, %s56
      %s71 = sphi 0, %s57
      %s75 = sphi 0, %s75
      %s77 = sphi 0, %s75
      %s78 = sphi 0, %s77
      %s92 = sphi 0, %s78
      %s96 = sphi 0, %s96
      %s98 = sphi 0, %s96
      %s99 = sphi 0, %s98
      %s113 = sphi 0, %s99
      %s117 = sphi 0, %s117
      %s119 = sphi 0, %s117
      %s120 = sphi 0, %s119
      %s134 = sphi 0, %s120
      %s138 = sphi 0, %s138
      %s140 = sphi 0, %s138
      %s141 = sphi 0, %s140
      %s155 = sphi 0, %s141
      %s159 = sphi 0, %s159
      %s161 = sphi 0, %s159
      %s162 = sphi 0, %s161
      %s176 = sphi 0, %s162
      %s180 = sphi 0, %s180
      %s182 = sphi 0, %s180
      %s183 = sphi 0, %s182
      %s197 = sphi 0, %s183
      %s201 = sphi 0, %s201
      %s203 = sphi 0, %s201
      %s204 = sphi 0, %s203
      %s218 = sphi 0, %s204
      %s222 = sphi 0, %s222
      %s224 = sphi 0, %s222
      %s225 = sphi 0, %s224
      %s239 = sphi 0, %s225
      %s245 = sphi 0, %s247
      %s248 = sphi 0, %s245
      %s249 = sphi 0, %s248
      %s265 = sphi 0, %s249
    $region4: #{tpu_custom_call.1} parent=1 // loop_header_branch
      %23 = sbr.rel (%p21) target = $region8
    $region5: #{tpu_custom_call.1} parent=1 // loop_body
      %s25 = ssub.s32 %s20, 1
      %s26 = ssub.s32 %s20, 2
      %s27 = sadd.s32 %s20, 1
      %s28 = ssub.s32 %s20, %s27
      %p29 = scmp.eq.s32.totalorder %s28, 0
      %s31 = sadd.s32 %s30, 1
      %s32 = scalar_select %p29, %s30, %s31
      %p35 = pneg %p29
      %p36 = scmp.eq.s32.totalorder %s20, 1
      %p37 = por %p35, %p36
      %p38 = scmp.ne.s32.totalorder %s30, %s33
      %p39 = scmp.eq.s32.totalorder %s20, 0
      %p40 = por %p38, %p39
      %p41 = scmp.ne.s32.totalorder %s30, %s33
      %p42 = scmp.eq.s32.totalorder %s25, 1
      %p43 = por %p41, %p42
      %p44 = scmp.ne.s32.totalorder %s33, %s34
      %p45 = scmp.eq.s32.totalorder %s25, 0
      %p46 = por %p44, %p45
      %p47 = scmp.ne.s32.totalorder %s33, %s34
      %p48 = scmp.eq.s32.totalorder %s26, 1
      %p49 = por %p47, %p48
      %p51 = scmp.ne.s32.totalorder %s34, %s50
      %p52 = scmp.eq.s32.totalorder %s26, 0
      %p53 = por %p51, %p52
      %s55 = sadd.s32 %s54, 1
      %p58 = scmp.eq.s32.totalorder %s20, 1
      %p59 = scmp.ne.s32.totalorder %s54, %s56
      %p60 = scmp.eq.s32.totalorder %s20, 0
      %p61 = por %p59, %p60
      %p62 = scmp.ne.s32.totalorder %s54, %s56
      %p63 = scmp.eq.s32.totalorder %s25, 1
      %p64 = por %p62, %p63
      %p65 = scmp.ne.s32.totalorder %s56, %s57
      %p66 = scmp.eq.s32.totalorder %s25, 0
      %p67 = por %p65, %p66
      %p68 = scmp.ne.s32.totalorder %s56, %s57
      %p69 = scmp.eq.s32.totalorder %s26, 1
      %p70 = por %p68, %p69
      %p72 = scmp.ne.s32.totalorder %s57, %s71
      %p73 = scmp.eq.s32.totalorder %s26, 0
      %p74 = por %p72, %p73
      %s76 = sadd.s32 %s75, 1
      %p79 = scmp.eq.s32.totalorder %s20, 1
      %p80 = scmp.ne.s32.totalorder %s75, %s77
      %p81 = scmp.eq.s32.totalorder %s20, 0
      %p82 = por %p80, %p81
      %p83 = scmp.ne.s32.totalorder %s75, %s77
      %p84 = scmp.eq.s32.totalorder %s25, 1
      %p85 = por %p83, %p84
      %p86 = scmp.ne.s32.totalorder %s77, %s78
      %p87 = scmp.eq.s32.totalorder %s25, 0
      %p88 = por %p86, %p87
      %p89 = scmp.ne.s32.totalorder %s77, %s78
      %p90 = scmp.eq.s32.totalorder %s26, 1
      %p91 = por %p89, %p90
      %p93 = scmp.ne.s32.totalorder %s78, %s92
      %p94 = scmp.eq.s32.totalorder %s26, 0
      %p95 = por %p93, %p94
      %s97 = sadd.s32 %s96, 1
      %p100 = scmp.eq.s32.totalorder %s20, 1
      %p101 = scmp.ne.s32.totalorder %s96, %s98
      %p102 = scmp.eq.s32.totalorder %s20, 0
      %p103 = por %p101, %p102
      %p104 = scmp.ne.s32.totalorder %s96, %s98
      %p105 = scmp.eq.s32.totalorder %s25, 1
      %p106 = por %p104, %p105
      %p107 = scmp.ne.s32.totalorder %s98, %s99
      %p108 = scmp.eq.s32.totalorder %s25, 0
      %p109 = por %p107, %p108
      %p110 = scmp.ne.s32.totalorder %s98, %s99
      %p111 = scmp.eq.s32.totalorder %s26, 1
      %p112 = por %p110, %p111
      %p114 = scmp.ne.s32.totalorder %s99, %s113
      %p115 = scmp.eq.s32.totalorder %s26, 0
      %p116 = por %p114, %p115
      %s118 = sadd.s32 %s117, 1
      %p121 = scmp.eq.s32.totalorder %s20, 1
      %p122 = scmp.ne.s32.totalorder %s117, %s119
      %p123 = scmp.eq.s32.totalorder %s20, 0
      %p124 = por %p122, %p123
      %p125 = scmp.ne.s32.totalorder %s117, %s119
      %p126 = scmp.eq.s32.totalorder %s25, 1
      %p127 = por %p125, %p126
      %p128 = scmp.ne.s32.totalorder %s119, %s120
      %p129 = scmp.eq.s32.totalorder %s25, 0
      %p130 = por %p128, %p129
      %p131 = scmp.ne.s32.totalorder %s119, %s120
      %p132 = scmp.eq.s32.totalorder %s26, 1
      %p133 = por %p131, %p132
      %p135 = scmp.ne.s32.totalorder %s120, %s134
      %p136 = scmp.eq.s32.totalorder %s26, 0
      %p137 = por %p135, %p136
      %s139 = sadd.s32 %s138, 1
      %p142 = scmp.eq.s32.totalorder %s20, 1
      %p143 = scmp.ne.s32.totalorder %s138, %s140
      %p144 = scmp.eq.s32.totalorder %s20, 0
      %p145 = por %p143, %p144
      %p146 = scmp.ne.s32.totalorder %s138, %s140
      %p147 = scmp.eq.s32.totalorder %s25, 1
      %p148 = por %p146, %p147
      %p149 = scmp.ne.s32.totalorder %s140, %s141
      %p150 = scmp.eq.s32.totalorder %s25, 0
      %p151 = por %p149, %p150
      %p152 = scmp.ne.s32.totalorder %s140, %s141
      %p153 = scmp.eq.s32.totalorder %s26, 1
      %p154 = por %p152, %p153
      %p156 = scmp.ne.s32.totalorder %s141, %s155
      %p157 = scmp.eq.s32.totalorder %s26, 0
      %p158 = por %p156, %p157
      %s160 = sadd.s32 %s159, 1
      %p163 = scmp.eq.s32.totalorder %s20, 1
      %p164 = scmp.ne.s32.totalorder %s159, %s161
      %p165 = scmp.eq.s32.totalorder %s20, 0
      %p166 = por %p164, %p165
      %p167 = scmp.ne.s32.totalorder %s159, %s161
      %p168 = scmp.eq.s32.totalorder %s25, 1
      %p169 = por %p167, %p168
      %p170 = scmp.ne.s32.totalorder %s161, %s162
      %p171 = scmp.eq.s32.totalorder %s25, 0
      %p172 = por %p170, %p171
      %p173 = scmp.ne.s32.totalorder %s161, %s162
      %p174 = scmp.eq.s32.totalorder %s26, 1
      %p175 = por %p173, %p174
      %p177 = scmp.ne.s32.totalorder %s162, %s176
      %p178 = scmp.eq.s32.totalorder %s26, 0
      %p179 = por %p177, %p178
      %s181 = sadd.s32 %s180, 1
      %p184 = scmp.eq.s32.totalorder %s20, 1
      %p185 = scmp.ne.s32.totalorder %s180, %s182
      %p186 = scmp.eq.s32.totalorder %s20, 0
      %p187 = por %p185, %p186
      %p188 = scmp.ne.s32.totalorder %s180, %s182
      %p189 = scmp.eq.s32.totalorder %s25, 1
      %p190 = por %p188, %p189
      %p191 = scmp.ne.s32.totalorder %s182, %s183
      %p192 = scmp.eq.s32.totalorder %s25, 0
      %p193 = por %p191, %p192
      %p194 = scmp.ne.s32.totalorder %s182, %s183
      %p195 = scmp.eq.s32.totalorder %s26, 1
      %p196 = por %p194, %p195
      %p198 = scmp.ne.s32.totalorder %s183, %s197
      %p199 = scmp.eq.s32.totalorder %s26, 0
      %p200 = por %p198, %p199
      %s202 = sadd.s32 %s201, 1
      %p205 = scmp.eq.s32.totalorder %s20, 1
      %p206 = scmp.ne.s32.totalorder %s201, %s203
      %p207 = scmp.eq.s32.totalorder %s20, 0
      %p208 = por %p206, %p207
      %p209 = scmp.ne.s32.totalorder %s201, %s203
      %p210 = scmp.eq.s32.totalorder %s25, 1
      %p211 = por %p209, %p210
      %p212 = scmp.ne.s32.totalorder %s203, %s204
      %p213 = scmp.eq.s32.totalorder %s25, 0
      %p214 = por %p212, %p213
      %p215 = scmp.ne.s32.totalorder %s203, %s204
      %p216 = scmp.eq.s32.totalorder %s26, 1
      %p217 = por %p215, %p216
      %p219 = scmp.ne.s32.totalorder %s204, %s218
      %p220 = scmp.eq.s32.totalorder %s26, 0
      %p221 = por %p219, %p220
      %s223 = sadd.s32 %s222, 1
      %p226 = scmp.eq.s32.totalorder %s20, 1
      %p227 = scmp.ne.s32.totalorder %s222, %s224
      %p228 = scmp.eq.s32.totalorder %s20, 0
      %p229 = por %p227, %p228
      %p230 = scmp.ne.s32.totalorder %s222, %s224
      %p231 = scmp.eq.s32.totalorder %s25, 1
      %p232 = por %p230, %p231
      %p233 = scmp.ne.s32.totalorder %s224, %s225
      %p234 = scmp.eq.s32.totalorder %s25, 0
      %p235 = por %p233, %p234
      %p236 = scmp.ne.s32.totalorder %s224, %s225
      %p237 = scmp.eq.s32.totalorder %s26, 1
      %p238 = por %p236, %p237
      %p240 = scmp.ne.s32.totalorder %s225, %s239
      %p241 = scmp.eq.s32.totalorder %s26, 0
      %p242 = por %p240, %p241
      %s243 = ssub.s32 %s20, %s27
      %p244 = scmp.eq.s32.totalorder %s243, 0
      %s246 = sadd.s32 %s245, 1
      %s247 = scalar_select %p244, %s245, %s246
      %p250 = pneg %p244
      %p251 = scmp.eq.s32.totalorder %s20, 1
      %p252 = por %p250, %p251
      %p253 = scmp.ne.s32.totalorder %s245, %s248
      %p254 = scmp.eq.s32.totalorder %s20, 0
      %p255 = por %p253, %p254
      %p256 = scmp.ne.s32.totalorder %s245, %s248
      %p257 = scmp.eq.s32.totalorder %s25, 1
      %p258 = por %p256, %p257
      %p259 = scmp.ne.s32.totalorder %s248, %s249
      %p260 = scmp.eq.s32.totalorder %s25, 0
      %p261 = por %p259, %p260
      %p262 = scmp.ne.s32.totalorder %s248, %s249
      %p263 = scmp.eq.s32.totalorder %s26, 1
      %p264 = por %p262, %p263
      %p266 = scmp.ne.s32.totalorder %s249, %s265
      %p267 = scmp.eq.s32.totalorder %s26, 0
      %p268 = por %p266, %p267
      %p269 = scmp.le.s32.totalorder 1, %s20
      %p270 = scmp.lt.s32.totalorder %s20, 3
      %p271 = pnand %p269, %p270
      %p272 = pneg %p271
      // Predicated region
      $region9: #{tpu_custom_call.1} parent=5 // pred_check
        _
      $region10: #{tpu_custom_call.1} parent=5 // pred_check_branch
        %274 = sbr.rel (%p271) target = $region12
      $region11: #{tpu_custom_call.1} parent=5 // pred_region
        %s275 = ssub.s32 %s20, 1
        // Predicated region
        $region13: #{tpu_custom_call.1} parent=11 // pred_check
          %p276 = pneg %p67
        $region14: #{tpu_custom_call.1} parent=11 // pred_check_branch
          %278 = sbr.rel (%p276) target = $region16
        $region15: #{tpu_custom_call.1} parent=11 // pred_region
          _
        $region16: #{tpu_custom_call.1} parent=11 // pred_fallthru
          _
        // Predicated region
        $region17: #{tpu_custom_call.1} parent=11 // pred_check
          %p279 = pneg %p88
        $region18: #{tpu_custom_call.1} parent=11 // pred_check_branch
          %281 = sbr.rel (%p279) target = $region20
        $region19: #{tpu_custom_call.1} parent=11 // pred_region
          _
        $region20: #{tpu_custom_call.1} parent=11 // pred_fallthru
          _
        // Predicated region
        $region21: #{tpu_custom_call.1} parent=11 // pred_check
          %p282 = pneg %p109
        $region22: #{tpu_custom_call.1} parent=11 // pred_check_branch
          %284 = sbr.rel (%p282) target = $region24
        $region23: #{tpu_custom_call.1} parent=11 // pred_region
          _
        $region24: #{tpu_custom_call.1} parent=11 // pred_fallthru
          _
        // Predicated region
        $region25: #{tpu_custom_call.1} parent=11 // pred_check
          %p285 = pneg %p130
        $region26: #{tpu_custom_call.1} parent=11 // pred_check_branch
          %287 = sbr.rel (%p285) target = $region28
        $region27: #{tpu_custom_call.1} parent=11 // pred_region
          _
        $region28: #{tpu_custom_call.1} parent=11 // pred_fallthru
          _
        // Predicated region
        $region29: #{tpu_custom_call.1} parent=11 // pred_check
          %p288 = pneg %p151
        $region30: #{tpu_custom_call.1} parent=11 // pred_check_branch
          %290 = sbr.rel (%p288) target = $region32
        $region31: #{tpu_custom_call.1} parent=11 // pred_region
          _
        $region32: #{tpu_custom_call.1} parent=11 // pred_fallthru
          _
        // Predicated region
        $region33: #{tpu_custom_call.1} parent=11 // pred_check
          %p291 = pneg %p172
        $region34: #{tpu_custom_call.1} parent=11 // pred_check_branch
          %293 = sbr.rel (%p291) target = $region36
        $region35: #{tpu_custom_call.1} parent=11 // pred_region
          _
        $region36: #{tpu_custom_call.1} parent=11 // pred_fallthru
          _
        // Predicated region
        $region37: #{tpu_custom_call.1} parent=11 // pred_check
          %p294 = pneg %p193
        $region38: #{tpu_custom_call.1} parent=11 // pred_check_branch
          %296 = sbr.rel (%p294) target = $region40
        $region39: #{tpu_custom_call.1} parent=11 // pred_region
          _
        $region40: #{tpu_custom_call.1} parent=11 // pred_fallthru
          _
        // Predicated region
        $region41: #{tpu_custom_call.1} parent=11 // pred_check
          %p297 = pneg %p214
        $region42: #{tpu_custom_call.1} parent=11 // pred_check_branch
          %299 = sbr.rel (%p297) target = $region44
        $region43: #{tpu_custom_call.1} parent=11 // pred_region
          _
        $region44: #{tpu_custom_call.1} parent=11 // pred_fallthru
          _
        // Predicated region
        $region45: #{tpu_custom_call.1} parent=11 // pred_check
          %p300 = pneg %p235
        $region46: #{tpu_custom_call.1} parent=11 // pred_check_branch
          %302 = sbr.rel (%p300) target = $region48
        $region47: #{tpu_custom_call.1} parent=11 // pred_region
          _
        $region48: #{tpu_custom_call.1} parent=11 // pred_fallthru
          _
      $region12: #{tpu_custom_call.1} parent=5 // pred_fallthru
        _
      %p303 = scmp.lt.s32.totalorder %s20, 2
      // Predicated region
      $region49: #{tpu_custom_call.1} parent=5 // pred_check
        %p304 = pneg %p303
      $region50: #{tpu_custom_call.1} parent=5 // pred_check_branch
        %306 = sbr.rel (%p304) target = $region52
      $region51: #{tpu_custom_call.1} parent=5 // pred_region
        // Predicated region
        $region53: #{tpu_custom_call.1} parent=51 // pred_check
          %p307 = pneg %p40
        $region54: #{tpu_custom_call.1} parent=51 // pred_check_branch
          %309 = sbr.rel (%p307) target = $region56
        $region55: #{tpu_custom_call.1} parent=51 // pred_region
          %s310 = smul.u32 64, %s20
          %p311 = scmp.lt.s32.totalorder %s310, 127
          %s312 = scalar_select %p311, %s310, 127
          %s313 = smul.addr %s312, 4
          %s314 = scalar_lea.vmem %s0, %s313
          %s315 = smul.u32 64, %s20
        $region56: #{tpu_custom_call.1} parent=51 // pred_fallthru
          _
      $region52: #{tpu_custom_call.1} parent=5 // pred_fallthru
        _
      %p316 = scmp.le.s32.totalorder 1, %s20
      %p317 = scmp.lt.s32.totalorder %s20, 3
      %p318 = pnand %p316, %p317
      %p319 = pneg %p318
      // Predicated region
      $region57: #{tpu_custom_call.1} parent=5 // pred_check
        _
      $region58: #{tpu_custom_call.1} parent=5 // pred_check_branch
        %321 = sbr.rel (%p318) target = $region60
      $region59: #{tpu_custom_call.1} parent=5 // pred_region
        %s322 = ssub.s32 %s20, 1
        %s323 = smul.u32 64, %s25
        %p324 = scmp.lt.s32.totalorder %s323, 127
        %s325 = scalar_select %p324, %s323, 127
        %s326 = smul.addr %s325, 4
        %s327 = scalar_lea.vmem %s0, %s326
        %p328 = pneg %p46
        %p329 = pneg %p43
        %p330 = pneg %p67
        %p331 = pneg %p64
        %p332 = pneg %p88
        %p333 = pneg %p85
        %p334 = pneg %p109
        %p335 = pneg %p106
        %p336 = pneg %p130
        %p337 = pneg %p127
        %p338 = pneg %p151
        %p339 = pneg %p148
        %p340 = pneg %p172
        %p341 = pneg %p169
        %p342 = pneg %p193
        %p343 = pneg %p190
        %p344 = pneg %p214
        %p345 = pneg %p211
        %p346 = pneg %p235
        %p347 = pneg %p232
        %p348 = pneg %p261
        %p349 = pneg %p258
        %s350 = sand.u32 %s248, 1
        %s351 = scalar_lea.sflag [#allocation4], %s350
        %s352 = sand.u32 %s248, 1
        %s353 = smul.addr %s352, 4
        %s354 = scalar_lea.vmem [#allocation3], %s353
        %s355 = smul.u32 64, %s25
        %p356 = scmp.lt.s32.totalorder %s355, 127
        %s357 = scalar_select %p356, %s355, 127
        %s358 = smul.addr %s357, 4
        %s359 = scalar_lea.vmem %s0, %s358
        %s360 = smul.u32 64, %s25
        %s361 = smul.u32 4, %s25
        %v363 = vld [vmem:[%s2] sm:$0x7]
        %v364 = vld [vmem:[%s4] sm:$0x7]
        %v365 = vld [vmem:[%s8] sm:$0x7]
        %v366 = vld [vmem:[%s359] sm:$0xf]
        %v367 = vld [vmem:[%s359 + $0x4] sm:$0xf]
        %v368 = vld [vmem:[%s359 + $0x8] sm:$0xf]
        %v369 = vld [vmem:[%s359 + $0xc] sm:$0xf]
        %v370 = vld [vmem:[%s359 + $0x10] sm:$0xf]
        %v371 = vld [vmem:[%s359 + $0x14] sm:$0xf]
        %v372 = vld [vmem:[%s359 + $0x18] sm:$0xf]
        %v373 = vld [vmem:[%s359 + $0x1c] sm:$0xf]
        %v374 = vld [vmem:[%s359 + $0x20] sm:$0xf]
        %v375 = vld [vmem:[%s359 + $0x24] sm:$0xf]
        %v376 = vld [vmem:[%s359 + $0x28] sm:$0xf]
        %v377 = vld [vmem:[%s359 + $0x2c] sm:$0xf]
        %v378 = vld [vmem:[%s359 + $0x30] sm:$0xf]
        %v379 = vld [vmem:[%s359 + $0x34] sm:$0xf]
        %v380 = vld [vmem:[%s359 + $0x38] sm:$0xf]
        %v381 = vld [vmem:[%s359 + $0x3c] sm:$0xf]
        %v382 = vld [vmem:[%s359 + $0x40] sm:$0xf]
        %v383 = vld [vmem:[%s359 + $0x44] sm:$0xf]
        %v384 = vld [vmem:[%s359 + $0x48] sm:$0xf]
        %v385 = vld [vmem:[%s359 + $0x4c] sm:$0xf]
        %v386 = vld [vmem:[%s359 + $0x50] sm:$0xf]
        %v387 = vld [vmem:[%s359 + $0x54] sm:$0xf]
        %v388 = vld [vmem:[%s359 + $0x58] sm:$0xf]
        %v389 = vld [vmem:[%s359 + $0x5c] sm:$0xf]
        %v390 = vld [vmem:[%s359 + $0x60] sm:$0xf]
        %v391 = vld [vmem:[%s359 + $0x64] sm:$0xf]
        %v392 = vld [vmem:[%s359 + $0x68] sm:$0xf]
        %v393 = vld [vmem:[%s359 + $0x6c] sm:$0xf]
        %v394 = vld [vmem:[%s359 + $0x70] sm:$0xf]
        %v395 = vld [vmem:[%s359 + $0x74] sm:$0xf]
        %v396 = vld [vmem:[%s359 + $0x78] sm:$0xf]
        %v397 = vld [vmem:[%s359 + $0x7c] sm:$0xf]
        %v398 = vld [vmem:[%s359 + $0x80] sm:$0xf]
        %v399 = vld [vmem:[%s359 + $0x84] sm:$0xf]
        %v400 = vld [vmem:[%s359 + $0x88] sm:$0xf]
        %v401 = vld [vmem:[%s359 + $0x8c] sm:$0xf]
        %v402 = vld [vmem:[%s359 + $0x90] sm:$0xf]
        %v403 = vld [vmem:[%s359 + $0x94] sm:$0xf]
        %v404 = vld [vmem:[%s359 + $0x98] sm:$0xf]
        %v405 = vld [vmem:[%s359 + $0x9c] sm:$0xf]
        %v406 = vld [vmem:[%s359 + $0xa0] sm:$0xf]
        %v407 = vld [vmem:[%s359 + $0xa4] sm:$0xf]
        %v408 = vld [vmem:[%s359 + $0xa8] sm:$0xf]
        %v409 = vld [vmem:[%s359 + $0xac] sm:$0xf]
        %v410 = vld [vmem:[%s359 + $0xb0] sm:$0xf]
        %v411 = vld [vmem:[%s359 + $0xb4] sm:$0xf]
        %v412 = vld [vmem:[%s359 + $0xb8] sm:$0xf]
        %v413 = vld [vmem:[%s359 + $0xbc] sm:$0xf]
        %v414 = vld [vmem:[%s359 + $0xc0] sm:$0xf]
        %v415 = vld [vmem:[%s359 + $0xc4] sm:$0xf]
        %v416 = vld [vmem:[%s359 + $0xc8] sm:$0xf]
        %v417 = vld [vmem:[%s359 + $0xcc] sm:$0xf]
        %v418 = vld [vmem:[%s359 + $0xd0] sm:$0xf]
        %v419 = vld [vmem:[%s359 + $0xd4] sm:$0xf]
        %v420 = vld [vmem:[%s359 + $0xd8] sm:$0xf]
        %v421 = vld [vmem:[%s359 + $0xdc] sm:$0xf]
        %v422 = vld [vmem:[%s359 + $0xe0] sm:$0xf]
        %v423 = vld [vmem:[%s359 + $0xe4] sm:$0xf]
        %v424 = vld [vmem:[%s359 + $0xe8] sm:$0xf]
        %v425 = vld [vmem:[%s359 + $0xec] sm:$0xf]
        %v426 = vld [vmem:[%s359 + $0xf0] sm:$0xf]
        %v427 = vld [vmem:[%s359 + $0xf4] sm:$0xf]
        %v428 = vld [vmem:[%s359 + $0xf8] sm:$0xf]
        %v429 = vld [vmem:[%s359 + $0xfc] sm:$0xf]
        %v430 = vld [vmem:[%s1] sm:$0xf]
        %v431 = vld [vmem:[%s1 + $0x4] sm:$0xf]
        %v432 = vld [vmem:[%s1 + $0x8] sm:$0xf]
        %v433 = vld [vmem:[%s1 + $0xc] sm:$0xf]
        %v434 = vlaneseq
        %v435 = vshrl.u32 %v434, 7
        %v436 = vsub.s32 0, %v435
        %v437 = vrot.slane %v363, %v436
        %v502 = vunpack.c.l.b16 %v366
        %v503 = vunpack.c.l.b16 %v367
        %v504 = vunpack.c.l.b16 %v368
        %v505 = vunpack.c.l.b16 %v369
        %v506 = vunpack.c.l.b16 %v370
        %v507 = vunpack.c.l.b16 %v371
        %v508 = vunpack.c.l.b16 %v372
        %v509 = vunpack.c.l.b16 %v373
        %v510 = vunpack.c.l.b16 %v374
        %v511 = vunpack.c.l.b16 %v375
        %v512 = vunpack.c.l.b16 %v376
        %v513 = vunpack.c.l.b16 %v377
        %v514 = vunpack.c.l.b16 %v378
        %v515 = vunpack.c.l.b16 %v379
        %v516 = vunpack.c.l.b16 %v380
        %v517 = vunpack.c.l.b16 %v381
        %v518 = vunpack.c.l.b16 %v382
        %v519 = vunpack.c.l.b16 %v383
        %v520 = vunpack.c.l.b16 %v384
        %v521 = vunpack.c.l.b16 %v385
        %v522 = vunpack.c.l.b16 %v386
        %v523 = vunpack.c.l.b16 %v387
        %v524 = vunpack.c.l.b16 %v388
        %v525 = vunpack.c.l.b16 %v389
        %v526 = vunpack.c.l.b16 %v390
        %v527 = vunpack.c.l.b16 %v391
        %v528 = vunpack.c.l.b16 %v392
        %v529 = vunpack.c.l.b16 %v393
        %v530 = vunpack.c.l.b16 %v394
        %v531 = vunpack.c.l.b16 %v395
        %v532 = vunpack.c.l.b16 %v396
        %v533 = vunpack.c.l.b16 %v397
        %v534 = vunpack.c.l.b16 %v398
        %v535 = vunpack.c.l.b16 %v399
        %v536 = vunpack.c.l.b16 %v400
        %v537 = vunpack.c.l.b16 %v401
        %v538 = vunpack.c.l.b16 %v402
        %v539 = vunpack.c.l.b16 %v403
        %v540 = vunpack.c.l.b16 %v404
        %v541 = vunpack.c.l.b16 %v405
        %v542 = vunpack.c.l.b16 %v406
        %v543 = vunpack.c.l.b16 %v407
        %v544 = vunpack.c.l.b16 %v408
        %v545 = vunpack.c.l.b16 %v409
        %v546 = vunpack.c.l.b16 %v410
        %v547 = vunpack.c.l.b16 %v411
        %v548 = vunpack.c.l.b16 %v412
        %v549 = vunpack.c.l.b16 %v413
        %v550 = vunpack.c.l.b16 %v414
        %v551 = vunpack.c.l.b16 %v415
        %v552 = vunpack.c.l.b16 %v416
        %v553 = vunpack.c.l.b16 %v417
        %v554 = vunpack.c.l.b16 %v418
        %v555 = vunpack.c.l.b16 %v419
        %v556 = vunpack.c.l.b16 %v420
        %v557 = vunpack.c.l.b16 %v421
        %v558 = vunpack.c.l.b16 %v422
        %v559 = vunpack.c.l.b16 %v423
        %v560 = vunpack.c.l.b16 %v424
        %v561 = vunpack.c.l.b16 %v425
        %v562 = vunpack.c.l.b16 %v426
        %v563 = vunpack.c.l.b16 %v427
        %v564 = vunpack.c.l.b16 %v428
        %v565 = vunpack.c.l.b16 %v429
        %v566 = vpack.c.b16 %v503, %v502
        %v567 = vpack.c.b16 %v505, %v504
        %v568 = vpack.c.b16 %v507, %v506
        %v569 = vpack.c.b16 %v509, %v508
        %v570 = vpack.c.b16 %v511, %v510
        %v571 = vpack.c.b16 %v513, %v512
        %v572 = vpack.c.b16 %v515, %v514
        %v573 = vpack.c.b16 %v517, %v516
        %v574 = vpack.c.b16 %v519, %v518
        %v575 = vpack.c.b16 %v521, %v520
        %v576 = vpack.c.b16 %v523, %v522
        %v577 = vpack.c.b16 %v525, %v524
        %v578 = vpack.c.b16 %v527, %v526
        %v579 = vpack.c.b16 %v529, %v528
        %v580 = vpack.c.b16 %v531, %v530
        %v581 = vpack.c.b16 %v533, %v532
        %v582 = vpack.c.b16 %v535, %v534
        %v583 = vpack.c.b16 %v537, %v536
        %v584 = vpack.c.b16 %v539, %v538
        %v585 = vpack.c.b16 %v541, %v540
        %v586 = vpack.c.b16 %v543, %v542
        %v587 = vpack.c.b16 %v545, %v544
        %v588 = vpack.c.b16 %v547, %v546
        %v589 = vpack.c.b16 %v549, %v548
        %v590 = vpack.c.b16 %v551, %v550
        %v591 = vpack.c.b16 %v553, %v552
        %v592 = vpack.c.b16 %v555, %v554
        %v593 = vpack.c.b16 %v557, %v556
        %v594 = vpack.c.b16 %v559, %v558
        %v595 = vpack.c.b16 %v561, %v560
        %v596 = vpack.c.b16 %v563, %v562
        %v597 = vpack.c.b16 %v565, %v564
        %v602 = vunpack.c.l.b16 %v430
        %v603 = vunpack.c.l.b16 %v431
        %v604 = vunpack.c.l.b16 %v432
        %v605 = vunpack.c.l.b16 %v433
        %v606 = vpack.c.b16 %v603, %v602
        %v607 = vpack.c.b16 %v605, %v604
        %vm610 = vcmask 261120
        %v612 = vsel %vm610, %v566, 0
        %v615 = vsel %vm610, %v567, 0
        %v618 = vsel %vm610, %v568, 0
        %v621 = vsel %vm610, %v569, 0
        %v624 = vsel %vm610, %v570, 0
        %v627 = vsel %vm610, %v571, 0
        %v630 = vsel %vm610, %v572, 0
        %v633 = vsel %vm610, %v573, 0
        %v636 = vsel %vm610, %v574, 0
        %v639 = vsel %vm610, %v575, 0
        %v642 = vsel %vm610, %v576, 0
        %v645 = vsel %vm610, %v577, 0
        %v648 = vsel %vm610, %v578, 0
        %v651 = vsel %vm610, %v579, 0
        %v654 = vsel %vm610, %v580, 0
        %v657 = vsel %vm610, %v581, 0
        %v660 = vsel %vm610, %v582, 0
        %v663 = vsel %vm610, %v583, 0
        %v666 = vsel %vm610, %v584, 0
        %v669 = vsel %vm610, %v585, 0
        %v672 = vsel %vm610, %v586, 0
        %v675 = vsel %vm610, %v587, 0
        %v678 = vsel %vm610, %v588, 0
        %v681 = vsel %vm610, %v589, 0
        %v684 = vsel %vm610, %v590, 0
        %v687 = vsel %vm610, %v591, 0
        %v690 = vsel %vm610, %v592, 0
        %v693 = vsel %vm610, %v593, 0
        %v696 = vsel %vm610, %v594, 0
        %v699 = vsel %vm610, %v595, 0
        %v702 = vsel %vm610, %v596, 0
        %v705 = vsel %vm610, %v597, 0
        %707 = vmatprep.subr.bf16.mxu0 0
        %708 = vmatpush1.bf16.msra.mxu0 0
        %709 = vmatprep.subr.bf16.mxu0 0
        %710 = vmatpush1.bf16.msra.mxu0 0
        %711 = vmatprep.subr.bf16.mxu0 0
        %712 = vmatpush1.bf16.msra.mxu0 0
        %713 = vmatprep.subr.bf16.mxu0 0
        %714 = vmatpush1.bf16.msra.mxu0 0
        %715 = vmatprep.subr.bf16.mxu0 0
        %716 = vmatpush1.bf16.msra.mxu0 0
        %717 = vmatprep.subr.bf16.mxu0 0
        %718 = vmatpush1.bf16.msra.mxu0 0
        %719 = vmatprep.subr.bf16.mxu0 0
        %720 = vmatpush1.bf16.msra.mxu0 %v607
        %721 = vmatprep.subr.bf16.mxu0 0
        %722 = vmatpush1.bf16.msra.mxu0 %v606
        %723 = vmatprep.subr.bf16.mxu0 0
        %724 = vmatpush2.bf16.msra.mxu0 0
        %725 = vmatprep.subr.bf16.mxu0 0
        %726 = vmatpush2.bf16.msra.mxu0 0
        %727 = vmatprep.subr.bf16.mxu0 0
        %728 = vmatpush2.bf16.msra.mxu0 0
        %729 = vmatprep.subr.bf16.mxu0 0
        %730 = vmatpush2.bf16.msra.mxu0 0
        %731 = vmatprep.subr.bf16.mxu0 0
        %732 = vmatpush2.bf16.msra.mxu0 0
        %733 = vmatprep.subr.bf16.mxu0 0
        %734 = vmatpush2.bf16.msra.mxu0 0
        %735 = vmatprep.subr.bf16.mxu0 0
        %736 = vmatpush2.bf16.msra.mxu0 0
        %737 = vmatprep.subr.bf16.mxu0 0
        %738 = vmatpush2.bf16.msra.mxu0 0
        %739 = vmatprep.mubr.bf16.mxu0 0
        %740 = vmatmul.mubr.bf16.gmra.mxu0 %v612
        %v741 = vpop.f32.mrf.mxu0
        %v742 = vadd.f32 %v437, %v741
        %v743 = vpop.f32.mrf.mxu0
        %v744 = vpop.f32.mrf.mxu0
        %v745 = vadd.f32 %v437, %v744
        %v746 = vpop.f32.mrf.mxu0
        %747 = vmatprep.mubr.bf16.mxu0 0
        %748 = vmatmul.mubr.bf16.gmra.mxu0 %v615
        %v749 = vpop.f32.mrf.mxu0
        %v750 = vadd.f32 %v437, %v749
        %v751 = vpop.f32.mrf.mxu0
        %v752 = vpop.f32.mrf.mxu0
        %v753 = vadd.f32 %v437, %v752
        %v754 = vpop.f32.mrf.mxu0
        %755 = vmatprep.mubr.bf16.mxu0 0
        %756 = vmatmul.mubr.bf16.gmra.mxu0 %v618
        %v757 = vpop.f32.mrf.mxu0
        %v758 = vadd.f32 %v437, %v757
        %v759 = vpop.f32.mrf.mxu0
        %v760 = vpop.f32.mrf.mxu0
        %v761 = vadd.f32 %v437, %v760
        %v762 = vpop.f32.mrf.mxu0
        %763 = vmatprep.mubr.bf16.mxu0 0
        %764 = vmatmul.mubr.bf16.gmra.mxu0 %v621
        %v765 = vpop.f32.mrf.mxu0
        %v766 = vadd.f32 %v437, %v765
        %v767 = vpop.f32.mrf.mxu0
        %v768 = vpop.f32.mrf.mxu0
        %v769 = vadd.f32 %v437, %v768
        %v770 = vpop.f32.mrf.mxu0
        %771 = vmatprep.mubr.bf16.mxu0 0
        %772 = vmatmul.mubr.bf16.gmra.mxu0 %v624
        %v773 = vpop.f32.mrf.mxu0
        %v774 = vadd.f32 %v437, %v773
        %v775 = vpop.f32.mrf.mxu0
        %v776 = vpop.f32.mrf.mxu0
        %v777 = vadd.f32 %v437, %v776
        %v778 = vpop.f32.mrf.mxu0
        %779 = vmatprep.mubr.bf16.mxu0 0
        %780 = vmatmul.mubr.bf16.gmra.mxu0 %v627
        %v781 = vpop.f32.mrf.mxu0
        %v782 = vadd.f32 %v437, %v781
        %v783 = vpop.f32.mrf.mxu0
        %v784 = vpop.f32.mrf.mxu0
        %v785 = vadd.f32 %v437, %v784
        %v786 = vpop.f32.mrf.mxu0
        %787 = vmatprep.mubr.bf16.mxu0 0
        %788 = vmatmul.mubr.bf16.gmra.mxu0 %v630
        %v789 = vpop.f32.mrf.mxu0
        %v790 = vadd.f32 %v437, %v789
        %v791 = vpop.f32.mrf.mxu0
        %v792 = vpop.f32.mrf.mxu0
        %v793 = vadd.f32 %v437, %v792
        %v794 = vpop.f32.mrf.mxu0
        %795 = vmatprep.mubr.bf16.mxu0 0
        %796 = vmatmul.mubr.bf16.gmra.mxu0 %v633
        %v797 = vpop.f32.mrf.mxu0
        %v798 = vadd.f32 %v437, %v797
        %v799 = vpop.f32.mrf.mxu0
        %v800 = vpop.f32.mrf.mxu0
        %v801 = vadd.f32 %v437, %v800
        %v802 = vpop.f32.mrf.mxu0
        %803 = vmatprep.mubr.bf16.mxu0 0
        %804 = vmatmul.mubr.bf16.gmra.mxu0 %v636
        %v805 = vpop.f32.mrf.mxu0
        %v806 = vadd.f32 %v437, %v805
        %v807 = vpop.f32.mrf.mxu0
        %v808 = vpop.f32.mrf.mxu0
        %v809 = vadd.f32 %v437, %v808
        %v810 = vpop.f32.mrf.mxu0
        %811 = vmatprep.mubr.bf16.mxu0 0
        %812 = vmatmul.mubr.bf16.gmra.mxu0 %v639
        %v813 = vpop.f32.mrf.mxu0
        %v814 = vadd.f32 %v437, %v813
        %v815 = vpop.f32.mrf.mxu0
        %v816 = vpop.f32.mrf.mxu0
        %v817 = vadd.f32 %v437, %v816
        %v818 = vpop.f32.mrf.mxu0
        %819 = vmatprep.mubr.bf16.mxu0 0
        %820 = vmatmul.mubr.bf16.gmra.mxu0 %v642
        %v821 = vpop.f32.mrf.mxu0
        %v822 = vadd.f32 %v437, %v821
        %v823 = vpop.f32.mrf.mxu0
        %v824 = vpop.f32.mrf.mxu0
        %v825 = vadd.f32 %v437, %v824
        %v826 = vpop.f32.mrf.mxu0
        %827 = vmatprep.mubr.bf16.mxu0 0
        %828 = vmatmul.mubr.bf16.gmra.mxu0 %v645
        %v829 = vpop.f32.mrf.mxu0
        %v830 = vadd.f32 %v437, %v829
        %v831 = vpop.f32.mrf.mxu0
        %v832 = vpop.f32.mrf.mxu0
        %v833 = vadd.f32 %v437, %v832
        %v834 = vpop.f32.mrf.mxu0
        %835 = vmatprep.mubr.bf16.mxu0 0
        %836 = vmatmul.mubr.bf16.gmra.mxu0 %v648
        %v837 = vpop.f32.mrf.mxu0
        %v838 = vadd.f32 %v437, %v837
        %v839 = vpop.f32.mrf.mxu0
        %v840 = vpop.f32.mrf.mxu0
        %v841 = vadd.f32 %v437, %v840
        %v842 = vpop.f32.mrf.mxu0
        %843 = vmatprep.mubr.bf16.mxu0 0
        %844 = vmatmul.mubr.bf16.gmra.mxu0 %v651
        %v845 = vpop.f32.mrf.mxu0
        %v846 = vadd.f32 %v437, %v845
        %v847 = vpop.f32.mrf.mxu0
        %v848 = vpop.f32.mrf.mxu0
        %v849 = vadd.f32 %v437, %v848
        %v850 = vpop.f32.mrf.mxu0
        %851 = vmatprep.mubr.bf16.mxu0 0
        %852 = vmatmul.mubr.bf16.gmra.mxu0 %v654
        %v853 = vpop.f32.mrf.mxu0
        %v854 = vadd.f32 %v437, %v853
        %v855 = vpop.f32.mrf.mxu0
        %v856 = vpop.f32.mrf.mxu0
        %v857 = vadd.f32 %v437, %v856
        %v858 = vpop.f32.mrf.mxu0
        %859 = vmatprep.mubr.bf16.mxu0 0
        %860 = vmatmul.mubr.bf16.gmra.mxu0 %v657
        %v861 = vpop.f32.mrf.mxu0
        %v862 = vadd.f32 %v437, %v861
        %v863 = vpop.f32.mrf.mxu0
        %v864 = vpop.f32.mrf.mxu0
        %v865 = vadd.f32 %v437, %v864
        %v866 = vpop.f32.mrf.mxu0
        %867 = vmatprep.mubr.bf16.mxu0 0
        %868 = vmatmul.mubr.bf16.gmra.mxu0 %v660
        %v869 = vpop.f32.mrf.mxu0
        %v870 = vadd.f32 %v437, %v869
        %v871 = vpop.f32.mrf.mxu0
        %v872 = vpop.f32.mrf.mxu0
        %v873 = vadd.f32 %v437, %v872
        %v874 = vpop.f32.mrf.mxu0
        %875 = vmatprep.mubr.bf16.mxu0 0
        %876 = vmatmul.mubr.bf16.gmra.mxu0 %v663
        %v877 = vpop.f32.mrf.mxu0
        %v878 = vadd.f32 %v437, %v877
        %v879 = vpop.f32.mrf.mxu0
        %v880 = vpop.f32.mrf.mxu0
        %v881 = vadd.f32 %v437, %v880
        %v882 = vpop.f32.mrf.mxu0
        %883 = vmatprep.mubr.bf16.mxu0 0
        %884 = vmatmul.mubr.bf16.gmra.mxu0 %v666
        %v885 = vpop.f32.mrf.mxu0
        %v886 = vadd.f32 %v437, %v885
        %v887 = vpop.f32.mrf.mxu0
        %v888 = vpop.f32.mrf.mxu0
        %v889 = vadd.f32 %v437, %v888
        %v890 = vpop.f32.mrf.mxu0
        %891 = vmatprep.mubr.bf16.mxu0 0
        %892 = vmatmul.mubr.bf16.gmra.mxu0 %v669
        %v893 = vpop.f32.mrf.mxu0
        %v894 = vadd.f32 %v437, %v893
        %v895 = vpop.f32.mrf.mxu0
        %v896 = vpop.f32.mrf.mxu0
        %v897 = vadd.f32 %v437, %v896
        %v898 = vpop.f32.mrf.mxu0
        %899 = vmatprep.mubr.bf16.mxu0 0
        %900 = vmatmul.mubr.bf16.gmra.mxu0 %v672
        %v901 = vpop.f32.mrf.mxu0
        %v902 = vadd.f32 %v437, %v901
        %v903 = vpop.f32.mrf.mxu0
        %v904 = vpop.f32.mrf.mxu0
        %v905 = vadd.f32 %v437, %v904
        %v906 = vpop.f32.mrf.mxu0
        %907 = vmatprep.mubr.bf16.mxu0 0
        %908 = vmatmul.mubr.bf16.gmra.mxu0 %v675
        %v909 = vpop.f32.mrf.mxu0
        %v910 = vadd.f32 %v437, %v909
        %v911 = vpop.f32.mrf.mxu0
        %v912 = vpop.f32.mrf.mxu0
        %v913 = vadd.f32 %v437, %v912
        %v914 = vpop.f32.mrf.mxu0
        %915 = vmatprep.mubr.bf16.mxu0 0
        %916 = vmatmul.mubr.bf16.gmra.mxu0 %v678
        %v917 = vpop.f32.mrf.mxu0
        %v918 = vadd.f32 %v437, %v917
        %v919 = vpop.f32.mrf.mxu0
        %v920 = vpop.f32.mrf.mxu0
        %v921 = vadd.f32 %v437, %v920
        %v922 = vpop.f32.mrf.mxu0
        %923 = vmatprep.mubr.bf16.mxu0 0
        %924 = vmatmul.mubr.bf16.gmra.mxu0 %v681
        %v925 = vpop.f32.mrf.mxu0
        %v926 = vadd.f32 %v437, %v925
        %v927 = vpop.f32.mrf.mxu0
        %v928 = vpop.f32.mrf.mxu0
        %v929 = vadd.f32 %v437, %v928
        %v930 = vpop.f32.mrf.mxu0
        %931 = vmatprep.mubr.bf16.mxu0 0
        %932 = vmatmul.mubr.bf16.gmra.mxu0 %v684
        %v933 = vpop.f32.mrf.mxu0
        %v934 = vadd.f32 %v437, %v933
        %v935 = vpop.f32.mrf.mxu0
        %v936 = vpop.f32.mrf.mxu0
        %v937 = vadd.f32 %v437, %v936
        %v938 = vpop.f32.mrf.mxu0
        %939 = vmatprep.mubr.bf16.mxu0 0
        %940 = vmatmul.mubr.bf16.gmra.mxu0 %v687
        %v941 = vpop.f32.mrf.mxu0
        %v942 = vadd.f32 %v437, %v941
        %v943 = vpop.f32.mrf.mxu0
        %v944 = vpop.f32.mrf.mxu0
        %v945 = vadd.f32 %v437, %v944
        %v946 = vpop.f32.mrf.mxu0
        %947 = vmatprep.mubr.bf16.mxu0 0
        %948 = vmatmul.mubr.bf16.gmra.mxu0 %v690
        %v949 = vpop.f32.mrf.mxu0
        %v950 = vadd.f32 %v437, %v949
        %v951 = vpop.f32.mrf.mxu0
        %v952 = vpop.f32.mrf.mxu0
        %v953 = vadd.f32 %v437, %v952
        %v954 = vpop.f32.mrf.mxu0
        %955 = vmatprep.mubr.bf16.mxu0 0
        %956 = vmatmul.mubr.bf16.gmra.mxu0 %v693
        %v957 = vpop.f32.mrf.mxu0
        %v958 = vadd.f32 %v437, %v957
        %v959 = vpop.f32.mrf.mxu0
        %v960 = vpop.f32.mrf.mxu0
        %v961 = vadd.f32 %v437, %v960
        %v962 = vpop.f32.mrf.mxu0
        %963 = vmatprep.mubr.bf16.mxu0 0
        %964 = vmatmul.mubr.bf16.gmra.mxu0 %v696
        %v965 = vpop.f32.mrf.mxu0
        %v966 = vadd.f32 %v437, %v965
        %v967 = vpop.f32.mrf.mxu0
        %v968 = vpop.f32.mrf.mxu0
        %v969 = vadd.f32 %v437, %v968
        %v970 = vpop.f32.mrf.mxu0
        %971 = vmatprep.mubr.bf16.mxu0 0
        %972 = vmatmul.mubr.bf16.gmra.mxu0 %v699
        %v973 = vpop.f32.mrf.mxu0
        %v974 = vadd.f32 %v437, %v973
        %v975 = vpop.f32.mrf.mxu0
        %v976 = vpop.f32.mrf.mxu0
        %v977 = vadd.f32 %v437, %v976
        %v978 = vpop.f32.mrf.mxu0
        %979 = vmatprep.mubr.bf16.mxu0 0
        %980 = vmatmul.mubr.bf16.gmra.mxu0 %v702
        %v981 = vpop.f32.mrf.mxu0
        %v982 = vadd.f32 %v437, %v981
        %v983 = vpop.f32.mrf.mxu0
        %v984 = vpop.f32.mrf.mxu0
        %v985 = vadd.f32 %v437, %v984
        %v986 = vpop.f32.mrf.mxu0
        %987 = vmatprep.mubr.bf16.mxu0 0
        %988 = vmatmul.mubr.bf16.gmra.mxu0 %v705
        %v989 = vpop.f32.mrf.mxu0
        %v990 = vadd.f32 %v437, %v989
        %v991 = vpop.f32.mrf.mxu0
        %v992 = vpop.f32.mrf.mxu0
        %v993 = vadd.f32 %v437, %v992
        %v994 = vpop.f32.mrf.mxu0
        %995 = vdwg.mxu0
        %v996 = vmax.f32 %v742, 0.0
        %v997 = vmax.f32 %v745, 0.0
        %v998 = vmax.f32 %v750, 0.0
        %v999 = vmax.f32 %v753, 0.0
        %v1000 = vmax.f32 %v758, 0.0
        %v1001 = vmax.f32 %v761, 0.0
        %v1002 = vmax.f32 %v766, 0.0
        %v1003 = vmax.f32 %v769, 0.0
        %v1004 = vmax.f32 %v774, 0.0
        %v1005 = vmax.f32 %v777, 0.0
        %v1006 = vmax.f32 %v782, 0.0
        %v1007 = vmax.f32 %v785, 0.0
        %v1008 = vmax.f32 %v790, 0.0
        %v1009 = vmax.f32 %v793, 0.0
        %v1010 = vmax.f32 %v798, 0.0
        %v1011 = vmax.f32 %v801, 0.0
        %v1012 = vmax.f32 %v806, 0.0
        %v1013 = vmax.f32 %v809, 0.0
        %v1014 = vmax.f32 %v814, 0.0
        %v1015 = vmax.f32 %v817, 0.0
        %v1016 = vmax.f32 %v822, 0.0
        %v1017 = vmax.f32 %v825, 0.0
        %v1018 = vmax.f32 %v830, 0.0
        %v1019 = vmax.f32 %v833, 0.0
        %v1020 = vmax.f32 %v838, 0.0
        %v1021 = vmax.f32 %v841, 0.0
        %v1022 = vmax.f32 %v846, 0.0
        %v1023 = vmax.f32 %v849, 0.0
        %v1024 = vmax.f32 %v854, 0.0
        %v1025 = vmax.f32 %v857, 0.0
        %v1026 = vmax.f32 %v862, 0.0
        %v1027 = vmax.f32 %v865, 0.0
        %v1028 = vmax.f32 %v870, 0.0
        %v1029 = vmax.f32 %v873, 0.0
        %v1030 = vmax.f32 %v878, 0.0
        %v1031 = vmax.f32 %v881, 0.0
        %v1032 = vmax.f32 %v886, 0.0
        %v1033 = vmax.f32 %v889, 0.0
        %v1034 = vmax.f32 %v894, 0.0
        %v1035 = vmax.f32 %v897, 0.0
        %v1036 = vmax.f32 %v902, 0.0
        %v1037 = vmax.f32 %v905, 0.0
        %v1038 = vmax.f32 %v910, 0.0
        %v1039 = vmax.f32 %v913, 0.0
        %v1040 = vmax.f32 %v918, 0.0
        %v1041 = vmax.f32 %v921, 0.0
        %v1042 = vmax.f32 %v926, 0.0
        %v1043 = vmax.f32 %v929, 0.0
        %v1044 = vmax.f32 %v934, 0.0
        %v1045 = vmax.f32 %v937, 0.0
        %v1046 = vmax.f32 %v942, 0.0
        %v1047 = vmax.f32 %v945, 0.0
        %v1048 = vmax.f32 %v950, 0.0
        %v1049 = vmax.f32 %v953, 0.0
        %v1050 = vmax.f32 %v958, 0.0
        %v1051 = vmax.f32 %v961, 0.0
        %v1052 = vmax.f32 %v966, 0.0
        %v1053 = vmax.f32 %v969, 0.0
        %v1054 = vmax.f32 %v974, 0.0
        %v1055 = vmax.f32 %v977, 0.0
        %v1056 = vmax.f32 %v982, 0.0
        %v1057 = vmax.f32 %v985, 0.0
        %v1058 = vmax.f32 %v990, 0.0
        %v1059 = vmax.f32 %v993, 0.0
        %vm1060 = vcmask 523264
        %v1061 = vsel %vm1060, %v996, 0.0
        %1062 = vadd.xlane.f32.xlu0 %v1061
        %v1063 = vpop.xlane.xlu0 %1062
        %v1064 = vsel %vm1060, %v997, 0.0
        %1065 = vadd.xlane.f32.xlu0 %v1064
        %v1066 = vpop.xlane.xlu0 %1065
        %v1067 = vsel %vm1060, %v998, 0.0
        %1068 = vadd.xlane.f32.xlu0 %v1067
        %v1069 = vpop.xlane.xlu0 %1068
        %v1070 = vsel %vm1060, %v999, 0.0
        %1071 = vadd.xlane.f32.xlu0 %v1070
        %v1072 = vpop.xlane.xlu0 %1071
        %v1073 = vsel %vm1060, %v1000, 0.0
        %1074 = vadd.xlane.f32.xlu0 %v1073
        %v1075 = vpop.xlane.xlu0 %1074
        %v1076 = vsel %vm1060, %v1001, 0.0
        %1077 = vadd.xlane.f32.xlu0 %v1076
        %v1078 = vpop.xlane.xlu0 %1077
        %v1079 = vsel %vm1060, %v1002, 0.0
        %1080 = vadd.xlane.f32.xlu0 %v1079
        %v1081 = vpop.xlane.xlu0 %1080
        %v1082 = vsel %vm1060, %v1003, 0.0
        %1083 = vadd.xlane.f32.xlu0 %v1082
        %v1084 = vpop.xlane.xlu0 %1083
        %v1085 = vsel %vm1060, %v1004, 0.0
        %1086 = vadd.xlane.f32.xlu0 %v1085
        %v1087 = vpop.xlane.xlu0 %1086
        %v1088 = vsel %vm1060, %v1005, 0.0
        %1089 = vadd.xlane.f32.xlu0 %v1088
        %v1090 = vpop.xlane.xlu0 %1089
        %v1091 = vsel %vm1060, %v1006, 0.0
        %1092 = vadd.xlane.f32.xlu0 %v1091
        %v1093 = vpop.xlane.xlu0 %1092
        %v1094 = vsel %vm1060, %v1007, 0.0
        %1095 = vadd.xlane.f32.xlu0 %v1094
        %v1096 = vpop.xlane.xlu0 %1095
        %v1097 = vsel %vm1060, %v1008, 0.0
        %1098 = vadd.xlane.f32.xlu0 %v1097
        %v1099 = vpop.xlane.xlu0 %1098
        %v1100 = vsel %vm1060, %v1009, 0.0
        %1101 = vadd.xlane.f32.xlu0 %v1100
        %v1102 = vpop.xlane.xlu0 %1101
        %v1103 = vsel %vm1060, %v1010, 0.0
        %1104 = vadd.xlane.f32.xlu0 %v1103
        %v1105 = vpop.xlane.xlu0 %1104
        %v1106 = vsel %vm1060, %v1011, 0.0
        %1107 = vadd.xlane.f32.xlu0 %v1106
        %v1108 = vpop.xlane.xlu0 %1107
        %v1109 = vsel %vm1060, %v1012, 0.0
        %1110 = vadd.xlane.f32.xlu0 %v1109
        %v1111 = vpop.xlane.xlu0 %1110
        %v1112 = vsel %vm1060, %v1013, 0.0
        %1113 = vadd.xlane.f32.xlu0 %v1112
        %v1114 = vpop.xlane.xlu0 %1113
        %v1115 = vsel %vm1060, %v1014, 0.0
        %1116 = vadd.xlane.f32.xlu0 %v1115
        %v1117 = vpop.xlane.xlu0 %1116
        %v1118 = vsel %vm1060, %v1015, 0.0
        %1119 = vadd.xlane.f32.xlu0 %v1118
        %v1120 = vpop.xlane.xlu0 %1119
        %v1121 = vsel %vm1060, %v1016, 0.0
        %1122 = vadd.xlane.f32.xlu0 %v1121
        %v1123 = vpop.xlane.xlu0 %1122
        %v1124 = vsel %vm1060, %v1017, 0.0
        %1125 = vadd.xlane.f32.xlu0 %v1124
        %v1126 = vpop.xlane.xlu0 %1125
        %v1127 = vsel %vm1060, %v1018, 0.0
        %1128 = vadd.xlane.f32.xlu0 %v1127
        %v1129 = vpop.xlane.xlu0 %1128
        %v1130 = vsel %vm1060, %v1019, 0.0
        %1131 = vadd.xlane.f32.xlu0 %v1130
        %v1132 = vpop.xlane.xlu0 %1131
        %v1133 = vsel %vm1060, %v1020, 0.0
        %1134 = vadd.xlane.f32.xlu0 %v1133
        %v1135 = vpop.xlane.xlu0 %1134
        %v1136 = vsel %vm1060, %v1021, 0.0
        %1137 = vadd.xlane.f32.xlu0 %v1136
        %v1138 = vpop.xlane.xlu0 %1137
        %v1139 = vsel %vm1060, %v1022, 0.0
        %1140 = vadd.xlane.f32.xlu0 %v1139
        %v1141 = vpop.xlane.xlu0 %1140
        %v1142 = vsel %vm1060, %v1023, 0.0
        %1143 = vadd.xlane.f32.xlu0 %v1142
        %v1144 = vpop.xlane.xlu0 %1143
        %v1145 = vsel %vm1060, %v1024, 0.0
        %1146 = vadd.xlane.f32.xlu0 %v1145
        %v1147 = vpop.xlane.xlu0 %1146
        %v1148 = vsel %vm1060, %v1025, 0.0
        %1149 = vadd.xlane.f32.xlu0 %v1148
        %v1150 = vpop.xlane.xlu0 %1149
        %v1151 = vsel %vm1060, %v1026, 0.0
        %1152 = vadd.xlane.f32.xlu0 %v1151
        %v1153 = vpop.xlane.xlu0 %1152
        %v1154 = vsel %vm1060, %v1027, 0.0
        %1155 = vadd.xlane.f32.xlu0 %v1154
        %v1156 = vpop.xlane.xlu0 %1155
        %v1157 = vsel %vm1060, %v1028, 0.0
        %1158 = vadd.xlane.f32.xlu0 %v1157
        %v1159 = vpop.xlane.xlu0 %1158
        %v1160 = vsel %vm1060, %v1029, 0.0
        %1161 = vadd.xlane.f32.xlu0 %v1160
        %v1162 = vpop.xlane.xlu0 %1161
        %v1163 = vsel %vm1060, %v1030, 0.0
        %1164 = vadd.xlane.f32.xlu0 %v1163
        %v1165 = vpop.xlane.xlu0 %1164
        %v1166 = vsel %vm1060, %v1031, 0.0
        %1167 = vadd.xlane.f32.xlu0 %v1166
        %v1168 = vpop.xlane.xlu0 %1167
        %v1169 = vsel %vm1060, %v1032, 0.0
        %1170 = vadd.xlane.f32.xlu0 %v1169
        %v1171 = vpop.xlane.xlu0 %1170
        %v1172 = vsel %vm1060, %v1033, 0.0
        %1173 = vadd.xlane.f32.xlu0 %v1172
        %v1174 = vpop.xlane.xlu0 %1173
        %v1175 = vsel %vm1060, %v1034, 0.0
        %1176 = vadd.xlane.f32.xlu0 %v1175
        %v1177 = vpop.xlane.xlu0 %1176
        %v1178 = vsel %vm1060, %v1035, 0.0
        %1179 = vadd.xlane.f32.xlu0 %v1178
        %v1180 = vpop.xlane.xlu0 %1179
        %v1181 = vsel %vm1060, %v1036, 0.0
        %1182 = vadd.xlane.f32.xlu0 %v1181
        %v1183 = vpop.xlane.xlu0 %1182
        %v1184 = vsel %vm1060, %v1037, 0.0
        %1185 = vadd.xlane.f32.xlu0 %v1184
        %v1186 = vpop.xlane.xlu0 %1185
        %v1187 = vsel %vm1060, %v1038, 0.0
        %1188 = vadd.xlane.f32.xlu0 %v1187
        %v1189 = vpop.xlane.xlu0 %1188
        %v1190 = vsel %vm1060, %v1039, 0.0
        %1191 = vadd.xlane.f32.xlu0 %v1190
        %v1192 = vpop.xlane.xlu0 %1191
        %v1193 = vsel %vm1060, %v1040, 0.0
        %1194 = vadd.xlane.f32.xlu0 %v1193
        %v1195 = vpop.xlane.xlu0 %1194
        %v1196 = vsel %vm1060, %v1041, 0.0
        %1197 = vadd.xlane.f32.xlu0 %v1196
        %v1198 = vpop.xlane.xlu0 %1197
        %v1199 = vsel %vm1060, %v1042, 0.0
        %1200 = vadd.xlane.f32.xlu0 %v1199
        %v1201 = vpop.xlane.xlu0 %1200
        %v1202 = vsel %vm1060, %v1043, 0.0
        %1203 = vadd.xlane.f32.xlu0 %v1202
        %v1204 = vpop.xlane.xlu0 %1203
        %v1205 = vsel %vm1060, %v1044, 0.0
        %1206 = vadd.xlane.f32.xlu0 %v1205
        %v1207 = vpop.xlane.xlu0 %1206
        %v1208 = vsel %vm1060, %v1045, 0.0
        %1209 = vadd.xlane.f32.xlu0 %v1208
        %v1210 = vpop.xlane.xlu0 %1209
        %v1211 = vsel %vm1060, %v1046, 0.0
        %1212 = vadd.xlane.f32.xlu0 %v1211
        %v1213 = vpop.xlane.xlu0 %1212
        %v1214 = vsel %vm1060, %v1047, 0.0
        %1215 = vadd.xlane.f32.xlu0 %v1214
        %v1216 = vpop.xlane.xlu0 %1215
        %v1217 = vsel %vm1060, %v1048, 0.0
        %1218 = vadd.xlane.f32.xlu0 %v1217
        %v1219 = vpop.xlane.xlu0 %1218
        %v1220 = vsel %vm1060, %v1049, 0.0
        %1221 = vadd.xlane.f32.xlu0 %v1220
        %v1222 = vpop.xlane.xlu0 %1221
        %v1223 = vsel %vm1060, %v1050, 0.0
        %1224 = vadd.xlane.f32.xlu0 %v1223
        %v1225 = vpop.xlane.xlu0 %1224
        %v1226 = vsel %vm1060, %v1051, 0.0
        %1227 = vadd.xlane.f32.xlu0 %v1226
        %v1228 = vpop.xlane.xlu0 %1227
        %v1229 = vsel %vm1060, %v1052, 0.0
        %1230 = vadd.xlane.f32.xlu0 %v1229
        %v1231 = vpop.xlane.xlu0 %1230
        %v1232 = vsel %vm1060, %v1053, 0.0
        %1233 = vadd.xlane.f32.xlu0 %v1232
        %v1234 = vpop.xlane.xlu0 %1233
        %v1235 = vsel %vm1060, %v1054, 0.0
        %1236 = vadd.xlane.f32.xlu0 %v1235
        %v1237 = vpop.xlane.xlu0 %1236
        %v1238 = vsel %vm1060, %v1055, 0.0
        %1239 = vadd.xlane.f32.xlu0 %v1238
        %v1240 = vpop.xlane.xlu0 %1239
        %v1241 = vsel %vm1060, %v1056, 0.0
        %1242 = vadd.xlane.f32.xlu0 %v1241
        %v1243 = vpop.xlane.xlu0 %1242
        %v1244 = vsel %vm1060, %v1057, 0.0
        %1245 = vadd.xlane.f32.xlu0 %v1244
        %v1246 = vpop.xlane.xlu0 %1245
        %v1247 = vsel %vm1060, %v1058, 0.0
        %1248 = vadd.xlane.f32.xlu0 %v1247
        %v1249 = vpop.xlane.xlu0 %1248
        %v1250 = vsel %vm1060, %v1059, 0.0
        %1251 = vadd.xlane.f32.xlu0 %v1250
        %v1252 = vpop.xlane.xlu0 %1251
        %v1253 = vrcp.pop 64.0
        %v1254 = vmul.f32 %v1063, %v1253
        %v1255 = vmul.f32 %v1066, %v1253
        %v1256 = vmul.f32 %v1069, %v1253
        %v1257 = vmul.f32 %v1072, %v1253
        %v1258 = vmul.f32 %v1075, %v1253
        %v1259 = vmul.f32 %v1078, %v1253
        %v1260 = vmul.f32 %v1081, %v1253
        %v1261 = vmul.f32 %v1084, %v1253
        %v1262 = vmul.f32 %v1087, %v1253
        %v1263 = vmul.f32 %v1090, %v1253
        %v1264 = vmul.f32 %v1093, %v1253
        %v1265 = vmul.f32 %v1096, %v1253
        %v1266 = vmul.f32 %v1099, %v1253
        %v1267 = vmul.f32 %v1102, %v1253
        %v1268 = vmul.f32 %v1105, %v1253
        %v1269 = vmul.f32 %v1108, %v1253
        %v1270 = vmul.f32 %v1111, %v1253
        %v1271 = vmul.f32 %v1114, %v1253
        %v1272 = vmul.f32 %v1117, %v1253
        %v1273 = vmul.f32 %v1120, %v1253
        %v1274 = vmul.f32 %v1123, %v1253
        %v1275 = vmul.f32 %v1126, %v1253
        %v1276 = vmul.f32 %v1129, %v1253
        %v1277 = vmul.f32 %v1132, %v1253
        %v1278 = vmul.f32 %v1135, %v1253
        %v1279 = vmul.f32 %v1138, %v1253
        %v1280 = vmul.f32 %v1141, %v1253
        %v1281 = vmul.f32 %v1144, %v1253
        %v1282 = vmul.f32 %v1147, %v1253
        %v1283 = vmul.f32 %v1150, %v1253
        %v1284 = vmul.f32 %v1153, %v1253
        %v1285 = vmul.f32 %v1156, %v1253
        %v1286 = vmul.f32 %v1159, %v1253
        %v1287 = vmul.f32 %v1162, %v1253
        %v1288 = vmul.f32 %v1165, %v1253
        %v1289 = vmul.f32 %v1168, %v1253
        %v1290 = vmul.f32 %v1171, %v1253
        %v1291 = vmul.f32 %v1174, %v1253
        %v1292 = vmul.f32 %v1177, %v1253
        %v1293 = vmul.f32 %v1180, %v1253
        %v1294 = vmul.f32 %v1183, %v1253
        %v1295 = vmul.f32 %v1186, %v1253
        %v1296 = vmul.f32 %v1189, %v1253
        %v1297 = vmul.f32 %v1192, %v1253
        %v1298 = vmul.f32 %v1195, %v1253
        %v1299 = vmul.f32 %v1198, %v1253
        %v1300 = vmul.f32 %v1201, %v1253
        %v1301 = vmul.f32 %v1204, %v1253
        %v1302 = vmul.f32 %v1207, %v1253
        %v1303 = vmul.f32 %v1210, %v1253
        %v1304 = vmul.f32 %v1213, %v1253
        %v1305 = vmul.f32 %v1216, %v1253
        %v1306 = vmul.f32 %v1219, %v1253
        %v1307 = vmul.f32 %v1222, %v1253
        %v1308 = vmul.f32 %v1225, %v1253
        %v1309 = vmul.f32 %v1228, %v1253
        %v1310 = vmul.f32 %v1231, %v1253
        %v1311 = vmul.f32 %v1234, %v1253
        %v1312 = vmul.f32 %v1237, %v1253
        %v1313 = vmul.f32 %v1240, %v1253
        %v1314 = vmul.f32 %v1243, %v1253
        %v1315 = vmul.f32 %v1246, %v1253
        %v1316 = vmul.f32 %v1249, %v1253
        %v1317 = vmul.f32 %v1252, %v1253
        %v1318 = vmul.f32 %v996, %v996
        %v1319 = vmul.f32 %v997, %v997
        %v1320 = vmul.f32 %v998, %v998
        %v1321 = vmul.f32 %v999, %v999
        %v1322 = vmul.f32 %v1000, %v1000
        %v1323 = vmul.f32 %v1001, %v1001
        %v1324 = vmul.f32 %v1002, %v1002
        %v1325 = vmul.f32 %v1003, %v1003
        %v1326 = vmul.f32 %v1004, %v1004
        %v1327 = vmul.f32 %v1005, %v1005
        %v1328 = vmul.f32 %v1006, %v1006
        %v1329 = vmul.f32 %v1007, %v1007
        %v1330 = vmul.f32 %v1008, %v1008
        %v1331 = vmul.f32 %v1009, %v1009
        %v1332 = vmul.f32 %v1010, %v1010
        %v1333 = vmul.f32 %v1011, %v1011
        %v1334 = vmul.f32 %v1012, %v1012
        %v1335 = vmul.f32 %v1013, %v1013
        %v1336 = vmul.f32 %v1014, %v1014
        %v1337 = vmul.f32 %v1015, %v1015
        %v1338 = vmul.f32 %v1016, %v1016
        %v1339 = vmul.f32 %v1017, %v1017
        %v1340 = vmul.f32 %v1018, %v1018
        %v1341 = vmul.f32 %v1019, %v1019
        %v1342 = vmul.f32 %v1020, %v1020
        %v1343 = vmul.f32 %v1021, %v1021
        %v1344 = vmul.f32 %v1022, %v1022
        %v1345 = vmul.f32 %v1023, %v1023
        %v1346 = vmul.f32 %v1024, %v1024
        %v1347 = vmul.f32 %v1025, %v1025
        %v1348 = vmul.f32 %v1026, %v1026
        %v1349 = vmul.f32 %v1027, %v1027
        %v1350 = vmul.f32 %v1028, %v1028
        %v1351 = vmul.f32 %v1029, %v1029
        %v1352 = vmul.f32 %v1030, %v1030
        %v1353 = vmul.f32 %v1031, %v1031
        %v1354 = vmul.f32 %v1032, %v1032
        %v1355 = vmul.f32 %v1033, %v1033
        %v1356 = vmul.f32 %v1034, %v1034
        %v1357 = vmul.f32 %v1035, %v1035
        %v1358 = vmul.f32 %v1036, %v1036
        %v1359 = vmul.f32 %v1037, %v1037
        %v1360 = vmul.f32 %v1038, %v1038
        %v1361 = vmul.f32 %v1039, %v1039
        %v1362 = vmul.f32 %v1040, %v1040
        %v1363 = vmul.f32 %v1041, %v1041
        %v1364 = vmul.f32 %v1042, %v1042
        %v1365 = vmul.f32 %v1043, %v1043
        %v1366 = vmul.f32 %v1044, %v1044
        %v1367 = vmul.f32 %v1045, %v1045
        %v1368 = vmul.f32 %v1046, %v1046
        %v1369 = vmul.f32 %v1047, %v1047
        %v1370 = vmul.f32 %v1048, %v1048
        %v1371 = vmul.f32 %v1049, %v1049
        %v1372 = vmul.f32 %v1050, %v1050
        %v1373 = vmul.f32 %v1051, %v1051
        %v1374 = vmul.f32 %v1052, %v1052
        %v1375 = vmul.f32 %v1053, %v1053
        %v1376 = vmul.f32 %v1054, %v1054
        %v1377 = vmul.f32 %v1055, %v1055
        %v1378 = vmul.f32 %v1056, %v1056
        %v1379 = vmul.f32 %v1057, %v1057
        %v1380 = vmul.f32 %v1058, %v1058
        %v1381 = vmul.f32 %v1059, %v1059
        %v1382 = vsel %vm1060, %v1318, 0.0
        %1383 = vadd.xlane.f32.xlu0 %v1382
        %v1384 = vpop.xlane.xlu0 %1383
        %v1385 = vsel %vm1060, %v1319, 0.0
        %1386 = vadd.xlane.f32.xlu0 %v1385
        %v1387 = vpop.xlane.xlu0 %1386
        %v1388 = vsel %vm1060, %v1320, 0.0
        %1389 = vadd.xlane.f32.xlu0 %v1388
        %v1390 = vpop.xlane.xlu0 %1389
        %v1391 = vsel %vm1060, %v1321, 0.0
        %1392 = vadd.xlane.f32.xlu0 %v1391
        %v1393 = vpop.xlane.xlu0 %1392
        %v1394 = vsel %vm1060, %v1322, 0.0
        %1395 = vadd.xlane.f32.xlu0 %v1394
        %v1396 = vpop.xlane.xlu0 %1395
        %v1397 = vsel %vm1060, %v1323, 0.0
        %1398 = vadd.xlane.f32.xlu0 %v1397
        %v1399 = vpop.xlane.xlu0 %1398
        %v1400 = vsel %vm1060, %v1324, 0.0
        %1401 = vadd.xlane.f32.xlu0 %v1400
        %v1402 = vpop.xlane.xlu0 %1401
        %v1403 = vsel %vm1060, %v1325, 0.0
        %1404 = vadd.xlane.f32.xlu0 %v1403
        %v1405 = vpop.xlane.xlu0 %1404
        %v1406 = vsel %vm1060, %v1326, 0.0
        %1407 = vadd.xlane.f32.xlu0 %v1406
        %v1408 = vpop.xlane.xlu0 %1407
        %v1409 = vsel %vm1060, %v1327, 0.0
        %1410 = vadd.xlane.f32.xlu0 %v1409
        %v1411 = vpop.xlane.xlu0 %1410
        %v1412 = vsel %vm1060, %v1328, 0.0
        %1413 = vadd.xlane.f32.xlu0 %v1412
        %v1414 = vpop.xlane.xlu0 %1413
        %v1415 = vsel %vm1060, %v1329, 0.0
        %1416 = vadd.xlane.f32.xlu0 %v1415
        %v1417 = vpop.xlane.xlu0 %1416
        %v1418 = vsel %vm1060, %v1330, 0.0
        %1419 = vadd.xlane.f32.xlu0 %v1418
        %v1420 = vpop.xlane.xlu0 %1419
        %v1421 = vsel %vm1060, %v1331, 0.0
        %1422 = vadd.xlane.f32.xlu0 %v1421
        %v1423 = vpop.xlane.xlu0 %1422
        %v1424 = vsel %vm1060, %v1332, 0.0
        %1425 = vadd.xlane.f32.xlu0 %v1424
        %v1426 = vpop.xlane.xlu0 %1425
        %v1427 = vsel %vm1060, %v1333, 0.0
        %1428 = vadd.xlane.f32.xlu0 %v1427
        %v1429 = vpop.xlane.xlu0 %1428
        %v1430 = vsel %vm1060, %v1334, 0.0
        %1431 = vadd.xlane.f32.xlu0 %v1430
        %v1432 = vpop.xlane.xlu0 %1431
        %v1433 = vsel %vm1060, %v1335, 0.0
        %1434 = vadd.xlane.f32.xlu0 %v1433
        %v1435 = vpop.xlane.xlu0 %1434
        %v1436 = vsel %vm1060, %v1336, 0.0
        %1437 = vadd.xlane.f32.xlu0 %v1436
        %v1438 = vpop.xlane.xlu0 %1437
        %v1439 = vsel %vm1060, %v1337, 0.0
        %1440 = vadd.xlane.f32.xlu0 %v1439
        %v1441 = vpop.xlane.xlu0 %1440
        %v1442 = vsel %vm1060, %v1338, 0.0
        %1443 = vadd.xlane.f32.xlu0 %v1442
        %v1444 = vpop.xlane.xlu0 %1443
        %v1445 = vsel %vm1060, %v1339, 0.0
        %1446 = vadd.xlane.f32.xlu0 %v1445
        %v1447 = vpop.xlane.xlu0 %1446
        %v1448 = vsel %vm1060, %v1340, 0.0
        %1449 = vadd.xlane.f32.xlu0 %v1448
        %v1450 = vpop.xlane.xlu0 %1449
        %v1451 = vsel %vm1060, %v1341, 0.0
        %1452 = vadd.xlane.f32.xlu0 %v1451
        %v1453 = vpop.xlane.xlu0 %1452
        %v1454 = vsel %vm1060, %v1342, 0.0
        %1455 = vadd.xlane.f32.xlu0 %v1454
        %v1456 = vpop.xlane.xlu0 %1455
        %v1457 = vsel %vm1060, %v1343, 0.0
        %1458 = vadd.xlane.f32.xlu0 %v1457
        %v1459 = vpop.xlane.xlu0 %1458
        %v1460 = vsel %vm1060, %v1344, 0.0
        %1461 = vadd.xlane.f32.xlu0 %v1460
        %v1462 = vpop.xlane.xlu0 %1461
        %v1463 = vsel %vm1060, %v1345, 0.0
        %1464 = vadd.xlane.f32.xlu0 %v1463
        %v1465 = vpop.xlane.xlu0 %1464
        %v1466 = vsel %vm1060, %v1346, 0.0
        %1467 = vadd.xlane.f32.xlu0 %v1466
        %v1468 = vpop.xlane.xlu0 %1467
        %v1469 = vsel %vm1060, %v1347, 0.0
        %1470 = vadd.xlane.f32.xlu0 %v1469
        %v1471 = vpop.xlane.xlu0 %1470
        %v1472 = vsel %vm1060, %v1348, 0.0
        %1473 = vadd.xlane.f32.xlu0 %v1472
        %v1474 = vpop.xlane.xlu0 %1473
        %v1475 = vsel %vm1060, %v1349, 0.0
        %1476 = vadd.xlane.f32.xlu0 %v1475
        %v1477 = vpop.xlane.xlu0 %1476
        %v1478 = vsel %vm1060, %v1350, 0.0
        %1479 = vadd.xlane.f32.xlu0 %v1478
        %v1480 = vpop.xlane.xlu0 %1479
        %v1481 = vsel %vm1060, %v1351, 0.0
        %1482 = vadd.xlane.f32.xlu0 %v1481
        %v1483 = vpop.xlane.xlu0 %1482
        %v1484 = vsel %vm1060, %v1352, 0.0
        %1485 = vadd.xlane.f32.xlu0 %v1484
        %v1486 = vpop.xlane.xlu0 %1485
        %v1487 = vsel %vm1060, %v1353, 0.0
        %1488 = vadd.xlane.f32.xlu0 %v1487
        %v1489 = vpop.xlane.xlu0 %1488
        %v1490 = vsel %vm1060, %v1354, 0.0
        %1491 = vadd.xlane.f32.xlu0 %v1490
        %v1492 = vpop.xlane.xlu0 %1491
        %v1493 = vsel %vm1060, %v1355, 0.0
        %1494 = vadd.xlane.f32.xlu0 %v1493
        %v1495 = vpop.xlane.xlu0 %1494
        %v1496 = vsel %vm1060, %v1356, 0.0
        %1497 = vadd.xlane.f32.xlu0 %v1496
        %v1498 = vpop.xlane.xlu0 %1497
        %v1499 = vsel %vm1060, %v1357, 0.0
        %1500 = vadd.xlane.f32.xlu0 %v1499
        %v1501 = vpop.xlane.xlu0 %1500
        %v1502 = vsel %vm1060, %v1358, 0.0
        %1503 = vadd.xlane.f32.xlu0 %v1502
        %v1504 = vpop.xlane.xlu0 %1503
        %v1505 = vsel %vm1060, %v1359, 0.0
        %1506 = vadd.xlane.f32.xlu0 %v1505
        %v1507 = vpop.xlane.xlu0 %1506
        %v1508 = vsel %vm1060, %v1360, 0.0
        %1509 = vadd.xlane.f32.xlu0 %v1508
        %v1510 = vpop.xlane.xlu0 %1509
        %v1511 = vsel %vm1060, %v1361, 0.0
        %1512 = vadd.xlane.f32.xlu0 %v1511
        %v1513 = vpop.xlane.xlu0 %1512
        %v1514 = vsel %vm1060, %v1362, 0.0
        %1515 = vadd.xlane.f32.xlu0 %v1514
        %v1516 = vpop.xlane.xlu0 %1515
        %v1517 = vsel %vm1060, %v1363, 0.0
        %1518 = vadd.xlane.f32.xlu0 %v1517
        %v1519 = vpop.xlane.xlu0 %1518
        %v1520 = vsel %vm1060, %v1364, 0.0
        %1521 = vadd.xlane.f32.xlu0 %v1520
        %v1522 = vpop.xlane.xlu0 %1521
        %v1523 = vsel %vm1060, %v1365, 0.0
        %1524 = vadd.xlane.f32.xlu0 %v1523
        %v1525 = vpop.xlane.xlu0 %1524
        %v1526 = vsel %vm1060, %v1366, 0.0
        %1527 = vadd.xlane.f32.xlu0 %v1526
        %v1528 = vpop.xlane.xlu0 %1527
        %v1529 = vsel %vm1060, %v1367, 0.0
        %1530 = vadd.xlane.f32.xlu0 %v1529
        %v1531 = vpop.xlane.xlu0 %1530
        %v1532 = vsel %vm1060, %v1368, 0.0
        %1533 = vadd.xlane.f32.xlu0 %v1532
        %v1534 = vpop.xlane.xlu0 %1533
        %v1535 = vsel %vm1060, %v1369, 0.0
        %1536 = vadd.xlane.f32.xlu0 %v1535
        %v1537 = vpop.xlane.xlu0 %1536
        %v1538 = vsel %vm1060, %v1370, 0.0
        %1539 = vadd.xlane.f32.xlu0 %v1538
        %v1540 = vpop.xlane.xlu0 %1539
        %v1541 = vsel %vm1060, %v1371, 0.0
        %1542 = vadd.xlane.f32.xlu0 %v1541
        %v1543 = vpop.xlane.xlu0 %1542
        %v1544 = vsel %vm1060, %v1372, 0.0
        %1545 = vadd.xlane.f32.xlu0 %v1544
        %v1546 = vpop.xlane.xlu0 %1545
        %v1547 = vsel %vm1060, %v1373, 0.0
        %1548 = vadd.xlane.f32.xlu0 %v1547
        %v1549 = vpop.xlane.xlu0 %1548
        %v1550 = vsel %vm1060, %v1374, 0.0
        %1551 = vadd.xlane.f32.xlu0 %v1550
        %v1552 = vpop.xlane.xlu0 %1551
        %v1553 = vsel %vm1060, %v1375, 0.0
        %1554 = vadd.xlane.f32.xlu0 %v1553
        %v1555 = vpop.xlane.xlu0 %1554
        %v1556 = vsel %vm1060, %v1376, 0.0
        %1557 = vadd.xlane.f32.xlu0 %v1556
        %v1558 = vpop.xlane.xlu0 %1557
        %v1559 = vsel %vm1060, %v1377, 0.0
        %1560 = vadd.xlane.f32.xlu0 %v1559
        %v1561 = vpop.xlane.xlu0 %1560
        %v1562 = vsel %vm1060, %v1378, 0.0
        %1563 = vadd.xlane.f32.xlu0 %v1562
        %v1564 = vpop.xlane.xlu0 %1563
        %v1565 = vsel %vm1060, %v1379, 0.0
        %1566 = vadd.xlane.f32.xlu0 %v1565
        %v1567 = vpop.xlane.xlu0 %1566
        %v1568 = vsel %vm1060, %v1380, 0.0
        %1569 = vadd.xlane.f32.xlu0 %v1568
        %v1570 = vpop.xlane.xlu0 %1569
        %v1571 = vsel %vm1060, %v1381, 0.0
        %1572 = vadd.xlane.f32.xlu0 %v1571
        %v1573 = vpop.xlane.xlu0 %1572
        %v1574 = vmul.f32 %v1384, %v1253
        %v1575 = vmul.f32 %v1387, %v1253
        %v1576 = vmul.f32 %v1390, %v1253
        %v1577 = vmul.f32 %v1393, %v1253
        %v1578 = vmul.f32 %v1396, %v1253
        %v1579 = vmul.f32 %v1399, %v1253
        %v1580 = vmul.f32 %v1402, %v1253
        %v1581 = vmul.f32 %v1405, %v1253
        %v1582 = vmul.f32 %v1408, %v1253
        %v1583 = vmul.f32 %v1411, %v1253
        %v1584 = vmul.f32 %v1414, %v1253
        %v1585 = vmul.f32 %v1417, %v1253
        %v1586 = vmul.f32 %v1420, %v1253
        %v1587 = vmul.f32 %v1423, %v1253
        %v1588 = vmul.f32 %v1426, %v1253
        %v1589 = vmul.f32 %v1429, %v1253
        %v1590 = vmul.f32 %v1432, %v1253
        %v1591 = vmul.f32 %v1435, %v1253
        %v1592 = vmul.f32 %v1438, %v1253
        %v1593 = vmul.f32 %v1441, %v1253
        %v1594 = vmul.f32 %v1444, %v1253
        %v1595 = vmul.f32 %v1447, %v1253
        %v1596 = vmul.f32 %v1450, %v1253
        %v1597 = vmul.f32 %v1453, %v1253
        %v1598 = vmul.f32 %v1456, %v1253
        %v1599 = vmul.f32 %v1459, %v1253
        %v1600 = vmul.f32 %v1462, %v1253
        %v1601 = vmul.f32 %v1465, %v1253
        %v1602 = vmul.f32 %v1468, %v1253
        %v1603 = vmul.f32 %v1471, %v1253
        %v1604 = vmul.f32 %v1474, %v1253
        %v1605 = vmul.f32 %v1477, %v1253
        %v1606 = vmul.f32 %v1480, %v1253
        %v1607 = vmul.f32 %v1483, %v1253
        %v1608 = vmul.f32 %v1486, %v1253
        %v1609 = vmul.f32 %v1489, %v1253
        %v1610 = vmul.f32 %v1492, %v1253
        %v1611 = vmul.f32 %v1495, %v1253
        %v1612 = vmul.f32 %v1498, %v1253
        %v1613 = vmul.f32 %v1501, %v1253
        %v1614 = vmul.f32 %v1504, %v1253
        %v1615 = vmul.f32 %v1507, %v1253
        %v1616 = vmul.f32 %v1510, %v1253
        %v1617 = vmul.f32 %v1513, %v1253
        %v1618 = vmul.f32 %v1516, %v1253
        %v1619 = vmul.f32 %v1519, %v1253
        %v1620 = vmul.f32 %v1522, %v1253
        %v1621 = vmul.f32 %v1525, %v1253
        %v1622 = vmul.f32 %v1528, %v1253
        %v1623 = vmul.f32 %v1531, %v1253
        %v1624 = vmul.f32 %v1534, %v1253
        %v1625 = vmul.f32 %v1537, %v1253
        %v1626 = vmul.f32 %v1540, %v1253
        %v1627 = vmul.f32 %v1543, %v1253
        %v1628 = vmul.f32 %v1546, %v1253
        %v1629 = vmul.f32 %v1549, %v1253
        %v1630 = vmul.f32 %v1552, %v1253
        %v1631 = vmul.f32 %v1555, %v1253
        %v1632 = vmul.f32 %v1558, %v1253
        %v1633 = vmul.f32 %v1561, %v1253
        %v1634 = vmul.f32 %v1564, %v1253
        %v1635 = vmul.f32 %v1567, %v1253
        %v1636 = vmul.f32 %v1570, %v1253
        %v1637 = vmul.f32 %v1573, %v1253
        %v1638 = vmul.f32 %v1254, %v1254
        %v1639 = vmul.f32 %v1255, %v1255
        %v1640 = vmul.f32 %v1256, %v1256
        %v1641 = vmul.f32 %v1257, %v1257
        %v1642 = vmul.f32 %v1258, %v1258
        %v1643 = vmul.f32 %v1259, %v1259
        %v1644 = vmul.f32 %v1260, %v1260
        %v1645 = vmul.f32 %v1261, %v1261
        %v1646 = vmul.f32 %v1262, %v1262
        %v1647 = vmul.f32 %v1263, %v1263
        %v1648 = vmul.f32 %v1264, %v1264
        %v1649 = vmul.f32 %v1265, %v1265
        %v1650 = vmul.f32 %v1266, %v1266
        %v1651 = vmul.f32 %v1267, %v1267
        %v1652 = vmul.f32 %v1268, %v1268
        %v1653 = vmul.f32 %v1269, %v1269
        %v1654 = vmul.f32 %v1270, %v1270
        %v1655 = vmul.f32 %v1271, %v1271
        %v1656 = vmul.f32 %v1272, %v1272
        %v1657 = vmul.f32 %v1273, %v1273
        %v1658 = vmul.f32 %v1274, %v1274
        %v1659 = vmul.f32 %v1275, %v1275
        %v1660 = vmul.f32 %v1276, %v1276
        %v1661 = vmul.f32 %v1277, %v1277
        %v1662 = vmul.f32 %v1278, %v1278
        %v1663 = vmul.f32 %v1279, %v1279
        %v1664 = vmul.f32 %v1280, %v1280
        %v1665 = vmul.f32 %v1281, %v1281
        %v1666 = vmul.f32 %v1282, %v1282
        %v1667 = vmul.f32 %v1283, %v1283
        %v1668 = vmul.f32 %v1284, %v1284
        %v1669 = vmul.f32 %v1285, %v1285
        %v1670 = vmul.f32 %v1286, %v1286
        %v1671 = vmul.f32 %v1287, %v1287
        %v1672 = vmul.f32 %v1288, %v1288
        %v1673 = vmul.f32 %v1289, %v1289
        %v1674 = vmul.f32 %v1290, %v1290
        %v1675 = vmul.f32 %v1291, %v1291
        %v1676 = vmul.f32 %v1292, %v1292
        %v1677 = vmul.f32 %v1293, %v1293
        %v1678 = vmul.f32 %v1294, %v1294
        %v1679 = vmul.f32 %v1295, %v1295
        %v1680 = vmul.f32 %v1296, %v1296
        %v1681 = vmul.f32 %v1297, %v1297
        %v1682 = vmul.f32 %v1298, %v1298
        %v1683 = vmul.f32 %v1299, %v1299
        %v1684 = vmul.f32 %v1300, %v1300
        %v1685 = vmul.f32 %v1301, %v1301
        %v1686 = vmul.f32 %v1302, %v1302
        %v1687 = vmul.f32 %v1303, %v1303
        %v1688 = vmul.f32 %v1304, %v1304
        %v1689 = vmul.f32 %v1305, %v1305
        %v1690 = vmul.f32 %v1306, %v1306
        %v1691 = vmul.f32 %v1307, %v1307
        %v1692 = vmul.f32 %v1308, %v1308
        %v1693 = vmul.f32 %v1309, %v1309
        %v1694 = vmul.f32 %v1310, %v1310
        %v1695 = vmul.f32 %v1311, %v1311
        %v1696 = vmul.f32 %v1312, %v1312
        %v1697 = vmul.f32 %v1313, %v1313
        %v1698 = vmul.f32 %v1314, %v1314
        %v1699 = vmul.f32 %v1315, %v1315
        %v1700 = vmul.f32 %v1316, %v1316
        %v1701 = vmul.f32 %v1317, %v1317
        %v1702 = vsub.f32 %v1574, %v1638
        %v1703 = vsub.f32 %v1575, %v1639
        %v1704 = vsub.f32 %v1576, %v1640
        %v1705 = vsub.f32 %v1577, %v1641
        %v1706 = vsub.f32 %v1578, %v1642
        %v1707 = vsub.f32 %v1579, %v1643
        %v1708 = vsub.f32 %v1580, %v1644
        %v1709 = vsub.f32 %v1581, %v1645
        %v1710 = vsub.f32 %v1582, %v1646
        %v1711 = vsub.f32 %v1583, %v1647
        %v1712 = vsub.f32 %v1584, %v1648
        %v1713 = vsub.f32 %v1585, %v1649
        %v1714 = vsub.f32 %v1586, %v1650
        %v1715 = vsub.f32 %v1587, %v1651
        %v1716 = vsub.f32 %v1588, %v1652
        %v1717 = vsub.f32 %v1589, %v1653
        %v1718 = vsub.f32 %v1590, %v1654
        %v1719 = vsub.f32 %v1591, %v1655
        %v1720 = vsub.f32 %v1592, %v1656
        %v1721 = vsub.f32 %v1593, %v1657
        %v1722 = vsub.f32 %v1594, %v1658
        %v1723 = vsub.f32 %v1595, %v1659
        %v1724 = vsub.f32 %v1596, %v1660
        %v1725 = vsub.f32 %v1597, %v1661
        %v1726 = vsub.f32 %v1598, %v1662
        %v1727 = vsub.f32 %v1599, %v1663
        %v1728 = vsub.f32 %v1600, %v1664
        %v1729 = vsub.f32 %v1601, %v1665
        %v1730 = vsub.f32 %v1602, %v1666
        %v1731 = vsub.f32 %v1603, %v1667
        %v1732 = vsub.f32 %v1604, %v1668
        %v1733 = vsub.f32 %v1605, %v1669
        %v1734 = vsub.f32 %v1606, %v1670
        %v1735 = vsub.f32 %v1607, %v1671
        %v1736 = vsub.f32 %v1608, %v1672
        %v1737 = vsub.f32 %v1609, %v1673
        %v1738 = vsub.f32 %v1610, %v1674
        %v1739 = vsub.f32 %v1611, %v1675
        %v1740 = vsub.f32 %v1612, %v1676
        %v1741 = vsub.f32 %v1613, %v1677
        %v1742 = vsub.f32 %v1614, %v1678
        %v1743 = vsub.f32 %v1615, %v1679
        %v1744 = vsub.f32 %v1616, %v1680
        %v1745 = vsub.f32 %v1617, %v1681
        %v1746 = vsub.f32 %v1618, %v1682
        %v1747 = vsub.f32 %v1619, %v1683
        %v1748 = vsub.f32 %v1620, %v1684
        %v1749 = vsub.f32 %v1621, %v1685
        %v1750 = vsub.f32 %v1622, %v1686
        %v1751 = vsub.f32 %v1623, %v1687
        %v1752 = vsub.f32 %v1624, %v1688
        %v1753 = vsub.f32 %v1625, %v1689
        %v1754 = vsub.f32 %v1626, %v1690
        %v1755 = vsub.f32 %v1627, %v1691
        %v1756 = vsub.f32 %v1628, %v1692
        %v1757 = vsub.f32 %v1629, %v1693
        %v1758 = vsub.f32 %v1630, %v1694
        %v1759 = vsub.f32 %v1631, %v1695
        %v1760 = vsub.f32 %v1632, %v1696
        %v1761 = vsub.f32 %v1633, %v1697
        %v1762 = vsub.f32 %v1634, %v1698
        %v1763 = vsub.f32 %v1635, %v1699
        %v1764 = vsub.f32 %v1636, %v1700
        %v1765 = vsub.f32 %v1637, %v1701
        %v1766 = vsub.f32 %v996, %v1254
        %v1767 = vsub.f32 %v997, %v1255
        %v1768 = vsub.f32 %v998, %v1256
        %v1769 = vsub.f32 %v999, %v1257
        %v1770 = vsub.f32 %v1000, %v1258
        %v1771 = vsub.f32 %v1001, %v1259
        %v1772 = vsub.f32 %v1002, %v1260
        %v1773 = vsub.f32 %v1003, %v1261
        %v1774 = vsub.f32 %v1004, %v1262
        %v1775 = vsub.f32 %v1005, %v1263
        %v1776 = vsub.f32 %v1006, %v1264
        %v1777 = vsub.f32 %v1007, %v1265
        %v1778 = vsub.f32 %v1008, %v1266
        %v1779 = vsub.f32 %v1009, %v1267
        %v1780 = vsub.f32 %v1010, %v1268
        %v1781 = vsub.f32 %v1011, %v1269
        %v1782 = vsub.f32 %v1012, %v1270
        %v1783 = vsub.f32 %v1013, %v1271
        %v1784 = vsub.f32 %v1014, %v1272
        %v1785 = vsub.f32 %v1015, %v1273
        %v1786 = vsub.f32 %v1016, %v1274
        %v1787 = vsub.f32 %v1017, %v1275
        %v1788 = vsub.f32 %v1018, %v1276
        %v1789 = vsub.f32 %v1019, %v1277
        %v1790 = vsub.f32 %v1020, %v1278
        %v1791 = vsub.f32 %v1021, %v1279
        %v1792 = vsub.f32 %v1022, %v1280
        %v1793 = vsub.f32 %v1023, %v1281
        %v1794 = vsub.f32 %v1024, %v1282
        %v1795 = vsub.f32 %v1025, %v1283
        %v1796 = vsub.f32 %v1026, %v1284
        %v1797 = vsub.f32 %v1027, %v1285
        %v1798 = vsub.f32 %v1028, %v1286
        %v1799 = vsub.f32 %v1029, %v1287
        %v1800 = vsub.f32 %v1030, %v1288
        %v1801 = vsub.f32 %v1031, %v1289
        %v1802 = vsub.f32 %v1032, %v1290
        %v1803 = vsub.f32 %v1033, %v1291
        %v1804 = vsub.f32 %v1034, %v1292
        %v1805 = vsub.f32 %v1035, %v1293
        %v1806 = vsub.f32 %v1036, %v1294
        %v1807 = vsub.f32 %v1037, %v1295
        %v1808 = vsub.f32 %v1038, %v1296
        %v1809 = vsub.f32 %v1039, %v1297
        %v1810 = vsub.f32 %v1040, %v1298
        %v1811 = vsub.f32 %v1041, %v1299
        %v1812 = vsub.f32 %v1042, %v1300
        %v1813 = vsub.f32 %v1043, %v1301
        %v1814 = vsub.f32 %v1044, %v1302
        %v1815 = vsub.f32 %v1045, %v1303
        %v1816 = vsub.f32 %v1046, %v1304
        %v1817 = vsub.f32 %v1047, %v1305
        %v1818 = vsub.f32 %v1048, %v1306
        %v1819 = vsub.f32 %v1049, %v1307
        %v1820 = vsub.f32 %v1050, %v1308
        %v1821 = vsub.f32 %v1051, %v1309
        %v1822 = vsub.f32 %v1052, %v1310
        %v1823 = vsub.f32 %v1053, %v1311
        %v1824 = vsub.f32 %v1054, %v1312
        %v1825 = vsub.f32 %v1055, %v1313
        %v1826 = vsub.f32 %v1056, %v1314
        %v1827 = vsub.f32 %v1057, %v1315
        %v1828 = vsub.f32 %v1058, %v1316
        %v1829 = vsub.f32 %v1059, %v1317
        %v1830 = vadd.f32 %v1702, 1e-05
        %v1831 = vadd.f32 %v1703, 1e-05
        %v1832 = vadd.f32 %v1704, 1e-05
        %v1833 = vadd.f32 %v1705, 1e-05
        %v1834 = vadd.f32 %v1706, 1e-05
        %v1835 = vadd.f32 %v1707, 1e-05
        %v1836 = vadd.f32 %v1708, 1e-05
        %v1837 = vadd.f32 %v1709, 1e-05
        %v1838 = vadd.f32 %v1710, 1e-05
        %v1839 = vadd.f32 %v1711, 1e-05
        %v1840 = vadd.f32 %v1712, 1e-05
        %v1841 = vadd.f32 %v1713, 1e-05
        %v1842 = vadd.f32 %v1714, 1e-05
        %v1843 = vadd.f32 %v1715, 1e-05
        %v1844 = vadd.f32 %v1716, 1e-05
        %v1845 = vadd.f32 %v1717, 1e-05
        %v1846 = vadd.f32 %v1718, 1e-05
        %v1847 = vadd.f32 %v1719, 1e-05
        %v1848 = vadd.f32 %v1720, 1e-05
        %v1849 = vadd.f32 %v1721, 1e-05
        %v1850 = vadd.f32 %v1722, 1e-05
        %v1851 = vadd.f32 %v1723, 1e-05
        %v1852 = vadd.f32 %v1724, 1e-05
        %v1853 = vadd.f32 %v1725, 1e-05
        %v1854 = vadd.f32 %v1726, 1e-05
        %v1855 = vadd.f32 %v1727, 1e-05
        %v1856 = vadd.f32 %v1728, 1e-05
        %v1857 = vadd.f32 %v1729, 1e-05
        %v1858 = vadd.f32 %v1730, 1e-05
        %v1859 = vadd.f32 %v1731, 1e-05
        %v1860 = vadd.f32 %v1732, 1e-05
        %v1861 = vadd.f32 %v1733, 1e-05
        %v1862 = vadd.f32 %v1734, 1e-05
        %v1863 = vadd.f32 %v1735, 1e-05
        %v1864 = vadd.f32 %v1736, 1e-05
        %v1865 = vadd.f32 %v1737, 1e-05
        %v1866 = vadd.f32 %v1738, 1e-05
        %v1867 = vadd.f32 %v1739, 1e-05
        %v1868 = vadd.f32 %v1740, 1e-05
        %v1869 = vadd.f32 %v1741, 1e-05
        %v1870 = vadd.f32 %v1742, 1e-05
        %v1871 = vadd.f32 %v1743, 1e-05
        %v1872 = vadd.f32 %v1744, 1e-05
        %v1873 = vadd.f32 %v1745, 1e-05
        %v1874 = vadd.f32 %v1746, 1e-05
        %v1875 = vadd.f32 %v1747, 1e-05
        %v1876 = vadd.f32 %v1748, 1e-05
        %v1877 = vadd.f32 %v1749, 1e-05
        %v1878 = vadd.f32 %v1750, 1e-05
        %v1879 = vadd.f32 %v1751, 1e-05
        %v1880 = vadd.f32 %v1752, 1e-05
        %v1881 = vadd.f32 %v1753, 1e-05
        %v1882 = vadd.f32 %v1754, 1e-05
        %v1883 = vadd.f32 %v1755, 1e-05
        %v1884 = vadd.f32 %v1756, 1e-05
        %v1885 = vadd.f32 %v1757, 1e-05
        %v1886 = vadd.f32 %v1758, 1e-05
        %v1887 = vadd.f32 %v1759, 1e-05
        %v1888 = vadd.f32 %v1760, 1e-05
        %v1889 = vadd.f32 %v1761, 1e-05
        %v1890 = vadd.f32 %v1762, 1e-05
        %v1891 = vadd.f32 %v1763, 1e-05
        %v1892 = vadd.f32 %v1764, 1e-05
        %v1893 = vadd.f32 %v1765, 1e-05
        %v1894 = vrsqrt.pop %v1830
        %v1895 = vrsqrt.pop %v1831
        %v1896 = vrsqrt.pop %v1832
        %v1897 = vrsqrt.pop %v1833
        %v1898 = vrsqrt.pop %v1834
        %v1899 = vrsqrt.pop %v1835
        %v1900 = vrsqrt.pop %v1836
        %v1901 = vrsqrt.pop %v1837
        %v1902 = vrsqrt.pop %v1838
        %v1903 = vrsqrt.pop %v1839
        %v1904 = vrsqrt.pop %v1840
        %v1905 = vrsqrt.pop %v1841
        %v1906 = vrsqrt.pop %v1842
        %v1907 = vrsqrt.pop %v1843
        %v1908 = vrsqrt.pop %v1844
        %v1909 = vrsqrt.pop %v1845
        %v1910 = vrsqrt.pop %v1846
        %v1911 = vrsqrt.pop %v1847
        %v1912 = vrsqrt.pop %v1848
        %v1913 = vrsqrt.pop %v1849
        %v1914 = vrsqrt.pop %v1850
        %v1915 = vrsqrt.pop %v1851
        %v1916 = vrsqrt.pop %v1852
        %v1917 = vrsqrt.pop %v1853
        %v1918 = vrsqrt.pop %v1854
        %v1919 = vrsqrt.pop %v1855
        %v1920 = vrsqrt.pop %v1856
        %v1921 = vrsqrt.pop %v1857
        %v1922 = vrsqrt.pop %v1858
        %v1923 = vrsqrt.pop %v1859
        %v1924 = vrsqrt.pop %v1860
        %v1925 = vrsqrt.pop %v1861
        %v1926 = vrsqrt.pop %v1862
        %v1927 = vrsqrt.pop %v1863
        %v1928 = vrsqrt.pop %v1864
        %v1929 = vrsqrt.pop %v1865
        %v1930 = vrsqrt.pop %v1866
        %v1931 = vrsqrt.pop %v1867
        %v1932 = vrsqrt.pop %v1868
        %v1933 = vrsqrt.pop %v1869
        %v1934 = vrsqrt.pop %v1870
        %v1935 = vrsqrt.pop %v1871
        %v1936 = vrsqrt.pop %v1872
        %v1937 = vrsqrt.pop %v1873
        %v1938 = vrsqrt.pop %v1874
        %v1939 = vrsqrt.pop %v1875
        %v1940 = vrsqrt.pop %v1876
        %v1941 = vrsqrt.pop %v1877
        %v1942 = vrsqrt.pop %v1878
        %v1943 = vrsqrt.pop %v1879
        %v1944 = vrsqrt.pop %v1880
        %v1945 = vrsqrt.pop %v1881
        %v1946 = vrsqrt.pop %v1882
        %v1947 = vrsqrt.pop %v1883
        %v1948 = vrsqrt.pop %v1884
        %v1949 = vrsqrt.pop %v1885
        %v1950 = vrsqrt.pop %v1886
        %v1951 = vrsqrt.pop %v1887
        %v1952 = vrsqrt.pop %v1888
        %v1953 = vrsqrt.pop %v1889
        %v1954 = vrsqrt.pop %v1890
        %v1955 = vrsqrt.pop %v1891
        %v1956 = vrsqrt.pop %v1892
        %v1957 = vrsqrt.pop %v1893
        %v1958 = vmul.f32 %v1766, %v1894
        %v1959 = vmul.f32 %v1767, %v1895
        %v1960 = vmul.f32 %v1768, %v1896
        %v1961 = vmul.f32 %v1769, %v1897
        %v1962 = vmul.f32 %v1770, %v1898
        %v1963 = vmul.f32 %v1771, %v1899
        %v1964 = vmul.f32 %v1772, %v1900
        %v1965 = vmul.f32 %v1773, %v1901
        %v1966 = vmul.f32 %v1774, %v1902
        %v1967 = vmul.f32 %v1775, %v1903
        %v1968 = vmul.f32 %v1776, %v1904
        %v1969 = vmul.f32 %v1777, %v1905
        %v1970 = vmul.f32 %v1778, %v1906
        %v1971 = vmul.f32 %v1779, %v1907
        %v1972 = vmul.f32 %v1780, %v1908
        %v1973 = vmul.f32 %v1781, %v1909
        %v1974 = vmul.f32 %v1782, %v1910
        %v1975 = vmul.f32 %v1783, %v1911
        %v1976 = vmul.f32 %v1784, %v1912
        %v1977 = vmul.f32 %v1785, %v1913
        %v1978 = vmul.f32 %v1786, %v1914
        %v1979 = vmul.f32 %v1787, %v1915
        %v1980 = vmul.f32 %v1788, %v1916
        %v1981 = vmul.f32 %v1789, %v1917
        %v1982 = vmul.f32 %v1790, %v1918
        %v1983 = vmul.f32 %v1791, %v1919
        %v1984 = vmul.f32 %v1792, %v1920
        %v1985 = vmul.f32 %v1793, %v1921
        %v1986 = vmul.f32 %v1794, %v1922
        %v1987 = vmul.f32 %v1795, %v1923
        %v1988 = vmul.f32 %v1796, %v1924
        %v1989 = vmul.f32 %v1797, %v1925
        %v1990 = vmul.f32 %v1798, %v1926
        %v1991 = vmul.f32 %v1799, %v1927
        %v1992 = vmul.f32 %v1800, %v1928
        %v1993 = vmul.f32 %v1801, %v1929
        %v1994 = vmul.f32 %v1802, %v1930
        %v1995 = vmul.f32 %v1803, %v1931
        %v1996 = vmul.f32 %v1804, %v1932
        %v1997 = vmul.f32 %v1805, %v1933
        %v1998 = vmul.f32 %v1806, %v1934
        %v1999 = vmul.f32 %v1807, %v1935
        %v2000 = vmul.f32 %v1808, %v1936
        %v2001 = vmul.f32 %v1809, %v1937
        %v2002 = vmul.f32 %v1810, %v1938
        %v2003 = vmul.f32 %v1811, %v1939
        %v2004 = vmul.f32 %v1812, %v1940
        %v2005 = vmul.f32 %v1813, %v1941
        %v2006 = vmul.f32 %v1814, %v1942
        %v2007 = vmul.f32 %v1815, %v1943
        %v2008 = vmul.f32 %v1816, %v1944
        %v2009 = vmul.f32 %v1817, %v1945
        %v2010 = vmul.f32 %v1818, %v1946
        %v2011 = vmul.f32 %v1819, %v1947
        %v2012 = vmul.f32 %v1820, %v1948
        %v2013 = vmul.f32 %v1821, %v1949
        %v2014 = vmul.f32 %v1822, %v1950
        %v2015 = vmul.f32 %v1823, %v1951
        %v2016 = vmul.f32 %v1824, %v1952
        %v2017 = vmul.f32 %v1825, %v1953
        %v2018 = vmul.f32 %v1826, %v1954
        %v2019 = vmul.f32 %v1827, %v1955
        %v2020 = vmul.f32 %v1828, %v1956
        %v2021 = vmul.f32 %v1829, %v1957
        %v2022 = vlaneseq
        %v2023 = vshrl.u32 %v2022, 7
        %v2024 = vsub.s32 1, %v2023
        %v2025 = vrot.slane %v363, %v2024
        %v2026 = vmul.f32 %v1958, %v2025
        %v2027 = vmul.f32 %v1959, %v2025
        %v2028 = vmul.f32 %v1960, %v2025
        %v2029 = vmul.f32 %v1961, %v2025
        %v2030 = vmul.f32 %v1962, %v2025
        %v2031 = vmul.f32 %v1963, %v2025
        %v2032 = vmul.f32 %v1964, %v2025
        %v2033 = vmul.f32 %v1965, %v2025
        %v2034 = vmul.f32 %v1966, %v2025
        %v2035 = vmul.f32 %v1967, %v2025
        %v2036 = vmul.f32 %v1968, %v2025
        %v2037 = vmul.f32 %v1969, %v2025
        %v2038 = vmul.f32 %v1970, %v2025
        %v2039 = vmul.f32 %v1971, %v2025
        %v2040 = vmul.f32 %v1972, %v2025
        %v2041 = vmul.f32 %v1973, %v2025
        %v2042 = vmul.f32 %v1974, %v2025
        %v2043 = vmul.f32 %v1975, %v2025
        %v2044 = vmul.f32 %v1976, %v2025
        %v2045 = vmul.f32 %v1977, %v2025
        %v2046 = vmul.f32 %v1978, %v2025
        %v2047 = vmul.f32 %v1979, %v2025
        %v2048 = vmul.f32 %v1980, %v2025
        %v2049 = vmul.f32 %v1981, %v2025
        %v2050 = vmul.f32 %v1982, %v2025
        %v2051 = vmul.f32 %v1983, %v2025
        %v2052 = vmul.f32 %v1984, %v2025
        %v2053 = vmul.f32 %v1985, %v2025
        %v2054 = vmul.f32 %v1986, %v2025
        %v2055 = vmul.f32 %v1987, %v2025
        %v2056 = vmul.f32 %v1988, %v2025
        %v2057 = vmul.f32 %v1989, %v2025
        %v2058 = vmul.f32 %v1990, %v2025
        %v2059 = vmul.f32 %v1991, %v2025
        %v2060 = vmul.f32 %v1992, %v2025
        %v2061 = vmul.f32 %v1993, %v2025
        %v2062 = vmul.f32 %v1994, %v2025
        %v2063 = vmul.f32 %v1995, %v2025
        %v2064 = vmul.f32 %v1996, %v2025
        %v2065 = vmul.f32 %v1997, %v2025
        %v2066 = vmul.f32 %v1998, %v2025
        %v2067 = vmul.f32 %v1999, %v2025
        %v2068 = vmul.f32 %v2000, %v2025
        %v2069 = vmul.f32 %v2001, %v2025
        %v2070 = vmul.f32 %v2002, %v2025
        %v2071 = vmul.f32 %v2003, %v2025
        %v2072 = vmul.f32 %v2004, %v2025
        %v2073 = vmul.f32 %v2005, %v2025
        %v2074 = vmul.f32 %v2006, %v2025
        %v2075 = vmul.f32 %v2007, %v2025
        %v2076 = vmul.f32 %v2008, %v2025
        %v2077 = vmul.f32 %v2009, %v2025
        %v2078 = vmul.f32 %v2010, %v2025
        %v2079 = vmul.f32 %v2011, %v2025
        %v2080 = vmul.f32 %v2012, %v2025
        %v2081 = vmul.f32 %v2013, %v2025
        %v2082 = vmul.f32 %v2014, %v2025
        %v2083 = vmul.f32 %v2015, %v2025
        %v2084 = vmul.f32 %v2016, %v2025
        %v2085 = vmul.f32 %v2017, %v2025
        %v2086 = vmul.f32 %v2018, %v2025
        %v2087 = vmul.f32 %v2019, %v2025
        %v2088 = vmul.f32 %v2020, %v2025
        %v2089 = vmul.f32 %v2021, %v2025
        %v2090 = vlaneseq
        %v2091 = vshrl.u32 %v2090, 7
        %v2092 = vsub.s32 2, %v2091
        %v2093 = vrot.slane %v363, %v2092
        %v2094 = vadd.f32 %v2026, %v2093
        %v2095 = vadd.f32 %v2027, %v2093
        %v2096 = vadd.f32 %v2028, %v2093
        %v2097 = vadd.f32 %v2029, %v2093
        %v2098 = vadd.f32 %v2030, %v2093
        %v2099 = vadd.f32 %v2031, %v2093
        %v2100 = vadd.f32 %v2032, %v2093
        %v2101 = vadd.f32 %v2033, %v2093
        %v2102 = vadd.f32 %v2034, %v2093
        %v2103 = vadd.f32 %v2035, %v2093
        %v2104 = vadd.f32 %v2036, %v2093
        %v2105 = vadd.f32 %v2037, %v2093
        %v2106 = vadd.f32 %v2038, %v2093
        %v2107 = vadd.f32 %v2039, %v2093
        %v2108 = vadd.f32 %v2040, %v2093
        %v2109 = vadd.f32 %v2041, %v2093
        %v2110 = vadd.f32 %v2042, %v2093
        %v2111 = vadd.f32 %v2043, %v2093
        %v2112 = vadd.f32 %v2044, %v2093
        %v2113 = vadd.f32 %v2045, %v2093
        %v2114 = vadd.f32 %v2046, %v2093
        %v2115 = vadd.f32 %v2047, %v2093
        %v2116 = vadd.f32 %v2048, %v2093
        %v2117 = vadd.f32 %v2049, %v2093
        %v2118 = vadd.f32 %v2050, %v2093
        %v2119 = vadd.f32 %v2051, %v2093
        %v2120 = vadd.f32 %v2052, %v2093
        %v2121 = vadd.f32 %v2053, %v2093
        %v2122 = vadd.f32 %v2054, %v2093
        %v2123 = vadd.f32 %v2055, %v2093
        %v2124 = vadd.f32 %v2056, %v2093
        %v2125 = vadd.f32 %v2057, %v2093
        %v2126 = vadd.f32 %v2058, %v2093
        %v2127 = vadd.f32 %v2059, %v2093
        %v2128 = vadd.f32 %v2060, %v2093
        %v2129 = vadd.f32 %v2061, %v2093
        %v2130 = vadd.f32 %v2062, %v2093
        %v2131 = vadd.f32 %v2063, %v2093
        %v2132 = vadd.f32 %v2064, %v2093
        %v2133 = vadd.f32 %v2065, %v2093
        %v2134 = vadd.f32 %v2066, %v2093
        %v2135 = vadd.f32 %v2067, %v2093
        %v2136 = vadd.f32 %v2068, %v2093
        %v2137 = vadd.f32 %v2069, %v2093
        %v2138 = vadd.f32 %v2070, %v2093
        %v2139 = vadd.f32 %v2071, %v2093
        %v2140 = vadd.f32 %v2072, %v2093
        %v2141 = vadd.f32 %v2073, %v2093
        %v2142 = vadd.f32 %v2074, %v2093
        %v2143 = vadd.f32 %v2075, %v2093
        %v2144 = vadd.f32 %v2076, %v2093
        %v2145 = vadd.f32 %v2077, %v2093
        %v2146 = vadd.f32 %v2078, %v2093
        %v2147 = vadd.f32 %v2079, %v2093
        %v2148 = vadd.f32 %v2080, %v2093
        %v2149 = vadd.f32 %v2081, %v2093
        %v2150 = vadd.f32 %v2082, %v2093
        %v2151 = vadd.f32 %v2083, %v2093
        %v2152 = vadd.f32 %v2084, %v2093
        %v2153 = vadd.f32 %v2085, %v2093
        %v2154 = vadd.f32 %v2086, %v2093
        %v2155 = vadd.f32 %v2087, %v2093
        %v2156 = vadd.f32 %v2088, %v2093
        %v2157 = vadd.f32 %v2089, %v2093
        %v2158 = vpack.c.bf16 %v2095, %v2094
        %v2159 = vpack.c.bf16 %v2097, %v2096
        %v2160 = vpack.c.bf16 %v2099, %v2098
        %v2161 = vpack.c.bf16 %v2101, %v2100
        %v2162 = vpack.c.bf16 %v2103, %v2102
        %v2163 = vpack.c.bf16 %v2105, %v2104
        %v2164 = vpack.c.bf16 %v2107, %v2106
        %v2165 = vpack.c.bf16 %v2109, %v2108
        %v2166 = vpack.c.bf16 %v2111, %v2110
        %v2167 = vpack.c.bf16 %v2113, %v2112
        %v2168 = vpack.c.bf16 %v2115, %v2114
        %v2169 = vpack.c.bf16 %v2117, %v2116
        %v2170 = vpack.c.bf16 %v2119, %v2118
        %v2171 = vpack.c.bf16 %v2121, %v2120
        %v2172 = vpack.c.bf16 %v2123, %v2122
        %v2173 = vpack.c.bf16 %v2125, %v2124
        %v2174 = vpack.c.bf16 %v2127, %v2126
        %v2175 = vpack.c.bf16 %v2129, %v2128
        %v2176 = vpack.c.bf16 %v2131, %v2130
        %v2177 = vpack.c.bf16 %v2133, %v2132
        %v2178 = vpack.c.bf16 %v2135, %v2134
        %v2179 = vpack.c.bf16 %v2137, %v2136
        %v2180 = vpack.c.bf16 %v2139, %v2138
        %v2181 = vpack.c.bf16 %v2141, %v2140
        %v2182 = vpack.c.bf16 %v2143, %v2142
        %v2183 = vpack.c.bf16 %v2145, %v2144
        %v2184 = vpack.c.bf16 %v2147, %v2146
        %v2185 = vpack.c.bf16 %v2149, %v2148
        %v2186 = vpack.c.bf16 %v2151, %v2150
        %v2187 = vpack.c.bf16 %v2153, %v2152
        %v2188 = vpack.c.bf16 %v2155, %v2154
        %v2189 = vpack.c.bf16 %v2157, %v2156
        %v2190 = vld [vmem:[%s3] sm:$0xf]
        %v2191 = vld [vmem:[%s3 + $0x4] sm:$0xf]
        %v2192 = vld [vmem:[%s3 + $0x8] sm:$0xf]
        %v2193 = vld [vmem:[%s3 + $0xc] sm:$0xf]
        %v2194 = vld [vmem:[%s3 + $0x10] sm:$0xf]
        %v2195 = vld [vmem:[%s3 + $0x14] sm:$0xf]
        %v2196 = vld [vmem:[%s3 + $0x18] sm:$0xf]
        %v2197 = vld [vmem:[%s3 + $0x1c] sm:$0xf]
        %v2198 = vlaneseq
        %v2199 = vshrl.u32 %v2198, 7
        %v2200 = vsub.s32 0, %v2199
        %v2201 = vrot.slane %v364, %v2200
        %v2210 = vunpack.c.l.b16 %v2190
        %v2211 = vunpack.c.l.b16 %v2191
        %v2212 = vunpack.c.l.b16 %v2192
        %v2213 = vunpack.c.l.b16 %v2193
        %v2214 = vunpack.c.l.b16 %v2194
        %v2215 = vunpack.c.l.b16 %v2195
        %v2216 = vunpack.c.l.b16 %v2196
        %v2217 = vunpack.c.l.b16 %v2197
        %v2218 = vpack.c.b16 %v2211, %v2210
        %v2219 = vpack.c.b16 %v2213, %v2212
        %v2220 = vpack.c.b16 %v2215, %v2214
        %v2221 = vpack.c.b16 %v2217, %v2216
        %v2227 = vsel %vm1060, %v2158, 0
        %v2230 = vsel %vm1060, %v2159, 0
        %v2233 = vsel %vm1060, %v2160, 0
        %v2236 = vsel %vm1060, %v2161, 0
        %v2239 = vsel %vm1060, %v2162, 0
        %v2242 = vsel %vm1060, %v2163, 0
        %v2245 = vsel %vm1060, %v2164, 0
        %v2248 = vsel %vm1060, %v2165, 0
        %v2251 = vsel %vm1060, %v2166, 0
        %v2254 = vsel %vm1060, %v2167, 0
        %v2257 = vsel %vm1060, %v2168, 0
        %v2260 = vsel %vm1060, %v2169, 0
        %v2263 = vsel %vm1060, %v2170, 0
        %v2266 = vsel %vm1060, %v2171, 0
        %v2269 = vsel %vm1060, %v2172, 0
        %v2272 = vsel %vm1060, %v2173, 0
        %v2275 = vsel %vm1060, %v2174, 0
        %v2278 = vsel %vm1060, %v2175, 0
        %v2281 = vsel %vm1060, %v2176, 0
        %v2284 = vsel %vm1060, %v2177, 0
        %v2287 = vsel %vm1060, %v2178, 0
        %v2290 = vsel %vm1060, %v2179, 0
        %v2293 = vsel %vm1060, %v2180, 0
        %v2296 = vsel %vm1060, %v2181, 0
        %v2299 = vsel %vm1060, %v2182, 0
        %v2302 = vsel %vm1060, %v2183, 0
        %v2305 = vsel %vm1060, %v2184, 0
        %v2308 = vsel %vm1060, %v2185, 0
        %v2311 = vsel %vm1060, %v2186, 0
        %v2314 = vsel %vm1060, %v2187, 0
        %v2317 = vsel %vm1060, %v2188, 0
        %v2320 = vsel %vm1060, %v2189, 0
        %2322 = vmatprep.subr.bf16.mxu0 0
        %2323 = vmatpush1.bf16.msra.mxu0 0
        %2324 = vmatprep.subr.bf16.mxu0 0
        %2325 = vmatpush1.bf16.msra.mxu0 0
        %2326 = vmatprep.subr.bf16.mxu0 0
        %2327 = vmatpush1.bf16.msra.mxu0 0
        %2328 = vmatprep.subr.bf16.mxu0 0
        %2329 = vmatpush1.bf16.msra.mxu0 0
        %2330 = vmatprep.subr.bf16.mxu0 0
        %2331 = vmatpush1.bf16.msra.mxu0 %v2221
        %2332 = vmatprep.subr.bf16.mxu0 0
        %2333 = vmatpush1.bf16.msra.mxu0 %v2220
        %2334 = vmatprep.subr.bf16.mxu0 0
        %2335 = vmatpush1.bf16.msra.mxu0 %v2219
        %2336 = vmatprep.subr.bf16.mxu0 0
        %2337 = vmatpush1.bf16.msra.mxu0 %v2218
        %2338 = vmatprep.subr.bf16.mxu0 0
        %2339 = vmatpush2.bf16.msra.mxu0 0
        %2340 = vmatprep.subr.bf16.mxu0 0
        %2341 = vmatpush2.bf16.msra.mxu0 0
        %2342 = vmatprep.subr.bf16.mxu0 0
        %2343 = vmatpush2.bf16.msra.mxu0 0
        %2344 = vmatprep.subr.bf16.mxu0 0
        %2345 = vmatpush2.bf16.msra.mxu0 0
        %2346 = vmatprep.subr.bf16.mxu0 0
        %2347 = vmatpush2.bf16.msra.mxu0 0
        %2348 = vmatprep.subr.bf16.mxu0 0
        %2349 = vmatpush2.bf16.msra.mxu0 0
        %2350 = vmatprep.subr.bf16.mxu0 0
        %2351 = vmatpush2.bf16.msra.mxu0 0
        %2352 = vmatprep.subr.bf16.mxu0 0
        %2353 = vmatpush2.bf16.msra.mxu0 0
        %2354 = vmatprep.mubr.bf16.mxu0 0
        %2355 = vmatmul.mubr.bf16.gmra.mxu0 %v2227
        %v2356 = vpop.f32.mrf.mxu0
        %v2357 = vadd.f32 %v2201, %v2356
        %v2358 = vpop.f32.mrf.mxu0
        %v2359 = vpop.f32.mrf.mxu0
        %v2360 = vadd.f32 %v2201, %v2359
        %v2361 = vpop.f32.mrf.mxu0
        %2362 = vmatprep.mubr.bf16.mxu0 0
        %2363 = vmatmul.mubr.bf16.gmra.mxu0 %v2230
        %v2364 = vpop.f32.mrf.mxu0
        %v2365 = vadd.f32 %v2201, %v2364
        %v2366 = vpop.f32.mrf.mxu0
        %v2367 = vpop.f32.mrf.mxu0
        %v2368 = vadd.f32 %v2201, %v2367
        %v2369 = vpop.f32.mrf.mxu0
        %2370 = vmatprep.mubr.bf16.mxu0 0
        %2371 = vmatmul.mubr.bf16.gmra.mxu0 %v2233
        %v2372 = vpop.f32.mrf.mxu0
        %v2373 = vadd.f32 %v2201, %v2372
        %v2374 = vpop.f32.mrf.mxu0
        %v2375 = vpop.f32.mrf.mxu0
        %v2376 = vadd.f32 %v2201, %v2375
        %v2377 = vpop.f32.mrf.mxu0
        %2378 = vmatprep.mubr.bf16.mxu0 0
        %2379 = vmatmul.mubr.bf16.gmra.mxu0 %v2236
        %v2380 = vpop.f32.mrf.mxu0
        %v2381 = vadd.f32 %v2201, %v2380
        %v2382 = vpop.f32.mrf.mxu0
        %v2383 = vpop.f32.mrf.mxu0
        %v2384 = vadd.f32 %v2201, %v2383
        %v2385 = vpop.f32.mrf.mxu0
        %2386 = vmatprep.mubr.bf16.mxu0 0
        %2387 = vmatmul.mubr.bf16.gmra.mxu0 %v2239
        %v2388 = vpop.f32.mrf.mxu0
        %v2389 = vadd.f32 %v2201, %v2388
        %v2390 = vpop.f32.mrf.mxu0
        %v2391 = vpop.f32.mrf.mxu0
        %v2392 = vadd.f32 %v2201, %v2391
        %v2393 = vpop.f32.mrf.mxu0
        %2394 = vmatprep.mubr.bf16.mxu0 0
        %2395 = vmatmul.mubr.bf16.gmra.mxu0 %v2242
        %v2396 = vpop.f32.mrf.mxu0
        %v2397 = vadd.f32 %v2201, %v2396
        %v2398 = vpop.f32.mrf.mxu0
        %v2399 = vpop.f32.mrf.mxu0
        %v2400 = vadd.f32 %v2201, %v2399
        %v2401 = vpop.f32.mrf.mxu0
        %2402 = vmatprep.mubr.bf16.mxu0 0
        %2403 = vmatmul.mubr.bf16.gmra.mxu0 %v2245
        %v2404 = vpop.f32.mrf.mxu0
        %v2405 = vadd.f32 %v2201, %v2404
        %v2406 = vpop.f32.mrf.mxu0
        %v2407 = vpop.f32.mrf.mxu0
        %v2408 = vadd.f32 %v2201, %v2407
        %v2409 = vpop.f32.mrf.mxu0
        %2410 = vmatprep.mubr.bf16.mxu0 0
        %2411 = vmatmul.mubr.bf16.gmra.mxu0 %v2248
        %v2412 = vpop.f32.mrf.mxu0
        %v2413 = vadd.f32 %v2201, %v2412
        %v2414 = vpop.f32.mrf.mxu0
        %v2415 = vpop.f32.mrf.mxu0
        %v2416 = vadd.f32 %v2201, %v2415
        %v2417 = vpop.f32.mrf.mxu0
        %2418 = vmatprep.mubr.bf16.mxu0 0
        %2419 = vmatmul.mubr.bf16.gmra.mxu0 %v2251
        %v2420 = vpop.f32.mrf.mxu0
        %v2421 = vadd.f32 %v2201, %v2420
        %v2422 = vpop.f32.mrf.mxu0
        %v2423 = vpop.f32.mrf.mxu0
        %v2424 = vadd.f32 %v2201, %v2423
        %v2425 = vpop.f32.mrf.mxu0
        %2426 = vmatprep.mubr.bf16.mxu0 0
        %2427 = vmatmul.mubr.bf16.gmra.mxu0 %v2254
        %v2428 = vpop.f32.mrf.mxu0
        %v2429 = vadd.f32 %v2201, %v2428
        %v2430 = vpop.f32.mrf.mxu0
        %v2431 = vpop.f32.mrf.mxu0
        %v2432 = vadd.f32 %v2201, %v2431
        %v2433 = vpop.f32.mrf.mxu0
        %2434 = vmatprep.mubr.bf16.mxu0 0
        %2435 = vmatmul.mubr.bf16.gmra.mxu0 %v2257
        %v2436 = vpop.f32.mrf.mxu0
        %v2437 = vadd.f32 %v2201, %v2436
        %v2438 = vpop.f32.mrf.mxu0
        %v2439 = vpop.f32.mrf.mxu0
        %v2440 = vadd.f32 %v2201, %v2439
        %v2441 = vpop.f32.mrf.mxu0
        %2442 = vmatprep.mubr.bf16.mxu0 0
        %2443 = vmatmul.mubr.bf16.gmra.mxu0 %v2260
        %v2444 = vpop.f32.mrf.mxu0
        %v2445 = vadd.f32 %v2201, %v2444
        %v2446 = vpop.f32.mrf.mxu0
        %v2447 = vpop.f32.mrf.mxu0
        %v2448 = vadd.f32 %v2201, %v2447
        %v2449 = vpop.f32.mrf.mxu0
        %2450 = vmatprep.mubr.bf16.mxu0 0
        %2451 = vmatmul.mubr.bf16.gmra.mxu0 %v2263
        %v2452 = vpop.f32.mrf.mxu0
        %v2453 = vadd.f32 %v2201, %v2452
        %v2454 = vpop.f32.mrf.mxu0
        %v2455 = vpop.f32.mrf.mxu0
        %v2456 = vadd.f32 %v2201, %v2455
        %v2457 = vpop.f32.mrf.mxu0
        %2458 = vmatprep.mubr.bf16.mxu0 0
        %2459 = vmatmul.mubr.bf16.gmra.mxu0 %v2266
        %v2460 = vpop.f32.mrf.mxu0
        %v2461 = vadd.f32 %v2201, %v2460
        %v2462 = vpop.f32.mrf.mxu0
        %v2463 = vpop.f32.mrf.mxu0
        %v2464 = vadd.f32 %v2201, %v2463
        %v2465 = vpop.f32.mrf.mxu0
        %2466 = vmatprep.mubr.bf16.mxu0 0
        %2467 = vmatmul.mubr.bf16.gmra.mxu0 %v2269
        %v2468 = vpop.f32.mrf.mxu0
        %v2469 = vadd.f32 %v2201, %v2468
        %v2470 = vpop.f32.mrf.mxu0
        %v2471 = vpop.f32.mrf.mxu0
        %v2472 = vadd.f32 %v2201, %v2471
        %v2473 = vpop.f32.mrf.mxu0
        %2474 = vmatprep.mubr.bf16.mxu0 0
        %2475 = vmatmul.mubr.bf16.gmra.mxu0 %v2272
        %v2476 = vpop.f32.mrf.mxu0
        %v2477 = vadd.f32 %v2201, %v2476
        %v2478 = vpop.f32.mrf.mxu0
        %v2479 = vpop.f32.mrf.mxu0
        %v2480 = vadd.f32 %v2201, %v2479
        %v2481 = vpop.f32.mrf.mxu0
        %2482 = vmatprep.mubr.bf16.mxu0 0
        %2483 = vmatmul.mubr.bf16.gmra.mxu0 %v2275
        %v2484 = vpop.f32.mrf.mxu0
        %v2485 = vadd.f32 %v2201, %v2484
        %v2486 = vpop.f32.mrf.mxu0
        %v2487 = vpop.f32.mrf.mxu0
        %v2488 = vadd.f32 %v2201, %v2487
        %v2489 = vpop.f32.mrf.mxu0
        %2490 = vmatprep.mubr.bf16.mxu0 0
        %2491 = vmatmul.mubr.bf16.gmra.mxu0 %v2278
        %v2492 = vpop.f32.mrf.mxu0
        %v2493 = vadd.f32 %v2201, %v2492
        %v2494 = vpop.f32.mrf.mxu0
        %v2495 = vpop.f32.mrf.mxu0
        %v2496 = vadd.f32 %v2201, %v2495
        %v2497 = vpop.f32.mrf.mxu0
        %2498 = vmatprep.mubr.bf16.mxu0 0
        %2499 = vmatmul.mubr.bf16.gmra.mxu0 %v2281
        %v2500 = vpop.f32.mrf.mxu0
        %v2501 = vadd.f32 %v2201, %v2500
        %v2502 = vpop.f32.mrf.mxu0
        %v2503 = vpop.f32.mrf.mxu0
        %v2504 = vadd.f32 %v2201, %v2503
        %v2505 = vpop.f32.mrf.mxu0
        %2506 = vmatprep.mubr.bf16.mxu0 0
        %2507 = vmatmul.mubr.bf16.gmra.mxu0 %v2284
        %v2508 = vpop.f32.mrf.mxu0
        %v2509 = vadd.f32 %v2201, %v2508
        %v2510 = vpop.f32.mrf.mxu0
        %v2511 = vpop.f32.mrf.mxu0
        %v2512 = vadd.f32 %v2201, %v2511
        %v2513 = vpop.f32.mrf.mxu0
        %2514 = vmatprep.mubr.bf16.mxu0 0
        %2515 = vmatmul.mubr.bf16.gmra.mxu0 %v2287
        %v2516 = vpop.f32.mrf.mxu0
        %v2517 = vadd.f32 %v2201, %v2516
        %v2518 = vpop.f32.mrf.mxu0
        %v2519 = vpop.f32.mrf.mxu0
        %v2520 = vadd.f32 %v2201, %v2519
        %v2521 = vpop.f32.mrf.mxu0
        %2522 = vmatprep.mubr.bf16.mxu0 0
        %2523 = vmatmul.mubr.bf16.gmra.mxu0 %v2290
        %v2524 = vpop.f32.mrf.mxu0
        %v2525 = vadd.f32 %v2201, %v2524
        %v2526 = vpop.f32.mrf.mxu0
        %v2527 = vpop.f32.mrf.mxu0
        %v2528 = vadd.f32 %v2201, %v2527
        %v2529 = vpop.f32.mrf.mxu0
        %2530 = vmatprep.mubr.bf16.mxu0 0
        %2531 = vmatmul.mubr.bf16.gmra.mxu0 %v2293
        %v2532 = vpop.f32.mrf.mxu0
        %v2533 = vadd.f32 %v2201, %v2532
        %v2534 = vpop.f32.mrf.mxu0
        %v2535 = vpop.f32.mrf.mxu0
        %v2536 = vadd.f32 %v2201, %v2535
        %v2537 = vpop.f32.mrf.mxu0
        %2538 = vmatprep.mubr.bf16.mxu0 0
        %2539 = vmatmul.mubr.bf16.gmra.mxu0 %v2296
        %v2540 = vpop.f32.mrf.mxu0
        %v2541 = vadd.f32 %v2201, %v2540
        %v2542 = vpop.f32.mrf.mxu0
        %v2543 = vpop.f32.mrf.mxu0
        %v2544 = vadd.f32 %v2201, %v2543
        %v2545 = vpop.f32.mrf.mxu0
        %2546 = vmatprep.mubr.bf16.mxu0 0
        %2547 = vmatmul.mubr.bf16.gmra.mxu0 %v2299
        %v2548 = vpop.f32.mrf.mxu0
        %v2549 = vadd.f32 %v2201, %v2548
        %v2550 = vpop.f32.mrf.mxu0
        %v2551 = vpop.f32.mrf.mxu0
        %v2552 = vadd.f32 %v2201, %v2551
        %v2553 = vpop.f32.mrf.mxu0
        %2554 = vmatprep.mubr.bf16.mxu0 0
        %2555 = vmatmul.mubr.bf16.gmra.mxu0 %v2302
        %v2556 = vpop.f32.mrf.mxu0
        %v2557 = vadd.f32 %v2201, %v2556
        %v2558 = vpop.f32.mrf.mxu0
        %v2559 = vpop.f32.mrf.mxu0
        %v2560 = vadd.f32 %v2201, %v2559
        %v2561 = vpop.f32.mrf.mxu0
        %2562 = vmatprep.mubr.bf16.mxu0 0
        %2563 = vmatmul.mubr.bf16.gmra.mxu0 %v2305
        %v2564 = vpop.f32.mrf.mxu0
        %v2565 = vadd.f32 %v2201, %v2564
        %v2566 = vpop.f32.mrf.mxu0
        %v2567 = vpop.f32.mrf.mxu0
        %v2568 = vadd.f32 %v2201, %v2567
        %v2569 = vpop.f32.mrf.mxu0
        %2570 = vmatprep.mubr.bf16.mxu0 0
        %2571 = vmatmul.mubr.bf16.gmra.mxu0 %v2308
        %v2572 = vpop.f32.mrf.mxu0
        %v2573 = vadd.f32 %v2201, %v2572
        %v2574 = vpop.f32.mrf.mxu0
        %v2575 = vpop.f32.mrf.mxu0
        %v2576 = vadd.f32 %v2201, %v2575
        %v2577 = vpop.f32.mrf.mxu0
        %2578 = vmatprep.mubr.bf16.mxu0 0
        %2579 = vmatmul.mubr.bf16.gmra.mxu0 %v2311
        %v2580 = vpop.f32.mrf.mxu0
        %v2581 = vadd.f32 %v2201, %v2580
        %v2582 = vpop.f32.mrf.mxu0
        %v2583 = vpop.f32.mrf.mxu0
        %v2584 = vadd.f32 %v2201, %v2583
        %v2585 = vpop.f32.mrf.mxu0
        %2586 = vmatprep.mubr.bf16.mxu0 0
        %2587 = vmatmul.mubr.bf16.gmra.mxu0 %v2314
        %v2588 = vpop.f32.mrf.mxu0
        %v2589 = vadd.f32 %v2201, %v2588
        %v2590 = vpop.f32.mrf.mxu0
        %v2591 = vpop.f32.mrf.mxu0
        %v2592 = vadd.f32 %v2201, %v2591
        %v2593 = vpop.f32.mrf.mxu0
        %2594 = vmatprep.mubr.bf16.mxu0 0
        %2595 = vmatmul.mubr.bf16.gmra.mxu0 %v2317
        %v2596 = vpop.f32.mrf.mxu0
        %v2597 = vadd.f32 %v2201, %v2596
        %v2598 = vpop.f32.mrf.mxu0
        %v2599 = vpop.f32.mrf.mxu0
        %v2600 = vadd.f32 %v2201, %v2599
        %v2601 = vpop.f32.mrf.mxu0
        %2602 = vmatprep.mubr.bf16.mxu0 0
        %2603 = vmatmul.mubr.bf16.gmra.mxu0 %v2320
        %v2604 = vpop.f32.mrf.mxu0
        %v2605 = vadd.f32 %v2201, %v2604
        %v2606 = vpop.f32.mrf.mxu0
        %v2607 = vpop.f32.mrf.mxu0
        %v2608 = vadd.f32 %v2201, %v2607
        %v2609 = vpop.f32.mrf.mxu0
        %2610 = vdwg.mxu0
        %v2611 = vmax.f32 %v2357, 0.0
        %v2612 = vmax.f32 %v2360, 0.0
        %v2613 = vmax.f32 %v2365, 0.0
        %v2614 = vmax.f32 %v2368, 0.0
        %v2615 = vmax.f32 %v2373, 0.0
        %v2616 = vmax.f32 %v2376, 0.0
        %v2617 = vmax.f32 %v2381, 0.0
        %v2618 = vmax.f32 %v2384, 0.0
        %v2619 = vmax.f32 %v2389, 0.0
        %v2620 = vmax.f32 %v2392, 0.0
        %v2621 = vmax.f32 %v2397, 0.0
        %v2622 = vmax.f32 %v2400, 0.0
        %v2623 = vmax.f32 %v2405, 0.0
        %v2624 = vmax.f32 %v2408, 0.0
        %v2625 = vmax.f32 %v2413, 0.0
        %v2626 = vmax.f32 %v2416, 0.0
        %v2627 = vmax.f32 %v2421, 0.0
        %v2628 = vmax.f32 %v2424, 0.0
        %v2629 = vmax.f32 %v2429, 0.0
        %v2630 = vmax.f32 %v2432, 0.0
        %v2631 = vmax.f32 %v2437, 0.0
        %v2632 = vmax.f32 %v2440, 0.0
        %v2633 = vmax.f32 %v2445, 0.0
        %v2634 = vmax.f32 %v2448, 0.0
        %v2635 = vmax.f32 %v2453, 0.0
        %v2636 = vmax.f32 %v2456, 0.0
        %v2637 = vmax.f32 %v2461, 0.0
        %v2638 = vmax.f32 %v2464, 0.0
        %v2639 = vmax.f32 %v2469, 0.0
        %v2640 = vmax.f32 %v2472, 0.0
        %v2641 = vmax.f32 %v2477, 0.0
        %v2642 = vmax.f32 %v2480, 0.0
        %v2643 = vmax.f32 %v2485, 0.0
        %v2644 = vmax.f32 %v2488, 0.0
        %v2645 = vmax.f32 %v2493, 0.0
        %v2646 = vmax.f32 %v2496, 0.0
        %v2647 = vmax.f32 %v2501, 0.0
        %v2648 = vmax.f32 %v2504, 0.0
        %v2649 = vmax.f32 %v2509, 0.0
        %v2650 = vmax.f32 %v2512, 0.0
        %v2651 = vmax.f32 %v2517, 0.0
        %v2652 = vmax.f32 %v2520, 0.0
        %v2653 = vmax.f32 %v2525, 0.0
        %v2654 = vmax.f32 %v2528, 0.0
        %v2655 = vmax.f32 %v2533, 0.0
        %v2656 = vmax.f32 %v2536, 0.0
        %v2657 = vmax.f32 %v2541, 0.0
        %v2658 = vmax.f32 %v2544, 0.0
        %v2659 = vmax.f32 %v2549, 0.0
        %v2660 = vmax.f32 %v2552, 0.0
        %v2661 = vmax.f32 %v2557, 0.0
        %v2662 = vmax.f32 %v2560, 0.0
        %v2663 = vmax.f32 %v2565, 0.0
        %v2664 = vmax.f32 %v2568, 0.0
        %v2665 = vmax.f32 %v2573, 0.0
        %v2666 = vmax.f32 %v2576, 0.0
        %v2667 = vmax.f32 %v2581, 0.0
        %v2668 = vmax.f32 %v2584, 0.0
        %v2669 = vmax.f32 %v2589, 0.0
        %v2670 = vmax.f32 %v2592, 0.0
        %v2671 = vmax.f32 %v2597, 0.0
        %v2672 = vmax.f32 %v2600, 0.0
        %v2673 = vmax.f32 %v2605, 0.0
        %v2674 = vmax.f32 %v2608, 0.0
        %v2675 = vsel %vm610, %v2611, 0.0
        %2676 = vadd.xlane.f32.xlu0 %v2675
        %v2677 = vpop.xlane.xlu0 %2676
        %v2678 = vsel %vm610, %v2612, 0.0
        %2679 = vadd.xlane.f32.xlu0 %v2678
        %v2680 = vpop.xlane.xlu0 %2679
        %v2681 = vsel %vm610, %v2613, 0.0
        %2682 = vadd.xlane.f32.xlu0 %v2681
        %v2683 = vpop.xlane.xlu0 %2682
        %v2684 = vsel %vm610, %v2614, 0.0
        %2685 = vadd.xlane.f32.xlu0 %v2684
        %v2686 = vpop.xlane.xlu0 %2685
        %v2687 = vsel %vm610, %v2615, 0.0
        %2688 = vadd.xlane.f32.xlu0 %v2687
        %v2689 = vpop.xlane.xlu0 %2688
        %v2690 = vsel %vm610, %v2616, 0.0
        %2691 = vadd.xlane.f32.xlu0 %v2690
        %v2692 = vpop.xlane.xlu0 %2691
        %v2693 = vsel %vm610, %v2617, 0.0
        %2694 = vadd.xlane.f32.xlu0 %v2693
        %v2695 = vpop.xlane.xlu0 %2694
        %v2696 = vsel %vm610, %v2618, 0.0
        %2697 = vadd.xlane.f32.xlu0 %v2696
        %v2698 = vpop.xlane.xlu0 %2697
        %v2699 = vsel %vm610, %v2619, 0.0
        %2700 = vadd.xlane.f32.xlu0 %v2699
        %v2701 = vpop.xlane.xlu0 %2700
        %v2702 = vsel %vm610, %v2620, 0.0
        %2703 = vadd.xlane.f32.xlu0 %v2702
        %v2704 = vpop.xlane.xlu0 %2703
        %v2705 = vsel %vm610, %v2621, 0.0
        %2706 = vadd.xlane.f32.xlu0 %v2705
        %v2707 = vpop.xlane.xlu0 %2706
        %v2708 = vsel %vm610, %v2622, 0.0
        %2709 = vadd.xlane.f32.xlu0 %v2708
        %v2710 = vpop.xlane.xlu0 %2709
        %v2711 = vsel %vm610, %v2623, 0.0
        %2712 = vadd.xlane.f32.xlu0 %v2711
        %v2713 = vpop.xlane.xlu0 %2712
        %v2714 = vsel %vm610, %v2624, 0.0
        %2715 = vadd.xlane.f32.xlu0 %v2714
        %v2716 = vpop.xlane.xlu0 %2715
        %v2717 = vsel %vm610, %v2625, 0.0
        %2718 = vadd.xlane.f32.xlu0 %v2717
        %v2719 = vpop.xlane.xlu0 %2718
        %v2720 = vsel %vm610, %v2626, 0.0
        %2721 = vadd.xlane.f32.xlu0 %v2720
        %v2722 = vpop.xlane.xlu0 %2721
        %v2723 = vsel %vm610, %v2627, 0.0
        %2724 = vadd.xlane.f32.xlu0 %v2723
        %v2725 = vpop.xlane.xlu0 %2724
        %v2726 = vsel %vm610, %v2628, 0.0
        %2727 = vadd.xlane.f32.xlu0 %v2726
        %v2728 = vpop.xlane.xlu0 %2727
        %v2729 = vsel %vm610, %v2629, 0.0
        %2730 = vadd.xlane.f32.xlu0 %v2729
        %v2731 = vpop.xlane.xlu0 %2730
        %v2732 = vsel %vm610, %v2630, 0.0
        %2733 = vadd.xlane.f32.xlu0 %v2732
        %v2734 = vpop.xlane.xlu0 %2733
        %v2735 = vsel %vm610, %v2631, 0.0
        %2736 = vadd.xlane.f32.xlu0 %v2735
        %v2737 = vpop.xlane.xlu0 %2736
        %v2738 = vsel %vm610, %v2632, 0.0
        %2739 = vadd.xlane.f32.xlu0 %v2738
        %v2740 = vpop.xlane.xlu0 %2739
        %v2741 = vsel %vm610, %v2633, 0.0
        %2742 = vadd.xlane.f32.xlu0 %v2741
        %v2743 = vpop.xlane.xlu0 %2742
        %v2744 = vsel %vm610, %v2634, 0.0
        %2745 = vadd.xlane.f32.xlu0 %v2744
        %v2746 = vpop.xlane.xlu0 %2745
        %v2747 = vsel %vm610, %v2635, 0.0
        %2748 = vadd.xlane.f32.xlu0 %v2747
        %v2749 = vpop.xlane.xlu0 %2748
        %v2750 = vsel %vm610, %v2636, 0.0
        %2751 = vadd.xlane.f32.xlu0 %v2750
        %v2752 = vpop.xlane.xlu0 %2751
        %v2753 = vsel %vm610, %v2637, 0.0
        %2754 = vadd.xlane.f32.xlu0 %v2753
        %v2755 = vpop.xlane.xlu0 %2754
        %v2756 = vsel %vm610, %v2638, 0.0
        %2757 = vadd.xlane.f32.xlu0 %v2756
        %v2758 = vpop.xlane.xlu0 %2757
        %v2759 = vsel %vm610, %v2639, 0.0
        %2760 = vadd.xlane.f32.xlu0 %v2759
        %v2761 = vpop.xlane.xlu0 %2760
        %v2762 = vsel %vm610, %v2640, 0.0
        %2763 = vadd.xlane.f32.xlu0 %v2762
        %v2764 = vpop.xlane.xlu0 %2763
        %v2765 = vsel %vm610, %v2641, 0.0
        %2766 = vadd.xlane.f32.xlu0 %v2765
        %v2767 = vpop.xlane.xlu0 %2766
        %v2768 = vsel %vm610, %v2642, 0.0
        %2769 = vadd.xlane.f32.xlu0 %v2768
        %v2770 = vpop.xlane.xlu0 %2769
        %v2771 = vsel %vm610, %v2643, 0.0
        %2772 = vadd.xlane.f32.xlu0 %v2771
        %v2773 = vpop.xlane.xlu0 %2772
        %v2774 = vsel %vm610, %v2644, 0.0
        %2775 = vadd.xlane.f32.xlu0 %v2774
        %v2776 = vpop.xlane.xlu0 %2775
        %v2777 = vsel %vm610, %v2645, 0.0
        %2778 = vadd.xlane.f32.xlu0 %v2777
        %v2779 = vpop.xlane.xlu0 %2778
        %v2780 = vsel %vm610, %v2646, 0.0
        %2781 = vadd.xlane.f32.xlu0 %v2780
        %v2782 = vpop.xlane.xlu0 %2781
        %v2783 = vsel %vm610, %v2647, 0.0
        %2784 = vadd.xlane.f32.xlu0 %v2783
        %v2785 = vpop.xlane.xlu0 %2784
        %v2786 = vsel %vm610, %v2648, 0.0
        %2787 = vadd.xlane.f32.xlu0 %v2786
        %v2788 = vpop.xlane.xlu0 %2787
        %v2789 = vsel %vm610, %v2649, 0.0
        %2790 = vadd.xlane.f32.xlu0 %v2789
        %v2791 = vpop.xlane.xlu0 %2790
        %v2792 = vsel %vm610, %v2650, 0.0
        %2793 = vadd.xlane.f32.xlu0 %v2792
        %v2794 = vpop.xlane.xlu0 %2793
        %v2795 = vsel %vm610, %v2651, 0.0
        %2796 = vadd.xlane.f32.xlu0 %v2795
        %v2797 = vpop.xlane.xlu0 %2796
        %v2798 = vsel %vm610, %v2652, 0.0
        %2799 = vadd.xlane.f32.xlu0 %v2798
        %v2800 = vpop.xlane.xlu0 %2799
        %v2801 = vsel %vm610, %v2653, 0.0
        %2802 = vadd.xlane.f32.xlu0 %v2801
        %v2803 = vpop.xlane.xlu0 %2802
        %v2804 = vsel %vm610, %v2654, 0.0
        %2805 = vadd.xlane.f32.xlu0 %v2804
        %v2806 = vpop.xlane.xlu0 %2805
        %v2807 = vsel %vm610, %v2655, 0.0
        %2808 = vadd.xlane.f32.xlu0 %v2807
        %v2809 = vpop.xlane.xlu0 %2808
        %v2810 = vsel %vm610, %v2656, 0.0
        %2811 = vadd.xlane.f32.xlu0 %v2810
        %v2812 = vpop.xlane.xlu0 %2811
        %v2813 = vsel %vm610, %v2657, 0.0
        %2814 = vadd.xlane.f32.xlu0 %v2813
        %v2815 = vpop.xlane.xlu0 %2814
        %v2816 = vsel %vm610, %v2658, 0.0
        %2817 = vadd.xlane.f32.xlu0 %v2816
        %v2818 = vpop.xlane.xlu0 %2817
        %v2819 = vsel %vm610, %v2659, 0.0
        %2820 = vadd.xlane.f32.xlu0 %v2819
        %v2821 = vpop.xlane.xlu0 %2820
        %v2822 = vsel %vm610, %v2660, 0.0
        %2823 = vadd.xlane.f32.xlu0 %v2822
        %v2824 = vpop.xlane.xlu0 %2823
        %v2825 = vsel %vm610, %v2661, 0.0
        %2826 = vadd.xlane.f32.xlu0 %v2825
        %v2827 = vpop.xlane.xlu0 %2826
        %v2828 = vsel %vm610, %v2662, 0.0
        %2829 = vadd.xlane.f32.xlu0 %v2828
        %v2830 = vpop.xlane.xlu0 %2829
        %v2831 = vsel %vm610, %v2663, 0.0
        %2832 = vadd.xlane.f32.xlu0 %v2831
        %v2833 = vpop.xlane.xlu0 %2832
        %v2834 = vsel %vm610, %v2664, 0.0
        %2835 = vadd.xlane.f32.xlu0 %v2834
        %v2836 = vpop.xlane.xlu0 %2835
        %v2837 = vsel %vm610, %v2665, 0.0
        %2838 = vadd.xlane.f32.xlu0 %v2837
        %v2839 = vpop.xlane.xlu0 %2838
        %v2840 = vsel %vm610, %v2666, 0.0
        %2841 = vadd.xlane.f32.xlu0 %v2840
        %v2842 = vpop.xlane.xlu0 %2841
        %v2843 = vsel %vm610, %v2667, 0.0
        %2844 = vadd.xlane.f32.xlu0 %v2843
        %v2845 = vpop.xlane.xlu0 %2844
        %v2846 = vsel %vm610, %v2668, 0.0
        %2847 = vadd.xlane.f32.xlu0 %v2846
        %v2848 = vpop.xlane.xlu0 %2847
        %v2849 = vsel %vm610, %v2669, 0.0
        %2850 = vadd.xlane.f32.xlu0 %v2849
        %v2851 = vpop.xlane.xlu0 %2850
        %v2852 = vsel %vm610, %v2670, 0.0
        %2853 = vadd.xlane.f32.xlu0 %v2852
        %v2854 = vpop.xlane.xlu0 %2853
        %v2855 = vsel %vm610, %v2671, 0.0
        %2856 = vadd.xlane.f32.xlu0 %v2855
        %v2857 = vpop.xlane.xlu0 %2856
        %v2858 = vsel %vm610, %v2672, 0.0
        %2859 = vadd.xlane.f32.xlu0 %v2858
        %v2860 = vpop.xlane.xlu0 %2859
        %v2861 = vsel %vm610, %v2673, 0.0
        %2862 = vadd.xlane.f32.xlu0 %v2861
        %v2863 = vpop.xlane.xlu0 %2862
        %v2864 = vsel %vm610, %v2674, 0.0
        %2865 = vadd.xlane.f32.xlu0 %v2864
        %v2866 = vpop.xlane.xlu0 %2865
        %v2867 = vrcp.pop 32.0
        %v2868 = vmul.f32 %v2677, %v2867
        %v2869 = vmul.f32 %v2680, %v2867
        %v2870 = vmul.f32 %v2683, %v2867
        %v2871 = vmul.f32 %v2686, %v2867
        %v2872 = vmul.f32 %v2689, %v2867
        %v2873 = vmul.f32 %v2692, %v2867
        %v2874 = vmul.f32 %v2695, %v2867
        %v2875 = vmul.f32 %v2698, %v2867
        %v2876 = vmul.f32 %v2701, %v2867
        %v2877 = vmul.f32 %v2704, %v2867
        %v2878 = vmul.f32 %v2707, %v2867
        %v2879 = vmul.f32 %v2710, %v2867
        %v2880 = vmul.f32 %v2713, %v2867
        %v2881 = vmul.f32 %v2716, %v2867
        %v2882 = vmul.f32 %v2719, %v2867
        %v2883 = vmul.f32 %v2722, %v2867
        %v2884 = vmul.f32 %v2725, %v2867
        %v2885 = vmul.f32 %v2728, %v2867
        %v2886 = vmul.f32 %v2731, %v2867
        %v2887 = vmul.f32 %v2734, %v2867
        %v2888 = vmul.f32 %v2737, %v2867
        %v2889 = vmul.f32 %v2740, %v2867
        %v2890 = vmul.f32 %v2743, %v2867
        %v2891 = vmul.f32 %v2746, %v2867
        %v2892 = vmul.f32 %v2749, %v2867
        %v2893 = vmul.f32 %v2752, %v2867
        %v2894 = vmul.f32 %v2755, %v2867
        %v2895 = vmul.f32 %v2758, %v2867
        %v2896 = vmul.f32 %v2761, %v2867
        %v2897 = vmul.f32 %v2764, %v2867
        %v2898 = vmul.f32 %v2767, %v2867
        %v2899 = vmul.f32 %v2770, %v2867
        %v2900 = vmul.f32 %v2773, %v2867
        %v2901 = vmul.f32 %v2776, %v2867
        %v2902 = vmul.f32 %v2779, %v2867
        %v2903 = vmul.f32 %v2782, %v2867
        %v2904 = vmul.f32 %v2785, %v2867
        %v2905 = vmul.f32 %v2788, %v2867
        %v2906 = vmul.f32 %v2791, %v2867
        %v2907 = vmul.f32 %v2794, %v2867
        %v2908 = vmul.f32 %v2797, %v2867
        %v2909 = vmul.f32 %v2800, %v2867
        %v2910 = vmul.f32 %v2803, %v2867
        %v2911 = vmul.f32 %v2806, %v2867
        %v2912 = vmul.f32 %v2809, %v2867
        %v2913 = vmul.f32 %v2812, %v2867
        %v2914 = vmul.f32 %v2815, %v2867
        %v2915 = vmul.f32 %v2818, %v2867
        %v2916 = vmul.f32 %v2821, %v2867
        %v2917 = vmul.f32 %v2824, %v2867
        %v2918 = vmul.f32 %v2827, %v2867
        %v2919 = vmul.f32 %v2830, %v2867
        %v2920 = vmul.f32 %v2833, %v2867
        %v2921 = vmul.f32 %v2836, %v2867
        %v2922 = vmul.f32 %v2839, %v2867
        %v2923 = vmul.f32 %v2842, %v2867
        %v2924 = vmul.f32 %v2845, %v2867
        %v2925 = vmul.f32 %v2848, %v2867
        %v2926 = vmul.f32 %v2851, %v2867
        %v2927 = vmul.f32 %v2854, %v2867
        %v2928 = vmul.f32 %v2857, %v2867
        %v2929 = vmul.f32 %v2860, %v2867
        %v2930 = vmul.f32 %v2863, %v2867
        %v2931 = vmul.f32 %v2866, %v2867
        %v2932 = vmul.f32 %v2611, %v2611
        %v2933 = vmul.f32 %v2612, %v2612
        %v2934 = vmul.f32 %v2613, %v2613
        %v2935 = vmul.f32 %v2614, %v2614
        %v2936 = vmul.f32 %v2615, %v2615
        %v2937 = vmul.f32 %v2616, %v2616
        %v2938 = vmul.f32 %v2617, %v2617
        %v2939 = vmul.f32 %v2618, %v2618
        %v2940 = vmul.f32 %v2619, %v2619
        %v2941 = vmul.f32 %v2620, %v2620
        %v2942 = vmul.f32 %v2621, %v2621
        %v2943 = vmul.f32 %v2622, %v2622
        %v2944 = vmul.f32 %v2623, %v2623
        %v2945 = vmul.f32 %v2624, %v2624
        %v2946 = vmul.f32 %v2625, %v2625
        %v2947 = vmul.f32 %v2626, %v2626
        %v2948 = vmul.f32 %v2627, %v2627
        %v2949 = vmul.f32 %v2628, %v2628
        %v2950 = vmul.f32 %v2629, %v2629
        %v2951 = vmul.f32 %v2630, %v2630
        %v2952 = vmul.f32 %v2631, %v2631
        %v2953 = vmul.f32 %v2632, %v2632
        %v2954 = vmul.f32 %v2633, %v2633
        %v2955 = vmul.f32 %v2634, %v2634
        %v2956 = vmul.f32 %v2635, %v2635
        %v2957 = vmul.f32 %v2636, %v2636
        %v2958 = vmul.f32 %v2637, %v2637
        %v2959 = vmul.f32 %v2638, %v2638
        %v2960 = vmul.f32 %v2639, %v2639
        %v2961 = vmul.f32 %v2640, %v2640
        %v2962 = vmul.f32 %v2641, %v2641
        %v2963 = vmul.f32 %v2642, %v2642
        %v2964 = vmul.f32 %v2643, %v2643
        %v2965 = vmul.f32 %v2644, %v2644
        %v2966 = vmul.f32 %v2645, %v2645
        %v2967 = vmul.f32 %v2646, %v2646
        %v2968 = vmul.f32 %v2647, %v2647
        %v2969 = vmul.f32 %v2648, %v2648
        %v2970 = vmul.f32 %v2649, %v2649
        %v2971 = vmul.f32 %v2650, %v2650
        %v2972 = vmul.f32 %v2651, %v2651
        %v2973 = vmul.f32 %v2652, %v2652
        %v2974 = vmul.f32 %v2653, %v2653
        %v2975 = vmul.f32 %v2654, %v2654
        %v2976 = vmul.f32 %v2655, %v2655
        %v2977 = vmul.f32 %v2656, %v2656
        %v2978 = vmul.f32 %v2657, %v2657
        %v2979 = vmul.f32 %v2658, %v2658
        %v2980 = vmul.f32 %v2659, %v2659
        %v2981 = vmul.f32 %v2660, %v2660
        %v2982 = vmul.f32 %v2661, %v2661
        %v2983 = vmul.f32 %v2662, %v2662
        %v2984 = vmul.f32 %v2663, %v2663
        %v2985 = vmul.f32 %v2664, %v2664
        %v2986 = vmul.f32 %v2665, %v2665
        %v2987 = vmul.f32 %v2666, %v2666
        %v2988 = vmul.f32 %v2667, %v2667
        %v2989 = vmul.f32 %v2668, %v2668
        %v2990 = vmul.f32 %v2669, %v2669
        %v2991 = vmul.f32 %v2670, %v2670
        %v2992 = vmul.f32 %v2671, %v2671
        %v2993 = vmul.f32 %v2672, %v2672
        %v2994 = vmul.f32 %v2673, %v2673
        %v2995 = vmul.f32 %v2674, %v2674
        %v2996 = vsel %vm610, %v2932, 0.0
        %2997 = vadd.xlane.f32.xlu0 %v2996
        %v2998 = vpop.xlane.xlu0 %2997
        %v2999 = vsel %vm610, %v2933, 0.0
        %3000 = vadd.xlane.f32.xlu0 %v2999
        %v3001 = vpop.xlane.xlu0 %3000
        %v3002 = vsel %vm610, %v2934, 0.0
        %3003 = vadd.xlane.f32.xlu0 %v3002
        %v3004 = vpop.xlane.xlu0 %3003
        %v3005 = vsel %vm610, %v2935, 0.0
        %3006 = vadd.xlane.f32.xlu0 %v3005
        %v3007 = vpop.xlane.xlu0 %3006
        %v3008 = vsel %vm610, %v2936, 0.0
        %3009 = vadd.xlane.f32.xlu0 %v3008
        %v3010 = vpop.xlane.xlu0 %3009
        %v3011 = vsel %vm610, %v2937, 0.0
        %3012 = vadd.xlane.f32.xlu0 %v3011
        %v3013 = vpop.xlane.xlu0 %3012
        %v3014 = vsel %vm610, %v2938, 0.0
        %3015 = vadd.xlane.f32.xlu0 %v3014
        %v3016 = vpop.xlane.xlu0 %3015
        %v3017 = vsel %vm610, %v2939, 0.0
        %3018 = vadd.xlane.f32.xlu0 %v3017
        %v3019 = vpop.xlane.xlu0 %3018
        %v3020 = vsel %vm610, %v2940, 0.0
        %3021 = vadd.xlane.f32.xlu0 %v3020
        %v3022 = vpop.xlane.xlu0 %3021
        %v3023 = vsel %vm610, %v2941, 0.0
        %3024 = vadd.xlane.f32.xlu0 %v3023
        %v3025 = vpop.xlane.xlu0 %3024
        %v3026 = vsel %vm610, %v2942, 0.0
        %3027 = vadd.xlane.f32.xlu0 %v3026
        %v3028 = vpop.xlane.xlu0 %3027
        %v3029 = vsel %vm610, %v2943, 0.0
        %3030 = vadd.xlane.f32.xlu0 %v3029
        %v3031 = vpop.xlane.xlu0 %3030
        %v3032 = vsel %vm610, %v2944, 0.0
        %3033 = vadd.xlane.f32.xlu0 %v3032
        %v3034 = vpop.xlane.xlu0 %3033
        %v3035 = vsel %vm610, %v2945, 0.0
        %3036 = vadd.xlane.f32.xlu0 %v3035
        %v3037 = vpop.xlane.xlu0 %3036
        %v3038 = vsel %vm610, %v2946, 0.0
        %3039 = vadd.xlane.f32.xlu0 %v3038
        %v3040 = vpop.xlane.xlu0 %3039
        %v3041 = vsel %vm610, %v2947, 0.0
        %3042 = vadd.xlane.f32.xlu0 %v3041
        %v3043 = vpop.xlane.xlu0 %3042
        %v3044 = vsel %vm610, %v2948, 0.0
        %3045 = vadd.xlane.f32.xlu0 %v3044
        %v3046 = vpop.xlane.xlu0 %3045
        %v3047 = vsel %vm610, %v2949, 0.0
        %3048 = vadd.xlane.f32.xlu0 %v3047
        %v3049 = vpop.xlane.xlu0 %3048
        %v3050 = vsel %vm610, %v2950, 0.0
        %3051 = vadd.xlane.f32.xlu0 %v3050
        %v3052 = vpop.xlane.xlu0 %3051
        %v3053 = vsel %vm610, %v2951, 0.0
        %3054 = vadd.xlane.f32.xlu0 %v3053
        %v3055 = vpop.xlane.xlu0 %3054
        %v3056 = vsel %vm610, %v2952, 0.0
        %3057 = vadd.xlane.f32.xlu0 %v3056
        %v3058 = vpop.xlane.xlu0 %3057
        %v3059 = vsel %vm610, %v2953, 0.0
        %3060 = vadd.xlane.f32.xlu0 %v3059
        %v3061 = vpop.xlane.xlu0 %3060
        %v3062 = vsel %vm610, %v2954, 0.0
        %3063 = vadd.xlane.f32.xlu0 %v3062
        %v3064 = vpop.xlane.xlu0 %3063
        %v3065 = vsel %vm610, %v2955, 0.0
        %3066 = vadd.xlane.f32.xlu0 %v3065
        %v3067 = vpop.xlane.xlu0 %3066
        %v3068 = vsel %vm610, %v2956, 0.0
        %3069 = vadd.xlane.f32.xlu0 %v3068
        %v3070 = vpop.xlane.xlu0 %3069
        %v3071 = vsel %vm610, %v2957, 0.0
        %3072 = vadd.xlane.f32.xlu0 %v3071
        %v3073 = vpop.xlane.xlu0 %3072
        %v3074 = vsel %vm610, %v2958, 0.0
        %3075 = vadd.xlane.f32.xlu0 %v3074
        %v3076 = vpop.xlane.xlu0 %3075
        %v3077 = vsel %vm610, %v2959, 0.0
        %3078 = vadd.xlane.f32.xlu0 %v3077
        %v3079 = vpop.xlane.xlu0 %3078
        %v3080 = vsel %vm610, %v2960, 0.0
        %3081 = vadd.xlane.f32.xlu0 %v3080
        %v3082 = vpop.xlane.xlu0 %3081
        %v3083 = vsel %vm610, %v2961, 0.0
        %3084 = vadd.xlane.f32.xlu0 %v3083
        %v3085 = vpop.xlane.xlu0 %3084
        %v3086 = vsel %vm610, %v2962, 0.0
        %3087 = vadd.xlane.f32.xlu0 %v3086
        %v3088 = vpop.xlane.xlu0 %3087
        %v3089 = vsel %vm610, %v2963, 0.0
        %3090 = vadd.xlane.f32.xlu0 %v3089
        %v3091 = vpop.xlane.xlu0 %3090
        %v3092 = vsel %vm610, %v2964, 0.0
        %3093 = vadd.xlane.f32.xlu0 %v3092
        %v3094 = vpop.xlane.xlu0 %3093
        %v3095 = vsel %vm610, %v2965, 0.0
        %3096 = vadd.xlane.f32.xlu0 %v3095
        %v3097 = vpop.xlane.xlu0 %3096
        %v3098 = vsel %vm610, %v2966, 0.0
        %3099 = vadd.xlane.f32.xlu0 %v3098
        %v3100 = vpop.xlane.xlu0 %3099
        %v3101 = vsel %vm610, %v2967, 0.0
        %3102 = vadd.xlane.f32.xlu0 %v3101
        %v3103 = vpop.xlane.xlu0 %3102
        %v3104 = vsel %vm610, %v2968, 0.0
        %3105 = vadd.xlane.f32.xlu0 %v3104
        %v3106 = vpop.xlane.xlu0 %3105
        %v3107 = vsel %vm610, %v2969, 0.0
        %3108 = vadd.xlane.f32.xlu0 %v3107
        %v3109 = vpop.xlane.xlu0 %3108
        %v3110 = vsel %vm610, %v2970, 0.0
        %3111 = vadd.xlane.f32.xlu0 %v3110
        %v3112 = vpop.xlane.xlu0 %3111
        %v3113 = vsel %vm610, %v2971, 0.0
        %3114 = vadd.xlane.f32.xlu0 %v3113
        %v3115 = vpop.xlane.xlu0 %3114
        %v3116 = vsel %vm610, %v2972, 0.0
        %3117 = vadd.xlane.f32.xlu0 %v3116
        %v3118 = vpop.xlane.xlu0 %3117
        %v3119 = vsel %vm610, %v2973, 0.0
        %3120 = vadd.xlane.f32.xlu0 %v3119
        %v3121 = vpop.xlane.xlu0 %3120
        %v3122 = vsel %vm610, %v2974, 0.0
        %3123 = vadd.xlane.f32.xlu0 %v3122
        %v3124 = vpop.xlane.xlu0 %3123
        %v3125 = vsel %vm610, %v2975, 0.0
        %3126 = vadd.xlane.f32.xlu0 %v3125
        %v3127 = vpop.xlane.xlu0 %3126
        %v3128 = vsel %vm610, %v2976, 0.0
        %3129 = vadd.xlane.f32.xlu0 %v3128
        %v3130 = vpop.xlane.xlu0 %3129
        %v3131 = vsel %vm610, %v2977, 0.0
        %3132 = vadd.xlane.f32.xlu0 %v3131
        %v3133 = vpop.xlane.xlu0 %3132
        %v3134 = vsel %vm610, %v2978, 0.0
        %3135 = vadd.xlane.f32.xlu0 %v3134
        %v3136 = vpop.xlane.xlu0 %3135
        %v3137 = vsel %vm610, %v2979, 0.0
        %3138 = vadd.xlane.f32.xlu0 %v3137
        %v3139 = vpop.xlane.xlu0 %3138
        %v3140 = vsel %vm610, %v2980, 0.0
        %3141 = vadd.xlane.f32.xlu0 %v3140
        %v3142 = vpop.xlane.xlu0 %3141
        %v3143 = vsel %vm610, %v2981, 0.0
        %3144 = vadd.xlane.f32.xlu0 %v3143
        %v3145 = vpop.xlane.xlu0 %3144
        %v3146 = vsel %vm610, %v2982, 0.0
        %3147 = vadd.xlane.f32.xlu0 %v3146
        %v3148 = vpop.xlane.xlu0 %3147
        %v3149 = vsel %vm610, %v2983, 0.0
        %3150 = vadd.xlane.f32.xlu0 %v3149
        %v3151 = vpop.xlane.xlu0 %3150
        %v3152 = vsel %vm610, %v2984, 0.0
        %3153 = vadd.xlane.f32.xlu0 %v3152
        %v3154 = vpop.xlane.xlu0 %3153
        %v3155 = vsel %vm610, %v2985, 0.0
        %3156 = vadd.xlane.f32.xlu0 %v3155
        %v3157 = vpop.xlane.xlu0 %3156
        %v3158 = vsel %vm610, %v2986, 0.0
        %3159 = vadd.xlane.f32.xlu0 %v3158
        %v3160 = vpop.xlane.xlu0 %3159
        %v3161 = vsel %vm610, %v2987, 0.0
        %3162 = vadd.xlane.f32.xlu0 %v3161
        %v3163 = vpop.xlane.xlu0 %3162
        %v3164 = vsel %vm610, %v2988, 0.0
        %3165 = vadd.xlane.f32.xlu0 %v3164
        %v3166 = vpop.xlane.xlu0 %3165
        %v3167 = vsel %vm610, %v2989, 0.0
        %3168 = vadd.xlane.f32.xlu0 %v3167
        %v3169 = vpop.xlane.xlu0 %3168
        %v3170 = vsel %vm610, %v2990, 0.0
        %3171 = vadd.xlane.f32.xlu0 %v3170
        %v3172 = vpop.xlane.xlu0 %3171
        %v3173 = vsel %vm610, %v2991, 0.0
        %3174 = vadd.xlane.f32.xlu0 %v3173
        %v3175 = vpop.xlane.xlu0 %3174
        %v3176 = vsel %vm610, %v2992, 0.0
        %3177 = vadd.xlane.f32.xlu0 %v3176
        %v3178 = vpop.xlane.xlu0 %3177
        %v3179 = vsel %vm610, %v2993, 0.0
        %3180 = vadd.xlane.f32.xlu0 %v3179
        %v3181 = vpop.xlane.xlu0 %3180
        %v3182 = vsel %vm610, %v2994, 0.0
        %3183 = vadd.xlane.f32.xlu0 %v3182
        %v3184 = vpop.xlane.xlu0 %3183
        %v3185 = vsel %vm610, %v2995, 0.0
        %3186 = vadd.xlane.f32.xlu0 %v3185
        %v3187 = vpop.xlane.xlu0 %3186
        %v3188 = vmul.f32 %v2998, %v2867
        %v3189 = vmul.f32 %v3001, %v2867
        %v3190 = vmul.f32 %v3004, %v2867
        %v3191 = vmul.f32 %v3007, %v2867
        %v3192 = vmul.f32 %v3010, %v2867
        %v3193 = vmul.f32 %v3013, %v2867
        %v3194 = vmul.f32 %v3016, %v2867
        %v3195 = vmul.f32 %v3019, %v2867
        %v3196 = vmul.f32 %v3022, %v2867
        %v3197 = vmul.f32 %v3025, %v2867
        %v3198 = vmul.f32 %v3028, %v2867
        %v3199 = vmul.f32 %v3031, %v2867
        %v3200 = vmul.f32 %v3034, %v2867
        %v3201 = vmul.f32 %v3037, %v2867
        %v3202 = vmul.f32 %v3040, %v2867
        %v3203 = vmul.f32 %v3043, %v2867
        %v3204 = vmul.f32 %v3046, %v2867
        %v3205 = vmul.f32 %v3049, %v2867
        %v3206 = vmul.f32 %v3052, %v2867
        %v3207 = vmul.f32 %v3055, %v2867
        %v3208 = vmul.f32 %v3058, %v2867
        %v3209 = vmul.f32 %v3061, %v2867
        %v3210 = vmul.f32 %v3064, %v2867
        %v3211 = vmul.f32 %v3067, %v2867
        %v3212 = vmul.f32 %v3070, %v2867
        %v3213 = vmul.f32 %v3073, %v2867
        %v3214 = vmul.f32 %v3076, %v2867
        %v3215 = vmul.f32 %v3079, %v2867
        %v3216 = vmul.f32 %v3082, %v2867
        %v3217 = vmul.f32 %v3085, %v2867
        %v3218 = vmul.f32 %v3088, %v2867
        %v3219 = vmul.f32 %v3091, %v2867
        %v3220 = vmul.f32 %v3094, %v2867
        %v3221 = vmul.f32 %v3097, %v2867
        %v3222 = vmul.f32 %v3100, %v2867
        %v3223 = vmul.f32 %v3103, %v2867
        %v3224 = vmul.f32 %v3106, %v2867
        %v3225 = vmul.f32 %v3109, %v2867
        %v3226 = vmul.f32 %v3112, %v2867
        %v3227 = vmul.f32 %v3115, %v2867
        %v3228 = vmul.f32 %v3118, %v2867
        %v3229 = vmul.f32 %v3121, %v2867
        %v3230 = vmul.f32 %v3124, %v2867
        %v3231 = vmul.f32 %v3127, %v2867
        %v3232 = vmul.f32 %v3130, %v2867
        %v3233 = vmul.f32 %v3133, %v2867
        %v3234 = vmul.f32 %v3136, %v2867
        %v3235 = vmul.f32 %v3139, %v2867
        %v3236 = vmul.f32 %v3142, %v2867
        %v3237 = vmul.f32 %v3145, %v2867
        %v3238 = vmul.f32 %v3148, %v2867
        %v3239 = vmul.f32 %v3151, %v2867
        %v3240 = vmul.f32 %v3154, %v2867
        %v3241 = vmul.f32 %v3157, %v2867
        %v3242 = vmul.f32 %v3160, %v2867
        %v3243 = vmul.f32 %v3163, %v2867
        %v3244 = vmul.f32 %v3166, %v2867
        %v3245 = vmul.f32 %v3169, %v2867
        %v3246 = vmul.f32 %v3172, %v2867
        %v3247 = vmul.f32 %v3175, %v2867
        %v3248 = vmul.f32 %v3178, %v2867
        %v3249 = vmul.f32 %v3181, %v2867
        %v3250 = vmul.f32 %v3184, %v2867
        %v3251 = vmul.f32 %v3187, %v2867
        %v3252 = vmul.f32 %v2868, %v2868
        %v3253 = vmul.f32 %v2869, %v2869
        %v3254 = vmul.f32 %v2870, %v2870
        %v3255 = vmul.f32 %v2871, %v2871
        %v3256 = vmul.f32 %v2872, %v2872
        %v3257 = vmul.f32 %v2873, %v2873
        %v3258 = vmul.f32 %v2874, %v2874
        %v3259 = vmul.f32 %v2875, %v2875
        %v3260 = vmul.f32 %v2876, %v2876
        %v3261 = vmul.f32 %v2877, %v2877
        %v3262 = vmul.f32 %v2878, %v2878
        %v3263 = vmul.f32 %v2879, %v2879
        %v3264 = vmul.f32 %v2880, %v2880
        %v3265 = vmul.f32 %v2881, %v2881
        %v3266 = vmul.f32 %v2882, %v2882
        %v3267 = vmul.f32 %v2883, %v2883
        %v3268 = vmul.f32 %v2884, %v2884
        %v3269 = vmul.f32 %v2885, %v2885
        %v3270 = vmul.f32 %v2886, %v2886
        %v3271 = vmul.f32 %v2887, %v2887
        %v3272 = vmul.f32 %v2888, %v2888
        %v3273 = vmul.f32 %v2889, %v2889
        %v3274 = vmul.f32 %v2890, %v2890
        %v3275 = vmul.f32 %v2891, %v2891
        %v3276 = vmul.f32 %v2892, %v2892
        %v3277 = vmul.f32 %v2893, %v2893
        %v3278 = vmul.f32 %v2894, %v2894
        %v3279 = vmul.f32 %v2895, %v2895
        %v3280 = vmul.f32 %v2896, %v2896
        %v3281 = vmul.f32 %v2897, %v2897
        %v3282 = vmul.f32 %v2898, %v2898
        %v3283 = vmul.f32 %v2899, %v2899
        %v3284 = vmul.f32 %v2900, %v2900
        %v3285 = vmul.f32 %v2901, %v2901
        %v3286 = vmul.f32 %v2902, %v2902
        %v3287 = vmul.f32 %v2903, %v2903
        %v3288 = vmul.f32 %v2904, %v2904
        %v3289 = vmul.f32 %v2905, %v2905
        %v3290 = vmul.f32 %v2906, %v2906
        %v3291 = vmul.f32 %v2907, %v2907
        %v3292 = vmul.f32 %v2908, %v2908
        %v3293 = vmul.f32 %v2909, %v2909
        %v3294 = vmul.f32 %v2910, %v2910
        %v3295 = vmul.f32 %v2911, %v2911
        %v3296 = vmul.f32 %v2912, %v2912
        %v3297 = vmul.f32 %v2913, %v2913
        %v3298 = vmul.f32 %v2914, %v2914
        %v3299 = vmul.f32 %v2915, %v2915
        %v3300 = vmul.f32 %v2916, %v2916
        %v3301 = vmul.f32 %v2917, %v2917
        %v3302 = vmul.f32 %v2918, %v2918
        %v3303 = vmul.f32 %v2919, %v2919
        %v3304 = vmul.f32 %v2920, %v2920
        %v3305 = vmul.f32 %v2921, %v2921
        %v3306 = vmul.f32 %v2922, %v2922
        %v3307 = vmul.f32 %v2923, %v2923
        %v3308 = vmul.f32 %v2924, %v2924
        %v3309 = vmul.f32 %v2925, %v2925
        %v3310 = vmul.f32 %v2926, %v2926
        %v3311 = vmul.f32 %v2927, %v2927
        %v3312 = vmul.f32 %v2928, %v2928
        %v3313 = vmul.f32 %v2929, %v2929
        %v3314 = vmul.f32 %v2930, %v2930
        %v3315 = vmul.f32 %v2931, %v2931
        %v3316 = vsub.f32 %v3188, %v3252
        %v3317 = vsub.f32 %v3189, %v3253
        %v3318 = vsub.f32 %v3190, %v3254
        %v3319 = vsub.f32 %v3191, %v3255
        %v3320 = vsub.f32 %v3192, %v3256
        %v3321 = vsub.f32 %v3193, %v3257
        %v3322 = vsub.f32 %v3194, %v3258
        %v3323 = vsub.f32 %v3195, %v3259
        %v3324 = vsub.f32 %v3196, %v3260
        %v3325 = vsub.f32 %v3197, %v3261
        %v3326 = vsub.f32 %v3198, %v3262
        %v3327 = vsub.f32 %v3199, %v3263
        %v3328 = vsub.f32 %v3200, %v3264
        %v3329 = vsub.f32 %v3201, %v3265
        %v3330 = vsub.f32 %v3202, %v3266
        %v3331 = vsub.f32 %v3203, %v3267
        %v3332 = vsub.f32 %v3204, %v3268
        %v3333 = vsub.f32 %v3205, %v3269
        %v3334 = vsub.f32 %v3206, %v3270
        %v3335 = vsub.f32 %v3207, %v3271
        %v3336 = vsub.f32 %v3208, %v3272
        %v3337 = vsub.f32 %v3209, %v3273
        %v3338 = vsub.f32 %v3210, %v3274
        %v3339 = vsub.f32 %v3211, %v3275
        %v3340 = vsub.f32 %v3212, %v3276
        %v3341 = vsub.f32 %v3213, %v3277
        %v3342 = vsub.f32 %v3214, %v3278
        %v3343 = vsub.f32 %v3215, %v3279
        %v3344 = vsub.f32 %v3216, %v3280
        %v3345 = vsub.f32 %v3217, %v3281
        %v3346 = vsub.f32 %v3218, %v3282
        %v3347 = vsub.f32 %v3219, %v3283
        %v3348 = vsub.f32 %v3220, %v3284
        %v3349 = vsub.f32 %v3221, %v3285
        %v3350 = vsub.f32 %v3222, %v3286
        %v3351 = vsub.f32 %v3223, %v3287
        %v3352 = vsub.f32 %v3224, %v3288
        %v3353 = vsub.f32 %v3225, %v3289
        %v3354 = vsub.f32 %v3226, %v3290
        %v3355 = vsub.f32 %v3227, %v3291
        %v3356 = vsub.f32 %v3228, %v3292
        %v3357 = vsub.f32 %v3229, %v3293
        %v3358 = vsub.f32 %v3230, %v3294
        %v3359 = vsub.f32 %v3231, %v3295
        %v3360 = vsub.f32 %v3232, %v3296
        %v3361 = vsub.f32 %v3233, %v3297
        %v3362 = vsub.f32 %v3234, %v3298
        %v3363 = vsub.f32 %v3235, %v3299
        %v3364 = vsub.f32 %v3236, %v3300
        %v3365 = vsub.f32 %v3237, %v3301
        %v3366 = vsub.f32 %v3238, %v3302
        %v3367 = vsub.f32 %v3239, %v3303
        %v3368 = vsub.f32 %v3240, %v3304
        %v3369 = vsub.f32 %v3241, %v3305
        %v3370 = vsub.f32 %v3242, %v3306
        %v3371 = vsub.f32 %v3243, %v3307
        %v3372 = vsub.f32 %v3244, %v3308
        %v3373 = vsub.f32 %v3245, %v3309
        %v3374 = vsub.f32 %v3246, %v3310
        %v3375 = vsub.f32 %v3247, %v3311
        %v3376 = vsub.f32 %v3248, %v3312
        %v3377 = vsub.f32 %v3249, %v3313
        %v3378 = vsub.f32 %v3250, %v3314
        %v3379 = vsub.f32 %v3251, %v3315
        %v3380 = vsub.f32 %v2611, %v2868
        %v3381 = vsub.f32 %v2612, %v2869
        %v3382 = vsub.f32 %v2613, %v2870
        %v3383 = vsub.f32 %v2614, %v2871
        %v3384 = vsub.f32 %v2615, %v2872
        %v3385 = vsub.f32 %v2616, %v2873
        %v3386 = vsub.f32 %v2617, %v2874
        %v3387 = vsub.f32 %v2618, %v2875
        %v3388 = vsub.f32 %v2619, %v2876
        %v3389 = vsub.f32 %v2620, %v2877
        %v3390 = vsub.f32 %v2621, %v2878
        %v3391 = vsub.f32 %v2622, %v2879
        %v3392 = vsub.f32 %v2623, %v2880
        %v3393 = vsub.f32 %v2624, %v2881
        %v3394 = vsub.f32 %v2625, %v2882
        %v3395 = vsub.f32 %v2626, %v2883
        %v3396 = vsub.f32 %v2627, %v2884
        %v3397 = vsub.f32 %v2628, %v2885
        %v3398 = vsub.f32 %v2629, %v2886
        %v3399 = vsub.f32 %v2630, %v2887
        %v3400 = vsub.f32 %v2631, %v2888
        %v3401 = vsub.f32 %v2632, %v2889
        %v3402 = vsub.f32 %v2633, %v2890
        %v3403 = vsub.f32 %v2634, %v2891
        %v3404 = vsub.f32 %v2635, %v2892
        %v3405 = vsub.f32 %v2636, %v2893
        %v3406 = vsub.f32 %v2637, %v2894
        %v3407 = vsub.f32 %v2638, %v2895
        %v3408 = vsub.f32 %v2639, %v2896
        %v3409 = vsub.f32 %v2640, %v2897
        %v3410 = vsub.f32 %v2641, %v2898
        %v3411 = vsub.f32 %v2642, %v2899
        %v3412 = vsub.f32 %v2643, %v2900
        %v3413 = vsub.f32 %v2644, %v2901
        %v3414 = vsub.f32 %v2645, %v2902
        %v3415 = vsub.f32 %v2646, %v2903
        %v3416 = vsub.f32 %v2647, %v2904
        %v3417 = vsub.f32 %v2648, %v2905
        %v3418 = vsub.f32 %v2649, %v2906
        %v3419 = vsub.f32 %v2650, %v2907
        %v3420 = vsub.f32 %v2651, %v2908
        %v3421 = vsub.f32 %v2652, %v2909
        %v3422 = vsub.f32 %v2653, %v2910
        %v3423 = vsub.f32 %v2654, %v2911
        %v3424 = vsub.f32 %v2655, %v2912
        %v3425 = vsub.f32 %v2656, %v2913
        %v3426 = vsub.f32 %v2657, %v2914
        %v3427 = vsub.f32 %v2658, %v2915
        %v3428 = vsub.f32 %v2659, %v2916
        %v3429 = vsub.f32 %v2660, %v2917
        %v3430 = vsub.f32 %v2661, %v2918
        %v3431 = vsub.f32 %v2662, %v2919
        %v3432 = vsub.f32 %v2663, %v2920
        %v3433 = vsub.f32 %v2664, %v2921
        %v3434 = vsub.f32 %v2665, %v2922
        %v3435 = vsub.f32 %v2666, %v2923
        %v3436 = vsub.f32 %v2667, %v2924
        %v3437 = vsub.f32 %v2668, %v2925
        %v3438 = vsub.f32 %v2669, %v2926
        %v3439 = vsub.f32 %v2670, %v2927
        %v3440 = vsub.f32 %v2671, %v2928
        %v3441 = vsub.f32 %v2672, %v2929
        %v3442 = vsub.f32 %v2673, %v2930
        %v3443 = vsub.f32 %v2674, %v2931
        %v3444 = vadd.f32 %v3316, 1e-05
        %v3445 = vadd.f32 %v3317, 1e-05
        %v3446 = vadd.f32 %v3318, 1e-05
        %v3447 = vadd.f32 %v3319, 1e-05
        %v3448 = vadd.f32 %v3320, 1e-05
        %v3449 = vadd.f32 %v3321, 1e-05
        %v3450 = vadd.f32 %v3322, 1e-05
        %v3451 = vadd.f32 %v3323, 1e-05
        %v3452 = vadd.f32 %v3324, 1e-05
        %v3453 = vadd.f32 %v3325, 1e-05
        %v3454 = vadd.f32 %v3326, 1e-05
        %v3455 = vadd.f32 %v3327, 1e-05
        %v3456 = vadd.f32 %v3328, 1e-05
        %v3457 = vadd.f32 %v3329, 1e-05
        %v3458 = vadd.f32 %v3330, 1e-05
        %v3459 = vadd.f32 %v3331, 1e-05
        %v3460 = vadd.f32 %v3332, 1e-05
        %v3461 = vadd.f32 %v3333, 1e-05
        %v3462 = vadd.f32 %v3334, 1e-05
        %v3463 = vadd.f32 %v3335, 1e-05
        %v3464 = vadd.f32 %v3336, 1e-05
        %v3465 = vadd.f32 %v3337, 1e-05
        %v3466 = vadd.f32 %v3338, 1e-05
        %v3467 = vadd.f32 %v3339, 1e-05
        %v3468 = vadd.f32 %v3340, 1e-05
        %v3469 = vadd.f32 %v3341, 1e-05
        %v3470 = vadd.f32 %v3342, 1e-05
        %v3471 = vadd.f32 %v3343, 1e-05
        %v3472 = vadd.f32 %v3344, 1e-05
        %v3473 = vadd.f32 %v3345, 1e-05
        %v3474 = vadd.f32 %v3346, 1e-05
        %v3475 = vadd.f32 %v3347, 1e-05
        %v3476 = vadd.f32 %v3348, 1e-05
        %v3477 = vadd.f32 %v3349, 1e-05
        %v3478 = vadd.f32 %v3350, 1e-05
        %v3479 = vadd.f32 %v3351, 1e-05
        %v3480 = vadd.f32 %v3352, 1e-05
        %v3481 = vadd.f32 %v3353, 1e-05
        %v3482 = vadd.f32 %v3354, 1e-05
        %v3483 = vadd.f32 %v3355, 1e-05
        %v3484 = vadd.f32 %v3356, 1e-05
        %v3485 = vadd.f32 %v3357, 1e-05
        %v3486 = vadd.f32 %v3358, 1e-05
        %v3487 = vadd.f32 %v3359, 1e-05
        %v3488 = vadd.f32 %v3360, 1e-05
        %v3489 = vadd.f32 %v3361, 1e-05
        %v3490 = vadd.f32 %v3362, 1e-05
        %v3491 = vadd.f32 %v3363, 1e-05
        %v3492 = vadd.f32 %v3364, 1e-05
        %v3493 = vadd.f32 %v3365, 1e-05
        %v3494 = vadd.f32 %v3366, 1e-05
        %v3495 = vadd.f32 %v3367, 1e-05
        %v3496 = vadd.f32 %v3368, 1e-05
        %v3497 = vadd.f32 %v3369, 1e-05
        %v3498 = vadd.f32 %v3370, 1e-05
        %v3499 = vadd.f32 %v3371, 1e-05
        %v3500 = vadd.f32 %v3372, 1e-05
        %v3501 = vadd.f32 %v3373, 1e-05
        %v3502 = vadd.f32 %v3374, 1e-05
        %v3503 = vadd.f32 %v3375, 1e-05
        %v3504 = vadd.f32 %v3376, 1e-05
        %v3505 = vadd.f32 %v3377, 1e-05
        %v3506 = vadd.f32 %v3378, 1e-05
        %v3507 = vadd.f32 %v3379, 1e-05
        %v3508 = vrsqrt.pop %v3444
        %v3509 = vrsqrt.pop %v3445
        %v3510 = vrsqrt.pop %v3446
        %v3511 = vrsqrt.pop %v3447
        %v3512 = vrsqrt.pop %v3448
        %v3513 = vrsqrt.pop %v3449
        %v3514 = vrsqrt.pop %v3450
        %v3515 = vrsqrt.pop %v3451
        %v3516 = vrsqrt.pop %v3452
        %v3517 = vrsqrt.pop %v3453
        %v3518 = vrsqrt.pop %v3454
        %v3519 = vrsqrt.pop %v3455
        %v3520 = vrsqrt.pop %v3456
        %v3521 = vrsqrt.pop %v3457
        %v3522 = vrsqrt.pop %v3458
        %v3523 = vrsqrt.pop %v3459
        %v3524 = vrsqrt.pop %v3460
        %v3525 = vrsqrt.pop %v3461
        %v3526 = vrsqrt.pop %v3462
        %v3527 = vrsqrt.pop %v3463
        %v3528 = vrsqrt.pop %v3464
        %v3529 = vrsqrt.pop %v3465
        %v3530 = vrsqrt.pop %v3466
        %v3531 = vrsqrt.pop %v3467
        %v3532 = vrsqrt.pop %v3468
        %v3533 = vrsqrt.pop %v3469
        %v3534 = vrsqrt.pop %v3470
        %v3535 = vrsqrt.pop %v3471
        %v3536 = vrsqrt.pop %v3472
        %v3537 = vrsqrt.pop %v3473
        %v3538 = vrsqrt.pop %v3474
        %v3539 = vrsqrt.pop %v3475
        %v3540 = vrsqrt.pop %v3476
        %v3541 = vrsqrt.pop %v3477
        %v3542 = vrsqrt.pop %v3478
        %v3543 = vrsqrt.pop %v3479
        %v3544 = vrsqrt.pop %v3480
        %v3545 = vrsqrt.pop %v3481
        %v3546 = vrsqrt.pop %v3482
        %v3547 = vrsqrt.pop %v3483
        %v3548 = vrsqrt.pop %v3484
        %v3549 = vrsqrt.pop %v3485
        %v3550 = vrsqrt.pop %v3486
        %v3551 = vrsqrt.pop %v3487
        %v3552 = vrsqrt.pop %v3488
        %v3553 = vrsqrt.pop %v3489
        %v3554 = vrsqrt.pop %v3490
        %v3555 = vrsqrt.pop %v3491
        %v3556 = vrsqrt.pop %v3492
        %v3557 = vrsqrt.pop %v3493
        %v3558 = vrsqrt.pop %v3494
        %v3559 = vrsqrt.pop %v3495
        %v3560 = vrsqrt.pop %v3496
        %v3561 = vrsqrt.pop %v3497
        %v3562 = vrsqrt.pop %v3498
        %v3563 = vrsqrt.pop %v3499
        %v3564 = vrsqrt.pop %v3500
        %v3565 = vrsqrt.pop %v3501
        %v3566 = vrsqrt.pop %v3502
        %v3567 = vrsqrt.pop %v3503
        %v3568 = vrsqrt.pop %v3504
        %v3569 = vrsqrt.pop %v3505
        %v3570 = vrsqrt.pop %v3506
        %v3571 = vrsqrt.pop %v3507
        %v3572 = vmul.f32 %v3380, %v3508
        %v3573 = vmul.f32 %v3381, %v3509
        %v3574 = vmul.f32 %v3382, %v3510
        %v3575 = vmul.f32 %v3383, %v3511
        %v3576 = vmul.f32 %v3384, %v3512
        %v3577 = vmul.f32 %v3385, %v3513
        %v3578 = vmul.f32 %v3386, %v3514
        %v3579 = vmul.f32 %v3387, %v3515
        %v3580 = vmul.f32 %v3388, %v3516
        %v3581 = vmul.f32 %v3389, %v3517
        %v3582 = vmul.f32 %v3390, %v3518
        %v3583 = vmul.f32 %v3391, %v3519
        %v3584 = vmul.f32 %v3392, %v3520
        %v3585 = vmul.f32 %v3393, %v3521
        %v3586 = vmul.f32 %v3394, %v3522
        %v3587 = vmul.f32 %v3395, %v3523
        %v3588 = vmul.f32 %v3396, %v3524
        %v3589 = vmul.f32 %v3397, %v3525
        %v3590 = vmul.f32 %v3398, %v3526
        %v3591 = vmul.f32 %v3399, %v3527
        %v3592 = vmul.f32 %v3400, %v3528
        %v3593 = vmul.f32 %v3401, %v3529
        %v3594 = vmul.f32 %v3402, %v3530
        %v3595 = vmul.f32 %v3403, %v3531
        %v3596 = vmul.f32 %v3404, %v3532
        %v3597 = vmul.f32 %v3405, %v3533
        %v3598 = vmul.f32 %v3406, %v3534
        %v3599 = vmul.f32 %v3407, %v3535
        %v3600 = vmul.f32 %v3408, %v3536
        %v3601 = vmul.f32 %v3409, %v3537
        %v3602 = vmul.f32 %v3410, %v3538
        %v3603 = vmul.f32 %v3411, %v3539
        %v3604 = vmul.f32 %v3412, %v3540
        %v3605 = vmul.f32 %v3413, %v3541
        %v3606 = vmul.f32 %v3414, %v3542
        %v3607 = vmul.f32 %v3415, %v3543
        %v3608 = vmul.f32 %v3416, %v3544
        %v3609 = vmul.f32 %v3417, %v3545
        %v3610 = vmul.f32 %v3418, %v3546
        %v3611 = vmul.f32 %v3419, %v3547
        %v3612 = vmul.f32 %v3420, %v3548
        %v3613 = vmul.f32 %v3421, %v3549
        %v3614 = vmul.f32 %v3422, %v3550
        %v3615 = vmul.f32 %v3423, %v3551
        %v3616 = vmul.f32 %v3424, %v3552
        %v3617 = vmul.f32 %v3425, %v3553
        %v3618 = vmul.f32 %v3426, %v3554
        %v3619 = vmul.f32 %v3427, %v3555
        %v3620 = vmul.f32 %v3428, %v3556
        %v3621 = vmul.f32 %v3429, %v3557
        %v3622 = vmul.f32 %v3430, %v3558
        %v3623 = vmul.f32 %v3431, %v3559
        %v3624 = vmul.f32 %v3432, %v3560
        %v3625 = vmul.f32 %v3433, %v3561
        %v3626 = vmul.f32 %v3434, %v3562
        %v3627 = vmul.f32 %v3435, %v3563
        %v3628 = vmul.f32 %v3436, %v3564
        %v3629 = vmul.f32 %v3437, %v3565
        %v3630 = vmul.f32 %v3438, %v3566
        %v3631 = vmul.f32 %v3439, %v3567
        %v3632 = vmul.f32 %v3440, %v3568
        %v3633 = vmul.f32 %v3441, %v3569
        %v3634 = vmul.f32 %v3442, %v3570
        %v3635 = vmul.f32 %v3443, %v3571
        %v3636 = vlaneseq
        %v3637 = vshrl.u32 %v3636, 7
        %v3638 = vsub.s32 1, %v3637
        %v3639 = vrot.slane %v364, %v3638
        %v3640 = vmul.f32 %v3572, %v3639
        %v3641 = vmul.f32 %v3573, %v3639
        %v3642 = vmul.f32 %v3574, %v3639
        %v3643 = vmul.f32 %v3575, %v3639
        %v3644 = vmul.f32 %v3576, %v3639
        %v3645 = vmul.f32 %v3577, %v3639
        %v3646 = vmul.f32 %v3578, %v3639
        %v3647 = vmul.f32 %v3579, %v3639
        %v3648 = vmul.f32 %v3580, %v3639
        %v3649 = vmul.f32 %v3581, %v3639
        %v3650 = vmul.f32 %v3582, %v3639
        %v3651 = vmul.f32 %v3583, %v3639
        %v3652 = vmul.f32 %v3584, %v3639
        %v3653 = vmul.f32 %v3585, %v3639
        %v3654 = vmul.f32 %v3586, %v3639
        %v3655 = vmul.f32 %v3587, %v3639
        %v3656 = vmul.f32 %v3588, %v3639
        %v3657 = vmul.f32 %v3589, %v3639
        %v3658 = vmul.f32 %v3590, %v3639
        %v3659 = vmul.f32 %v3591, %v3639
        %v3660 = vmul.f32 %v3592, %v3639
        %v3661 = vmul.f32 %v3593, %v3639
        %v3662 = vmul.f32 %v3594, %v3639
        %v3663 = vmul.f32 %v3595, %v3639
        %v3664 = vmul.f32 %v3596, %v3639
        %v3665 = vmul.f32 %v3597, %v3639
        %v3666 = vmul.f32 %v3598, %v3639
        %v3667 = vmul.f32 %v3599, %v3639
        %v3668 = vmul.f32 %v3600, %v3639
        %v3669 = vmul.f32 %v3601, %v3639
        %v3670 = vmul.f32 %v3602, %v3639
        %v3671 = vmul.f32 %v3603, %v3639
        %v3672 = vmul.f32 %v3604, %v3639
        %v3673 = vmul.f32 %v3605, %v3639
        %v3674 = vmul.f32 %v3606, %v3639
        %v3675 = vmul.f32 %v3607, %v3639
        %v3676 = vmul.f32 %v3608, %v3639
        %v3677 = vmul.f32 %v3609, %v3639
        %v3678 = vmul.f32 %v3610, %v3639
        %v3679 = vmul.f32 %v3611, %v3639
        %v3680 = vmul.f32 %v3612, %v3639
        %v3681 = vmul.f32 %v3613, %v3639
        %v3682 = vmul.f32 %v3614, %v3639
        %v3683 = vmul.f32 %v3615, %v3639
        %v3684 = vmul.f32 %v3616, %v3639
        %v3685 = vmul.f32 %v3617, %v3639
        %v3686 = vmul.f32 %v3618, %v3639
        %v3687 = vmul.f32 %v3619, %v3639
        %v3688 = vmul.f32 %v3620, %v3639
        %v3689 = vmul.f32 %v3621, %v3639
        %v3690 = vmul.f32 %v3622, %v3639
        %v3691 = vmul.f32 %v3623, %v3639
        %v3692 = vmul.f32 %v3624, %v3639
        %v3693 = vmul.f32 %v3625, %v3639
        %v3694 = vmul.f32 %v3626, %v3639
        %v3695 = vmul.f32 %v3627, %v3639
        %v3696 = vmul.f32 %v3628, %v3639
        %v3697 = vmul.f32 %v3629, %v3639
        %v3698 = vmul.f32 %v3630, %v3639
        %v3699 = vmul.f32 %v3631, %v3639
        %v3700 = vmul.f32 %v3632, %v3639
        %v3701 = vmul.f32 %v3633, %v3639
        %v3702 = vmul.f32 %v3634, %v3639
        %v3703 = vmul.f32 %v3635, %v3639
        %v3704 = vlaneseq
        %v3705 = vshrl.u32 %v3704, 7
        %v3706 = vsub.s32 2, %v3705
        %v3707 = vrot.slane %v364, %v3706
        %v3708 = vadd.f32 %v3640, %v3707
        %v3709 = vadd.f32 %v3641, %v3707
        %v3710 = vadd.f32 %v3642, %v3707
        %v3711 = vadd.f32 %v3643, %v3707
        %v3712 = vadd.f32 %v3644, %v3707
        %v3713 = vadd.f32 %v3645, %v3707
        %v3714 = vadd.f32 %v3646, %v3707
        %v3715 = vadd.f32 %v3647, %v3707
        %v3716 = vadd.f32 %v3648, %v3707
        %v3717 = vadd.f32 %v3649, %v3707
        %v3718 = vadd.f32 %v3650, %v3707
        %v3719 = vadd.f32 %v3651, %v3707
        %v3720 = vadd.f32 %v3652, %v3707
        %v3721 = vadd.f32 %v3653, %v3707
        %v3722 = vadd.f32 %v3654, %v3707
        %v3723 = vadd.f32 %v3655, %v3707
        %v3724 = vadd.f32 %v3656, %v3707
        %v3725 = vadd.f32 %v3657, %v3707
        %v3726 = vadd.f32 %v3658, %v3707
        %v3727 = vadd.f32 %v3659, %v3707
        %v3728 = vadd.f32 %v3660, %v3707
        %v3729 = vadd.f32 %v3661, %v3707
        %v3730 = vadd.f32 %v3662, %v3707
        %v3731 = vadd.f32 %v3663, %v3707
        %v3732 = vadd.f32 %v3664, %v3707
        %v3733 = vadd.f32 %v3665, %v3707
        %v3734 = vadd.f32 %v3666, %v3707
        %v3735 = vadd.f32 %v3667, %v3707
        %v3736 = vadd.f32 %v3668, %v3707
        %v3737 = vadd.f32 %v3669, %v3707
        %v3738 = vadd.f32 %v3670, %v3707
        %v3739 = vadd.f32 %v3671, %v3707
        %v3740 = vadd.f32 %v3672, %v3707
        %v3741 = vadd.f32 %v3673, %v3707
        %v3742 = vadd.f32 %v3674, %v3707
        %v3743 = vadd.f32 %v3675, %v3707
        %v3744 = vadd.f32 %v3676, %v3707
        %v3745 = vadd.f32 %v3677, %v3707
        %v3746 = vadd.f32 %v3678, %v3707
        %v3747 = vadd.f32 %v3679, %v3707
        %v3748 = vadd.f32 %v3680, %v3707
        %v3749 = vadd.f32 %v3681, %v3707
        %v3750 = vadd.f32 %v3682, %v3707
        %v3751 = vadd.f32 %v3683, %v3707
        %v3752 = vadd.f32 %v3684, %v3707
        %v3753 = vadd.f32 %v3685, %v3707
        %v3754 = vadd.f32 %v3686, %v3707
        %v3755 = vadd.f32 %v3687, %v3707
        %v3756 = vadd.f32 %v3688, %v3707
        %v3757 = vadd.f32 %v3689, %v3707
        %v3758 = vadd.f32 %v3690, %v3707
        %v3759 = vadd.f32 %v3691, %v3707
        %v3760 = vadd.f32 %v3692, %v3707
        %v3761 = vadd.f32 %v3693, %v3707
        %v3762 = vadd.f32 %v3694, %v3707
        %v3763 = vadd.f32 %v3695, %v3707
        %v3764 = vadd.f32 %v3696, %v3707
        %v3765 = vadd.f32 %v3697, %v3707
        %v3766 = vadd.f32 %v3698, %v3707
        %v3767 = vadd.f32 %v3699, %v3707
        %v3768 = vadd.f32 %v3700, %v3707
        %v3769 = vadd.f32 %v3701, %v3707
        %v3770 = vadd.f32 %v3702, %v3707
        %v3771 = vadd.f32 %v3703, %v3707
        %v3772 = vpack.c.bf16 %v3709, %v3708
        %v3773 = vpack.c.bf16 %v3711, %v3710
        %v3774 = vpack.c.bf16 %v3713, %v3712
        %v3775 = vpack.c.bf16 %v3715, %v3714
        %v3776 = vpack.c.bf16 %v3717, %v3716
        %v3777 = vpack.c.bf16 %v3719, %v3718
        %v3778 = vpack.c.bf16 %v3721, %v3720
        %v3779 = vpack.c.bf16 %v3723, %v3722
        %v3780 = vpack.c.bf16 %v3725, %v3724
        %v3781 = vpack.c.bf16 %v3727, %v3726
        %v3782 = vpack.c.bf16 %v3729, %v3728
        %v3783 = vpack.c.bf16 %v3731, %v3730
        %v3784 = vpack.c.bf16 %v3733, %v3732
        %v3785 = vpack.c.bf16 %v3735, %v3734
        %v3786 = vpack.c.bf16 %v3737, %v3736
        %v3787 = vpack.c.bf16 %v3739, %v3738
        %v3788 = vpack.c.bf16 %v3741, %v3740
        %v3789 = vpack.c.bf16 %v3743, %v3742
        %v3790 = vpack.c.bf16 %v3745, %v3744
        %v3791 = vpack.c.bf16 %v3747, %v3746
        %v3792 = vpack.c.bf16 %v3749, %v3748
        %v3793 = vpack.c.bf16 %v3751, %v3750
        %v3794 = vpack.c.bf16 %v3753, %v3752
        %v3795 = vpack.c.bf16 %v3755, %v3754
        %v3796 = vpack.c.bf16 %v3757, %v3756
        %v3797 = vpack.c.bf16 %v3759, %v3758
        %v3798 = vpack.c.bf16 %v3761, %v3760
        %v3799 = vpack.c.bf16 %v3763, %v3762
        %v3800 = vpack.c.bf16 %v3765, %v3764
        %v3801 = vpack.c.bf16 %v3767, %v3766
        %v3802 = vpack.c.bf16 %v3769, %v3768
        %v3803 = vpack.c.bf16 %v3771, %v3770
        %v3804 = vld [vmem:[%s5] sm:$0xf]
        %v3805 = vld [vmem:[%s5 + $0x4] sm:$0xf]
        %v3806 = vld [vmem:[%s5 + $0x8] sm:$0xf]
        %v3807 = vld [vmem:[%s5 + $0xc] sm:$0xf]
        %v3808 = vlaneseq
        %v3809 = vshrl.u32 %v3808, 7
        %v3810 = vsub.s32 0, %v3809
        %v3811 = vrot.slane %v365, %v3810
        %v3816 = vunpack.c.l.b16 %v3804
        %v3817 = vunpack.c.l.b16 %v3805
        %v3818 = vunpack.c.l.b16 %v3806
        %v3819 = vunpack.c.l.b16 %v3807
        %v3820 = vpack.c.b16 %v3817, %v3816
        %v3821 = vpack.c.b16 %v3819, %v3818
        %v3825 = vsel %vm610, %v3772, 0
        %v3828 = vsel %vm610, %v3773, 0
        %v3831 = vsel %vm610, %v3774, 0
        %v3834 = vsel %vm610, %v3775, 0
        %v3837 = vsel %vm610, %v3776, 0
        %v3840 = vsel %vm610, %v3777, 0
        %v3843 = vsel %vm610, %v3778, 0
        %v3846 = vsel %vm610, %v3779, 0
        %v3849 = vsel %vm610, %v3780, 0
        %v3852 = vsel %vm610, %v3781, 0
        %v3855 = vsel %vm610, %v3782, 0
        %v3858 = vsel %vm610, %v3783, 0
        %v3861 = vsel %vm610, %v3784, 0
        %v3864 = vsel %vm610, %v3785, 0
        %v3867 = vsel %vm610, %v3786, 0
        %v3870 = vsel %vm610, %v3787, 0
        %v3873 = vsel %vm610, %v3788, 0
        %v3876 = vsel %vm610, %v3789, 0
        %v3879 = vsel %vm610, %v3790, 0
        %v3882 = vsel %vm610, %v3791, 0
        %v3885 = vsel %vm610, %v3792, 0
        %v3888 = vsel %vm610, %v3793, 0
        %v3891 = vsel %vm610, %v3794, 0
        %v3894 = vsel %vm610, %v3795, 0
        %v3897 = vsel %vm610, %v3796, 0
        %v3900 = vsel %vm610, %v3797, 0
        %v3903 = vsel %vm610, %v3798, 0
        %v3906 = vsel %vm610, %v3799, 0
        %v3909 = vsel %vm610, %v3800, 0
        %v3912 = vsel %vm610, %v3801, 0
        %v3915 = vsel %vm610, %v3802, 0
        %v3918 = vsel %vm610, %v3803, 0
        %3920 = vmatprep.subr.bf16.mxu0 0
        %3921 = vmatpush1.bf16.msra.mxu0 0
        %3922 = vmatprep.subr.bf16.mxu0 0
        %3923 = vmatpush1.bf16.msra.mxu0 0
        %3924 = vmatprep.subr.bf16.mxu0 0
        %3925 = vmatpush1.bf16.msra.mxu0 0
        %3926 = vmatprep.subr.bf16.mxu0 0
        %3927 = vmatpush1.bf16.msra.mxu0 0
        %3928 = vmatprep.subr.bf16.mxu0 0
        %3929 = vmatpush1.bf16.msra.mxu0 0
        %3930 = vmatprep.subr.bf16.mxu0 0
        %3931 = vmatpush1.bf16.msra.mxu0 0
        %3932 = vmatprep.subr.bf16.mxu0 0
        %3933 = vmatpush1.bf16.msra.mxu0 %v3821
        %3934 = vmatprep.subr.bf16.mxu0 0
        %3935 = vmatpush1.bf16.msra.mxu0 %v3820
        %3936 = vmatprep.subr.bf16.mxu0 0
        %3937 = vmatpush2.bf16.msra.mxu0 0
        %3938 = vmatprep.subr.bf16.mxu0 0
        %3939 = vmatpush2.bf16.msra.mxu0 0
        %3940 = vmatprep.subr.bf16.mxu0 0
        %3941 = vmatpush2.bf16.msra.mxu0 0
        %3942 = vmatprep.subr.bf16.mxu0 0
        %3943 = vmatpush2.bf16.msra.mxu0 0
        %3944 = vmatprep.subr.bf16.mxu0 0
        %3945 = vmatpush2.bf16.msra.mxu0 0
        %3946 = vmatprep.subr.bf16.mxu0 0
        %3947 = vmatpush2.bf16.msra.mxu0 0
        %3948 = vmatprep.subr.bf16.mxu0 0
        %3949 = vmatpush2.bf16.msra.mxu0 0
        %3950 = vmatprep.subr.bf16.mxu0 0
        %3951 = vmatpush2.bf16.msra.mxu0 0
        %3952 = vmatprep.mubr.bf16.mxu0 0
        %3953 = vmatmul.mubr.bf16.gmra.mxu0 %v3825
        %v3954 = vpop.f32.mrf.mxu0
        %v3955 = vadd.f32 %v3811, %v3954
        %v3956 = vpop.f32.mrf.mxu0
        %v3957 = vpop.f32.mrf.mxu0
        %v3958 = vadd.f32 %v3811, %v3957
        %v3959 = vpop.f32.mrf.mxu0
        %3960 = vmatprep.mubr.bf16.mxu0 0
        %3961 = vmatmul.mubr.bf16.gmra.mxu0 %v3828
        %v3962 = vpop.f32.mrf.mxu0
        %v3963 = vadd.f32 %v3811, %v3962
        %v3964 = vpop.f32.mrf.mxu0
        %v3965 = vpop.f32.mrf.mxu0
        %v3966 = vadd.f32 %v3811, %v3965
        %v3967 = vpop.f32.mrf.mxu0
        %3968 = vmatprep.mubr.bf16.mxu0 0
        %3969 = vmatmul.mubr.bf16.gmra.mxu0 %v3831
        %v3970 = vpop.f32.mrf.mxu0
        %v3971 = vadd.f32 %v3811, %v3970
        %v3972 = vpop.f32.mrf.mxu0
        %v3973 = vpop.f32.mrf.mxu0
        %v3974 = vadd.f32 %v3811, %v3973
        %v3975 = vpop.f32.mrf.mxu0
        %3976 = vmatprep.mubr.bf16.mxu0 0
        %3977 = vmatmul.mubr.bf16.gmra.mxu0 %v3834
        %v3978 = vpop.f32.mrf.mxu0
        %v3979 = vadd.f32 %v3811, %v3978
        %v3980 = vpop.f32.mrf.mxu0
        %v3981 = vpop.f32.mrf.mxu0
        %v3982 = vadd.f32 %v3811, %v3981
        %v3983 = vpop.f32.mrf.mxu0
        %3984 = vmatprep.mubr.bf16.mxu0 0
        %3985 = vmatmul.mubr.bf16.gmra.mxu0 %v3837
        %v3986 = vpop.f32.mrf.mxu0
        %v3987 = vadd.f32 %v3811, %v3986
        %v3988 = vpop.f32.mrf.mxu0
        %v3989 = vpop.f32.mrf.mxu0
        %v3990 = vadd.f32 %v3811, %v3989
        %v3991 = vpop.f32.mrf.mxu0
        %3992 = vmatprep.mubr.bf16.mxu0 0
        %3993 = vmatmul.mubr.bf16.gmra.mxu0 %v3840
        %v3994 = vpop.f32.mrf.mxu0
        %v3995 = vadd.f32 %v3811, %v3994
        %v3996 = vpop.f32.mrf.mxu0
        %v3997 = vpop.f32.mrf.mxu0
        %v3998 = vadd.f32 %v3811, %v3997
        %v3999 = vpop.f32.mrf.mxu0
        %4000 = vmatprep.mubr.bf16.mxu0 0
        %4001 = vmatmul.mubr.bf16.gmra.mxu0 %v3843
        %v4002 = vpop.f32.mrf.mxu0
        %v4003 = vadd.f32 %v3811, %v4002
        %v4004 = vpop.f32.mrf.mxu0
        %v4005 = vpop.f32.mrf.mxu0
        %v4006 = vadd.f32 %v3811, %v4005
        %v4007 = vpop.f32.mrf.mxu0
        %4008 = vmatprep.mubr.bf16.mxu0 0
        %4009 = vmatmul.mubr.bf16.gmra.mxu0 %v3846
        %v4010 = vpop.f32.mrf.mxu0
        %v4011 = vadd.f32 %v3811, %v4010
        %v4012 = vpop.f32.mrf.mxu0
        %v4013 = vpop.f32.mrf.mxu0
        %v4014 = vadd.f32 %v3811, %v4013
        %v4015 = vpop.f32.mrf.mxu0
        %4016 = vmatprep.mubr.bf16.mxu0 0
        %4017 = vmatmul.mubr.bf16.gmra.mxu0 %v3849
        %v4018 = vpop.f32.mrf.mxu0
        %v4019 = vadd.f32 %v3811, %v4018
        %v4020 = vpop.f32.mrf.mxu0
        %v4021 = vpop.f32.mrf.mxu0
        %v4022 = vadd.f32 %v3811, %v4021
        %v4023 = vpop.f32.mrf.mxu0
        %4024 = vmatprep.mubr.bf16.mxu0 0
        %4025 = vmatmul.mubr.bf16.gmra.mxu0 %v3852
        %v4026 = vpop.f32.mrf.mxu0
        %v4027 = vadd.f32 %v3811, %v4026
        %v4028 = vpop.f32.mrf.mxu0
        %v4029 = vpop.f32.mrf.mxu0
        %v4030 = vadd.f32 %v3811, %v4029
        %v4031 = vpop.f32.mrf.mxu0
        %4032 = vmatprep.mubr.bf16.mxu0 0
        %4033 = vmatmul.mubr.bf16.gmra.mxu0 %v3855
        %v4034 = vpop.f32.mrf.mxu0
        %v4035 = vadd.f32 %v3811, %v4034
        %v4036 = vpop.f32.mrf.mxu0
        %v4037 = vpop.f32.mrf.mxu0
        %v4038 = vadd.f32 %v3811, %v4037
        %v4039 = vpop.f32.mrf.mxu0
        %4040 = vmatprep.mubr.bf16.mxu0 0
        %4041 = vmatmul.mubr.bf16.gmra.mxu0 %v3858
        %v4042 = vpop.f32.mrf.mxu0
        %v4043 = vadd.f32 %v3811, %v4042
        %v4044 = vpop.f32.mrf.mxu0
        %v4045 = vpop.f32.mrf.mxu0
        %v4046 = vadd.f32 %v3811, %v4045
        %v4047 = vpop.f32.mrf.mxu0
        %4048 = vmatprep.mubr.bf16.mxu0 0
        %4049 = vmatmul.mubr.bf16.gmra.mxu0 %v3861
        %v4050 = vpop.f32.mrf.mxu0
        %v4051 = vadd.f32 %v3811, %v4050
        %v4052 = vpop.f32.mrf.mxu0
        %v4053 = vpop.f32.mrf.mxu0
        %v4054 = vadd.f32 %v3811, %v4053
        %v4055 = vpop.f32.mrf.mxu0
        %4056 = vmatprep.mubr.bf16.mxu0 0
        %4057 = vmatmul.mubr.bf16.gmra.mxu0 %v3864
        %v4058 = vpop.f32.mrf.mxu0
        %v4059 = vadd.f32 %v3811, %v4058
        %v4060 = vpop.f32.mrf.mxu0
        %v4061 = vpop.f32.mrf.mxu0
        %v4062 = vadd.f32 %v3811, %v4061
        %v4063 = vpop.f32.mrf.mxu0
        %4064 = vmatprep.mubr.bf16.mxu0 0
        %4065 = vmatmul.mubr.bf16.gmra.mxu0 %v3867
        %v4066 = vpop.f32.mrf.mxu0
        %v4067 = vadd.f32 %v3811, %v4066
        %v4068 = vpop.f32.mrf.mxu0
        %v4069 = vpop.f32.mrf.mxu0
        %v4070 = vadd.f32 %v3811, %v4069
        %v4071 = vpop.f32.mrf.mxu0
        %4072 = vmatprep.mubr.bf16.mxu0 0
        %4073 = vmatmul.mubr.bf16.gmra.mxu0 %v3870
        %v4074 = vpop.f32.mrf.mxu0
        %v4075 = vadd.f32 %v3811, %v4074
        %v4076 = vpop.f32.mrf.mxu0
        %v4077 = vpop.f32.mrf.mxu0
        %v4078 = vadd.f32 %v3811, %v4077
        %v4079 = vpop.f32.mrf.mxu0
        %4080 = vmatprep.mubr.bf16.mxu0 0
        %4081 = vmatmul.mubr.bf16.gmra.mxu0 %v3873
        %v4082 = vpop.f32.mrf.mxu0
        %v4083 = vadd.f32 %v3811, %v4082
        %v4084 = vpop.f32.mrf.mxu0
        %v4085 = vpop.f32.mrf.mxu0
        %v4086 = vadd.f32 %v3811, %v4085
        %v4087 = vpop.f32.mrf.mxu0
        %4088 = vmatprep.mubr.bf16.mxu0 0
        %4089 = vmatmul.mubr.bf16.gmra.mxu0 %v3876
        %v4090 = vpop.f32.mrf.mxu0
        %v4091 = vadd.f32 %v3811, %v4090
        %v4092 = vpop.f32.mrf.mxu0
        %v4093 = vpop.f32.mrf.mxu0
        %v4094 = vadd.f32 %v3811, %v4093
        %v4095 = vpop.f32.mrf.mxu0
        %4096 = vmatprep.mubr.bf16.mxu0 0
        %4097 = vmatmul.mubr.bf16.gmra.mxu0 %v3879
        %v4098 = vpop.f32.mrf.mxu0
        %v4099 = vadd.f32 %v3811, %v4098
        %v4100 = vpop.f32.mrf.mxu0
        %v4101 = vpop.f32.mrf.mxu0
        %v4102 = vadd.f32 %v3811, %v4101
        %v4103 = vpop.f32.mrf.mxu0
        %4104 = vmatprep.mubr.bf16.mxu0 0
        %4105 = vmatmul.mubr.bf16.gmra.mxu0 %v3882
        %v4106 = vpop.f32.mrf.mxu0
        %v4107 = vadd.f32 %v3811, %v4106
        %v4108 = vpop.f32.mrf.mxu0
        %v4109 = vpop.f32.mrf.mxu0
        %v4110 = vadd.f32 %v3811, %v4109
        %v4111 = vpop.f32.mrf.mxu0
        %4112 = vmatprep.mubr.bf16.mxu0 0
        %4113 = vmatmul.mubr.bf16.gmra.mxu0 %v3885
        %v4114 = vpop.f32.mrf.mxu0
        %v4115 = vadd.f32 %v3811, %v4114
        %v4116 = vpop.f32.mrf.mxu0
        %v4117 = vpop.f32.mrf.mxu0
        %v4118 = vadd.f32 %v3811, %v4117
        %v4119 = vpop.f32.mrf.mxu0
        %4120 = vmatprep.mubr.bf16.mxu0 0
        %4121 = vmatmul.mubr.bf16.gmra.mxu0 %v3888
        %v4122 = vpop.f32.mrf.mxu0
        %v4123 = vadd.f32 %v3811, %v4122
        %v4124 = vpop.f32.mrf.mxu0
        %v4125 = vpop.f32.mrf.mxu0
        %v4126 = vadd.f32 %v3811, %v4125
        %v4127 = vpop.f32.mrf.mxu0
        %4128 = vmatprep.mubr.bf16.mxu0 0
        %4129 = vmatmul.mubr.bf16.gmra.mxu0 %v3891
        %v4130 = vpop.f32.mrf.mxu0
        %v4131 = vadd.f32 %v3811, %v4130
        %v4132 = vpop.f32.mrf.mxu0
        %v4133 = vpop.f32.mrf.mxu0
        %v4134 = vadd.f32 %v3811, %v4133
        %v4135 = vpop.f32.mrf.mxu0
        %4136 = vmatprep.mubr.bf16.mxu0 0
        %4137 = vmatmul.mubr.bf16.gmra.mxu0 %v3894
        %v4138 = vpop.f32.mrf.mxu0
        %v4139 = vadd.f32 %v3811, %v4138
        %v4140 = vpop.f32.mrf.mxu0
        %v4141 = vpop.f32.mrf.mxu0
        %v4142 = vadd.f32 %v3811, %v4141
        %v4143 = vpop.f32.mrf.mxu0
        %4144 = vmatprep.mubr.bf16.mxu0 0
        %4145 = vmatmul.mubr.bf16.gmra.mxu0 %v3897
        %v4146 = vpop.f32.mrf.mxu0
        %v4147 = vadd.f32 %v3811, %v4146
        %v4148 = vpop.f32.mrf.mxu0
        %v4149 = vpop.f32.mrf.mxu0
        %v4150 = vadd.f32 %v3811, %v4149
        %v4151 = vpop.f32.mrf.mxu0
        %4152 = vmatprep.mubr.bf16.mxu0 0
        %4153 = vmatmul.mubr.bf16.gmra.mxu0 %v3900
        %v4154 = vpop.f32.mrf.mxu0
        %v4155 = vadd.f32 %v3811, %v4154
        %v4156 = vpop.f32.mrf.mxu0
        %v4157 = vpop.f32.mrf.mxu0
        %v4158 = vadd.f32 %v3811, %v4157
        %v4159 = vpop.f32.mrf.mxu0
        %4160 = vmatprep.mubr.bf16.mxu0 0
        %4161 = vmatmul.mubr.bf16.gmra.mxu0 %v3903
        %v4162 = vpop.f32.mrf.mxu0
        %v4163 = vadd.f32 %v3811, %v4162
        %v4164 = vpop.f32.mrf.mxu0
        %v4165 = vpop.f32.mrf.mxu0
        %v4166 = vadd.f32 %v3811, %v4165
        %v4167 = vpop.f32.mrf.mxu0
        %4168 = vmatprep.mubr.bf16.mxu0 0
        %4169 = vmatmul.mubr.bf16.gmra.mxu0 %v3906
        %v4170 = vpop.f32.mrf.mxu0
        %v4171 = vadd.f32 %v3811, %v4170
        %v4172 = vpop.f32.mrf.mxu0
        %v4173 = vpop.f32.mrf.mxu0
        %v4174 = vadd.f32 %v3811, %v4173
        %v4175 = vpop.f32.mrf.mxu0
        %4176 = vmatprep.mubr.bf16.mxu0 0
        %4177 = vmatmul.mubr.bf16.gmra.mxu0 %v3909
        %v4178 = vpop.f32.mrf.mxu0
        %v4179 = vadd.f32 %v3811, %v4178
        %v4180 = vpop.f32.mrf.mxu0
        %v4181 = vpop.f32.mrf.mxu0
        %v4182 = vadd.f32 %v3811, %v4181
        %v4183 = vpop.f32.mrf.mxu0
        %4184 = vmatprep.mubr.bf16.mxu0 0
        %4185 = vmatmul.mubr.bf16.gmra.mxu0 %v3912
        %v4186 = vpop.f32.mrf.mxu0
        %v4187 = vadd.f32 %v3811, %v4186
        %v4188 = vpop.f32.mrf.mxu0
        %v4189 = vpop.f32.mrf.mxu0
        %v4190 = vadd.f32 %v3811, %v4189
        %v4191 = vpop.f32.mrf.mxu0
        %4192 = vmatprep.mubr.bf16.mxu0 0
        %4193 = vmatmul.mubr.bf16.gmra.mxu0 %v3915
        %v4194 = vpop.f32.mrf.mxu0
        %v4195 = vadd.f32 %v3811, %v4194
        %v4196 = vpop.f32.mrf.mxu0
        %v4197 = vpop.f32.mrf.mxu0
        %v4198 = vadd.f32 %v3811, %v4197
        %v4199 = vpop.f32.mrf.mxu0
        %4200 = vmatprep.mubr.bf16.mxu0 0
        %4201 = vmatmul.mubr.bf16.gmra.mxu0 %v3918
        %v4202 = vpop.f32.mrf.mxu0
        %v4203 = vadd.f32 %v3811, %v4202
        %v4204 = vpop.f32.mrf.mxu0
        %v4205 = vpop.f32.mrf.mxu0
        %v4206 = vadd.f32 %v3811, %v4205
        %v4207 = vpop.f32.mrf.mxu0
        %4208 = vdwg.mxu0
        %v4209 = vmax.f32 %v3955, 0.0
        %v4210 = vmax.f32 %v3958, 0.0
        %v4211 = vmax.f32 %v3963, 0.0
        %v4212 = vmax.f32 %v3966, 0.0
        %v4213 = vmax.f32 %v3971, 0.0
        %v4214 = vmax.f32 %v3974, 0.0
        %v4215 = vmax.f32 %v3979, 0.0
        %v4216 = vmax.f32 %v3982, 0.0
        %v4217 = vmax.f32 %v3987, 0.0
        %v4218 = vmax.f32 %v3990, 0.0
        %v4219 = vmax.f32 %v3995, 0.0
        %v4220 = vmax.f32 %v3998, 0.0
        %v4221 = vmax.f32 %v4003, 0.0
        %v4222 = vmax.f32 %v4006, 0.0
        %v4223 = vmax.f32 %v4011, 0.0
        %v4224 = vmax.f32 %v4014, 0.0
        %v4225 = vmax.f32 %v4019, 0.0
        %v4226 = vmax.f32 %v4022, 0.0
        %v4227 = vmax.f32 %v4027, 0.0
        %v4228 = vmax.f32 %v4030, 0.0
        %v4229 = vmax.f32 %v4035, 0.0
        %v4230 = vmax.f32 %v4038, 0.0
        %v4231 = vmax.f32 %v4043, 0.0
        %v4232 = vmax.f32 %v4046, 0.0
        %v4233 = vmax.f32 %v4051, 0.0
        %v4234 = vmax.f32 %v4054, 0.0
        %v4235 = vmax.f32 %v4059, 0.0
        %v4236 = vmax.f32 %v4062, 0.0
        %v4237 = vmax.f32 %v4067, 0.0
        %v4238 = vmax.f32 %v4070, 0.0
        %v4239 = vmax.f32 %v4075, 0.0
        %v4240 = vmax.f32 %v4078, 0.0
        %v4241 = vmax.f32 %v4083, 0.0
        %v4242 = vmax.f32 %v4086, 0.0
        %v4243 = vmax.f32 %v4091, 0.0
        %v4244 = vmax.f32 %v4094, 0.0
        %v4245 = vmax.f32 %v4099, 0.0
        %v4246 = vmax.f32 %v4102, 0.0
        %v4247 = vmax.f32 %v4107, 0.0
        %v4248 = vmax.f32 %v4110, 0.0
        %v4249 = vmax.f32 %v4115, 0.0
        %v4250 = vmax.f32 %v4118, 0.0
        %v4251 = vmax.f32 %v4123, 0.0
        %v4252 = vmax.f32 %v4126, 0.0
        %v4253 = vmax.f32 %v4131, 0.0
        %v4254 = vmax.f32 %v4134, 0.0
        %v4255 = vmax.f32 %v4139, 0.0
        %v4256 = vmax.f32 %v4142, 0.0
        %v4257 = vmax.f32 %v4147, 0.0
        %v4258 = vmax.f32 %v4150, 0.0
        %v4259 = vmax.f32 %v4155, 0.0
        %v4260 = vmax.f32 %v4158, 0.0
        %v4261 = vmax.f32 %v4163, 0.0
        %v4262 = vmax.f32 %v4166, 0.0
        %v4263 = vmax.f32 %v4171, 0.0
        %v4264 = vmax.f32 %v4174, 0.0
        %v4265 = vmax.f32 %v4179, 0.0
        %v4266 = vmax.f32 %v4182, 0.0
        %v4267 = vmax.f32 %v4187, 0.0
        %v4268 = vmax.f32 %v4190, 0.0
        %v4269 = vmax.f32 %v4195, 0.0
        %v4270 = vmax.f32 %v4198, 0.0
        %v4271 = vmax.f32 %v4203, 0.0
        %v4272 = vmax.f32 %v4206, 0.0
        %v4273 = vpack.c.bf16 %v4210, %v4209
        %v4274 = vpack.c.bf16 %v4212, %v4211
        %v4275 = vpack.c.bf16 %v4214, %v4213
        %v4276 = vpack.c.bf16 %v4216, %v4215
        %v4277 = vpack.c.bf16 %v4218, %v4217
        %v4278 = vpack.c.bf16 %v4220, %v4219
        %v4279 = vpack.c.bf16 %v4222, %v4221
        %v4280 = vpack.c.bf16 %v4224, %v4223
        %v4281 = vpack.c.bf16 %v4226, %v4225
        %v4282 = vpack.c.bf16 %v4228, %v4227
        %v4283 = vpack.c.bf16 %v4230, %v4229
        %v4284 = vpack.c.bf16 %v4232, %v4231
        %v4285 = vpack.c.bf16 %v4234, %v4233
        %v4286 = vpack.c.bf16 %v4236, %v4235
        %v4287 = vpack.c.bf16 %v4238, %v4237
        %v4288 = vpack.c.bf16 %v4240, %v4239
        %v4289 = vpack.c.bf16 %v4242, %v4241
        %v4290 = vpack.c.bf16 %v4244, %v4243
        %v4291 = vpack.c.bf16 %v4246, %v4245
        %v4292 = vpack.c.bf16 %v4248, %v4247
        %v4293 = vpack.c.bf16 %v4250, %v4249
        %v4294 = vpack.c.bf16 %v4252, %v4251
        %v4295 = vpack.c.bf16 %v4254, %v4253
        %v4296 = vpack.c.bf16 %v4256, %v4255
        %v4297 = vpack.c.bf16 %v4258, %v4257
        %v4298 = vpack.c.bf16 %v4260, %v4259
        %v4299 = vpack.c.bf16 %v4262, %v4261
        %v4300 = vpack.c.bf16 %v4264, %v4263
        %v4301 = vpack.c.bf16 %v4266, %v4265
        %v4302 = vpack.c.bf16 %v4268, %v4267
        %v4303 = vpack.c.bf16 %v4270, %v4269
        %v4304 = vpack.c.bf16 %v4272, %v4271
        %v4305 = vld [vmem:[%s6] sm:$0xf]
        %v4306 = vld [vmem:[%s6 + $0x4] sm:$0xf]
        %v4307 = vlaneseq
        %v4308 = vshrl.u32 %v4307, 7
        %v4309 = vsub.s32 1, %v4308
        %v4310 = vrot.slane %v365, %v4309
        %v4313 = vunpack.c.l.b16 %v4305
        %v4314 = vunpack.c.l.b16 %v4306
        %v4315 = vpack.c.b16 %v4314, %v4313
        %vm4317 = vcmask 130048
        %v4319 = vsel %vm4317, %v4273, 0
        %v4322 = vsel %vm4317, %v4274, 0
        %v4325 = vsel %vm4317, %v4275, 0
        %v4328 = vsel %vm4317, %v4276, 0
        %v4331 = vsel %vm4317, %v4277, 0
        %v4334 = vsel %vm4317, %v4278, 0
        %v4337 = vsel %vm4317, %v4279, 0
        %v4340 = vsel %vm4317, %v4280, 0
        %v4343 = vsel %vm4317, %v4281, 0
        %v4346 = vsel %vm4317, %v4282, 0
        %v4349 = vsel %vm4317, %v4283, 0
        %v4352 = vsel %vm4317, %v4284, 0
        %v4355 = vsel %vm4317, %v4285, 0
        %v4358 = vsel %vm4317, %v4286, 0
        %v4361 = vsel %vm4317, %v4287, 0
        %v4364 = vsel %vm4317, %v4288, 0
        %v4367 = vsel %vm4317, %v4289, 0
        %v4370 = vsel %vm4317, %v4290, 0
        %v4373 = vsel %vm4317, %v4291, 0
        %v4376 = vsel %vm4317, %v4292, 0
        %v4379 = vsel %vm4317, %v4293, 0
        %v4382 = vsel %vm4317, %v4294, 0
        %v4385 = vsel %vm4317, %v4295, 0
        %v4388 = vsel %vm4317, %v4296, 0
        %v4391 = vsel %vm4317, %v4297, 0
        %v4394 = vsel %vm4317, %v4298, 0
        %v4397 = vsel %vm4317, %v4299, 0
        %v4400 = vsel %vm4317, %v4300, 0
        %v4403 = vsel %vm4317, %v4301, 0
        %v4406 = vsel %vm4317, %v4302, 0
        %v4409 = vsel %vm4317, %v4303, 0
        %v4412 = vsel %vm4317, %v4304, 0
        %4414 = vmatprep.subr.bf16.mxu0 0
        %4415 = vmatpush1.bf16.msra.mxu0 0
        %4416 = vmatprep.subr.bf16.mxu0 0
        %4417 = vmatpush1.bf16.msra.mxu0 0
        %4418 = vmatprep.subr.bf16.mxu0 0
        %4419 = vmatpush1.bf16.msra.mxu0 0
        %4420 = vmatprep.subr.bf16.mxu0 0
        %4421 = vmatpush1.bf16.msra.mxu0 0
        %4422 = vmatprep.subr.bf16.mxu0 0
        %4423 = vmatpush1.bf16.msra.mxu0 0
        %4424 = vmatprep.subr.bf16.mxu0 0
        %4425 = vmatpush1.bf16.msra.mxu0 0
        %4426 = vmatprep.subr.bf16.mxu0 0
        %4427 = vmatpush1.bf16.msra.mxu0 0
        %4428 = vmatprep.subr.bf16.mxu0 0
        %4429 = vmatpush1.bf16.msra.mxu0 %v4315
        %4430 = vmatprep.subr.bf16.mxu0 0
        %4431 = vmatpush2.bf16.msra.mxu0 0
        %4432 = vmatprep.subr.bf16.mxu0 0
        %4433 = vmatpush2.bf16.msra.mxu0 0
        %4434 = vmatprep.subr.bf16.mxu0 0
        %4435 = vmatpush2.bf16.msra.mxu0 0
        %4436 = vmatprep.subr.bf16.mxu0 0
        %4437 = vmatpush2.bf16.msra.mxu0 0
        %4438 = vmatprep.subr.bf16.mxu0 0
        %4439 = vmatpush2.bf16.msra.mxu0 0
        %4440 = vmatprep.subr.bf16.mxu0 0
        %4441 = vmatpush2.bf16.msra.mxu0 0
        %4442 = vmatprep.subr.bf16.mxu0 0
        %4443 = vmatpush2.bf16.msra.mxu0 0
        %4444 = vmatprep.subr.bf16.mxu0 0
        %4445 = vmatpush2.bf16.msra.mxu0 0
        %4446 = vmatprep.mubr.bf16.mxu0 0
        %4447 = vmatmul.mubr.bf16.gmra.mxu0 %v4319
        %v4448 = vpop.f32.mrf.mxu0
        %v4449 = vadd.f32 %v4310, %v4448
        %v4450 = vpop.f32.mrf.mxu0
        %v4451 = vpop.f32.mrf.mxu0
        %v4452 = vadd.f32 %v4310, %v4451
        %v4453 = vpop.f32.mrf.mxu0
        %4454 = vmatprep.mubr.bf16.mxu0 0
        %4455 = vmatmul.mubr.bf16.gmra.mxu0 %v4322
        %v4456 = vpop.f32.mrf.mxu0
        %v4457 = vadd.f32 %v4310, %v4456
        %v4458 = vpop.f32.mrf.mxu0
        %v4459 = vpop.f32.mrf.mxu0
        %v4460 = vadd.f32 %v4310, %v4459
        %v4461 = vpop.f32.mrf.mxu0
        %4462 = vmatprep.mubr.bf16.mxu0 0
        %4463 = vmatmul.mubr.bf16.gmra.mxu0 %v4325
        %v4464 = vpop.f32.mrf.mxu0
        %v4465 = vadd.f32 %v4310, %v4464
        %v4466 = vpop.f32.mrf.mxu0
        %v4467 = vpop.f32.mrf.mxu0
        %v4468 = vadd.f32 %v4310, %v4467
        %v4469 = vpop.f32.mrf.mxu0
        %4470 = vmatprep.mubr.bf16.mxu0 0
        %4471 = vmatmul.mubr.bf16.gmra.mxu0 %v4328
        %v4472 = vpop.f32.mrf.mxu0
        %v4473 = vadd.f32 %v4310, %v4472
        %v4474 = vpop.f32.mrf.mxu0
        %v4475 = vpop.f32.mrf.mxu0
        %v4476 = vadd.f32 %v4310, %v4475
        %v4477 = vpop.f32.mrf.mxu0
        %4478 = vmatprep.mubr.bf16.mxu0 0
        %4479 = vmatmul.mubr.bf16.gmra.mxu0 %v4331
        %v4480 = vpop.f32.mrf.mxu0
        %v4481 = vadd.f32 %v4310, %v4480
        %v4482 = vpop.f32.mrf.mxu0
        %v4483 = vpop.f32.mrf.mxu0
        %v4484 = vadd.f32 %v4310, %v4483
        %v4485 = vpop.f32.mrf.mxu0
        %4486 = vmatprep.mubr.bf16.mxu0 0
        %4487 = vmatmul.mubr.bf16.gmra.mxu0 %v4334
        %v4488 = vpop.f32.mrf.mxu0
        %v4489 = vadd.f32 %v4310, %v4488
        %v4490 = vpop.f32.mrf.mxu0
        %v4491 = vpop.f32.mrf.mxu0
        %v4492 = vadd.f32 %v4310, %v4491
        %v4493 = vpop.f32.mrf.mxu0
        %4494 = vmatprep.mubr.bf16.mxu0 0
        %4495 = vmatmul.mubr.bf16.gmra.mxu0 %v4337
        %v4496 = vpop.f32.mrf.mxu0
        %v4497 = vadd.f32 %v4310, %v4496
        %v4498 = vpop.f32.mrf.mxu0
        %v4499 = vpop.f32.mrf.mxu0
        %v4500 = vadd.f32 %v4310, %v4499
        %v4501 = vpop.f32.mrf.mxu0
        %4502 = vmatprep.mubr.bf16.mxu0 0
        %4503 = vmatmul.mubr.bf16.gmra.mxu0 %v4340
        %v4504 = vpop.f32.mrf.mxu0
        %v4505 = vadd.f32 %v4310, %v4504
        %v4506 = vpop.f32.mrf.mxu0
        %v4507 = vpop.f32.mrf.mxu0
        %v4508 = vadd.f32 %v4310, %v4507
        %v4509 = vpop.f32.mrf.mxu0
        %4510 = vmatprep.mubr.bf16.mxu0 0
        %4511 = vmatmul.mubr.bf16.gmra.mxu0 %v4343
        %v4512 = vpop.f32.mrf.mxu0
        %v4513 = vadd.f32 %v4310, %v4512
        %v4514 = vpop.f32.mrf.mxu0
        %v4515 = vpop.f32.mrf.mxu0
        %v4516 = vadd.f32 %v4310, %v4515
        %v4517 = vpop.f32.mrf.mxu0
        %4518 = vmatprep.mubr.bf16.mxu0 0
        %4519 = vmatmul.mubr.bf16.gmra.mxu0 %v4346
        %v4520 = vpop.f32.mrf.mxu0
        %v4521 = vadd.f32 %v4310, %v4520
        %v4522 = vpop.f32.mrf.mxu0
        %v4523 = vpop.f32.mrf.mxu0
        %v4524 = vadd.f32 %v4310, %v4523
        %v4525 = vpop.f32.mrf.mxu0
        %4526 = vmatprep.mubr.bf16.mxu0 0
        %4527 = vmatmul.mubr.bf16.gmra.mxu0 %v4349
        %v4528 = vpop.f32.mrf.mxu0
        %v4529 = vadd.f32 %v4310, %v4528
        %v4530 = vpop.f32.mrf.mxu0
        %v4531 = vpop.f32.mrf.mxu0
        %v4532 = vadd.f32 %v4310, %v4531
        %v4533 = vpop.f32.mrf.mxu0
        %4534 = vmatprep.mubr.bf16.mxu0 0
        %4535 = vmatmul.mubr.bf16.gmra.mxu0 %v4352
        %v4536 = vpop.f32.mrf.mxu0
        %v4537 = vadd.f32 %v4310, %v4536
        %v4538 = vpop.f32.mrf.mxu0
        %v4539 = vpop.f32.mrf.mxu0
        %v4540 = vadd.f32 %v4310, %v4539
        %v4541 = vpop.f32.mrf.mxu0
        %4542 = vmatprep.mubr.bf16.mxu0 0
        %4543 = vmatmul.mubr.bf16.gmra.mxu0 %v4355
        %v4544 = vpop.f32.mrf.mxu0
        %v4545 = vadd.f32 %v4310, %v4544
        %v4546 = vpop.f32.mrf.mxu0
        %v4547 = vpop.f32.mrf.mxu0
        %v4548 = vadd.f32 %v4310, %v4547
        %v4549 = vpop.f32.mrf.mxu0
        %4550 = vmatprep.mubr.bf16.mxu0 0
        %4551 = vmatmul.mubr.bf16.gmra.mxu0 %v4358
        %v4552 = vpop.f32.mrf.mxu0
        %v4553 = vadd.f32 %v4310, %v4552
        %v4554 = vpop.f32.mrf.mxu0
        %v4555 = vpop.f32.mrf.mxu0
        %v4556 = vadd.f32 %v4310, %v4555
        %v4557 = vpop.f32.mrf.mxu0
        %4558 = vmatprep.mubr.bf16.mxu0 0
        %4559 = vmatmul.mubr.bf16.gmra.mxu0 %v4361
        %v4560 = vpop.f32.mrf.mxu0
        %v4561 = vadd.f32 %v4310, %v4560
        %v4562 = vpop.f32.mrf.mxu0
        %v4563 = vpop.f32.mrf.mxu0
        %v4564 = vadd.f32 %v4310, %v4563
        %v4565 = vpop.f32.mrf.mxu0
        %4566 = vmatprep.mubr.bf16.mxu0 0
        %4567 = vmatmul.mubr.bf16.gmra.mxu0 %v4364
        %v4568 = vpop.f32.mrf.mxu0
        %v4569 = vadd.f32 %v4310, %v4568
        %v4570 = vpop.f32.mrf.mxu0
        %v4571 = vpop.f32.mrf.mxu0
        %v4572 = vadd.f32 %v4310, %v4571
        %v4573 = vpop.f32.mrf.mxu0
        %4574 = vmatprep.mubr.bf16.mxu0 0
        %4575 = vmatmul.mubr.bf16.gmra.mxu0 %v4367
        %v4576 = vpop.f32.mrf.mxu0
        %v4577 = vadd.f32 %v4310, %v4576
        %v4578 = vpop.f32.mrf.mxu0
        %v4579 = vpop.f32.mrf.mxu0
        %v4580 = vadd.f32 %v4310, %v4579
        %v4581 = vpop.f32.mrf.mxu0
        %4582 = vmatprep.mubr.bf16.mxu0 0
        %4583 = vmatmul.mubr.bf16.gmra.mxu0 %v4370
        %v4584 = vpop.f32.mrf.mxu0
        %v4585 = vadd.f32 %v4310, %v4584
        %v4586 = vpop.f32.mrf.mxu0
        %v4587 = vpop.f32.mrf.mxu0
        %v4588 = vadd.f32 %v4310, %v4587
        %v4589 = vpop.f32.mrf.mxu0
        %4590 = vmatprep.mubr.bf16.mxu0 0
        %4591 = vmatmul.mubr.bf16.gmra.mxu0 %v4373
        %v4592 = vpop.f32.mrf.mxu0
        %v4593 = vadd.f32 %v4310, %v4592
        %v4594 = vpop.f32.mrf.mxu0
        %v4595 = vpop.f32.mrf.mxu0
        %v4596 = vadd.f32 %v4310, %v4595
        %v4597 = vpop.f32.mrf.mxu0
        %4598 = vmatprep.mubr.bf16.mxu0 0
        %4599 = vmatmul.mubr.bf16.gmra.mxu0 %v4376
        %v4600 = vpop.f32.mrf.mxu0
        %v4601 = vadd.f32 %v4310, %v4600
        %v4602 = vpop.f32.mrf.mxu0
        %v4603 = vpop.f32.mrf.mxu0
        %v4604 = vadd.f32 %v4310, %v4603
        %v4605 = vpop.f32.mrf.mxu0
        %4606 = vmatprep.mubr.bf16.mxu0 0
        %4607 = vmatmul.mubr.bf16.gmra.mxu0 %v4379
        %v4608 = vpop.f32.mrf.mxu0
        %v4609 = vadd.f32 %v4310, %v4608
        %v4610 = vpop.f32.mrf.mxu0
        %v4611 = vpop.f32.mrf.mxu0
        %v4612 = vadd.f32 %v4310, %v4611
        %v4613 = vpop.f32.mrf.mxu0
        %4614 = vmatprep.mubr.bf16.mxu0 0
        %4615 = vmatmul.mubr.bf16.gmra.mxu0 %v4382
        %v4616 = vpop.f32.mrf.mxu0
        %v4617 = vadd.f32 %v4310, %v4616
        %v4618 = vpop.f32.mrf.mxu0
        %v4619 = vpop.f32.mrf.mxu0
        %v4620 = vadd.f32 %v4310, %v4619
        %v4621 = vpop.f32.mrf.mxu0
        %4622 = vmatprep.mubr.bf16.mxu0 0
        %4623 = vmatmul.mubr.bf16.gmra.mxu0 %v4385
        %v4624 = vpop.f32.mrf.mxu0
        %v4625 = vadd.f32 %v4310, %v4624
        %v4626 = vpop.f32.mrf.mxu0
        %v4627 = vpop.f32.mrf.mxu0
        %v4628 = vadd.f32 %v4310, %v4627
        %v4629 = vpop.f32.mrf.mxu0
        %4630 = vmatprep.mubr.bf16.mxu0 0
        %4631 = vmatmul.mubr.bf16.gmra.mxu0 %v4388
        %v4632 = vpop.f32.mrf.mxu0
        %v4633 = vadd.f32 %v4310, %v4632
        %v4634 = vpop.f32.mrf.mxu0
        %v4635 = vpop.f32.mrf.mxu0
        %v4636 = vadd.f32 %v4310, %v4635
        %v4637 = vpop.f32.mrf.mxu0
        %4638 = vmatprep.mubr.bf16.mxu0 0
        %4639 = vmatmul.mubr.bf16.gmra.mxu0 %v4391
        %v4640 = vpop.f32.mrf.mxu0
        %v4641 = vadd.f32 %v4310, %v4640
        %v4642 = vpop.f32.mrf.mxu0
        %v4643 = vpop.f32.mrf.mxu0
        %v4644 = vadd.f32 %v4310, %v4643
        %v4645 = vpop.f32.mrf.mxu0
        %4646 = vmatprep.mubr.bf16.mxu0 0
        %4647 = vmatmul.mubr.bf16.gmra.mxu0 %v4394
        %v4648 = vpop.f32.mrf.mxu0
        %v4649 = vadd.f32 %v4310, %v4648
        %v4650 = vpop.f32.mrf.mxu0
        %v4651 = vpop.f32.mrf.mxu0
        %v4652 = vadd.f32 %v4310, %v4651
        %v4653 = vpop.f32.mrf.mxu0
        %4654 = vmatprep.mubr.bf16.mxu0 0
        %4655 = vmatmul.mubr.bf16.gmra.mxu0 %v4397
        %v4656 = vpop.f32.mrf.mxu0
        %v4657 = vadd.f32 %v4310, %v4656
        %v4658 = vpop.f32.mrf.mxu0
        %v4659 = vpop.f32.mrf.mxu0
        %v4660 = vadd.f32 %v4310, %v4659
        %v4661 = vpop.f32.mrf.mxu0
        %4662 = vmatprep.mubr.bf16.mxu0 0
        %4663 = vmatmul.mubr.bf16.gmra.mxu0 %v4400
        %v4664 = vpop.f32.mrf.mxu0
        %v4665 = vadd.f32 %v4310, %v4664
        %v4666 = vpop.f32.mrf.mxu0
        %v4667 = vpop.f32.mrf.mxu0
        %v4668 = vadd.f32 %v4310, %v4667
        %v4669 = vpop.f32.mrf.mxu0
        %4670 = vmatprep.mubr.bf16.mxu0 0
        %4671 = vmatmul.mubr.bf16.gmra.mxu0 %v4403
        %v4672 = vpop.f32.mrf.mxu0
        %v4673 = vadd.f32 %v4310, %v4672
        %v4674 = vpop.f32.mrf.mxu0
        %v4675 = vpop.f32.mrf.mxu0
        %v4676 = vadd.f32 %v4310, %v4675
        %v4677 = vpop.f32.mrf.mxu0
        %4678 = vmatprep.mubr.bf16.mxu0 0
        %4679 = vmatmul.mubr.bf16.gmra.mxu0 %v4406
        %v4680 = vpop.f32.mrf.mxu0
        %v4681 = vadd.f32 %v4310, %v4680
        %v4682 = vpop.f32.mrf.mxu0
        %v4683 = vpop.f32.mrf.mxu0
        %v4684 = vadd.f32 %v4310, %v4683
        %v4685 = vpop.f32.mrf.mxu0
        %4686 = vmatprep.mubr.bf16.mxu0 0
        %4687 = vmatmul.mubr.bf16.gmra.mxu0 %v4409
        %v4688 = vpop.f32.mrf.mxu0
        %v4689 = vadd.f32 %v4310, %v4688
        %v4690 = vpop.f32.mrf.mxu0
        %v4691 = vpop.f32.mrf.mxu0
        %v4692 = vadd.f32 %v4310, %v4691
        %v4693 = vpop.f32.mrf.mxu0
        %4694 = vmatprep.mubr.bf16.mxu0 0
        %4695 = vmatmul.mubr.bf16.gmra.mxu0 %v4412
        %v4696 = vpop.f32.mrf.mxu0
        %v4697 = vadd.f32 %v4310, %v4696
        %v4698 = vpop.f32.mrf.mxu0
        %v4699 = vpop.f32.mrf.mxu0
        %v4700 = vadd.f32 %v4310, %v4699
        %v4701 = vpop.f32.mrf.mxu0
        %4702 = vdwg.mxu0
        %v4703 = vmax.f32 %v4449, 0.0
        %v4704 = vmax.f32 %v4452, 0.0
        %v4705 = vmax.f32 %v4457, 0.0
        %v4706 = vmax.f32 %v4460, 0.0
        %v4707 = vmax.f32 %v4465, 0.0
        %v4708 = vmax.f32 %v4468, 0.0
        %v4709 = vmax.f32 %v4473, 0.0
        %v4710 = vmax.f32 %v4476, 0.0
        %v4711 = vmax.f32 %v4481, 0.0
        %v4712 = vmax.f32 %v4484, 0.0
        %v4713 = vmax.f32 %v4489, 0.0
        %v4714 = vmax.f32 %v4492, 0.0
        %v4715 = vmax.f32 %v4497, 0.0
        %v4716 = vmax.f32 %v4500, 0.0
        %v4717 = vmax.f32 %v4505, 0.0
        %v4718 = vmax.f32 %v4508, 0.0
        %v4719 = vmax.f32 %v4513, 0.0
        %v4720 = vmax.f32 %v4516, 0.0
        %v4721 = vmax.f32 %v4521, 0.0
        %v4722 = vmax.f32 %v4524, 0.0
        %v4723 = vmax.f32 %v4529, 0.0
        %v4724 = vmax.f32 %v4532, 0.0
        %v4725 = vmax.f32 %v4537, 0.0
        %v4726 = vmax.f32 %v4540, 0.0
        %v4727 = vmax.f32 %v4545, 0.0
        %v4728 = vmax.f32 %v4548, 0.0
        %v4729 = vmax.f32 %v4553, 0.0
        %v4730 = vmax.f32 %v4556, 0.0
        %v4731 = vmax.f32 %v4561, 0.0
        %v4732 = vmax.f32 %v4564, 0.0
        %v4733 = vmax.f32 %v4569, 0.0
        %v4734 = vmax.f32 %v4572, 0.0
        %v4735 = vmax.f32 %v4577, 0.0
        %v4736 = vmax.f32 %v4580, 0.0
        %v4737 = vmax.f32 %v4585, 0.0
        %v4738 = vmax.f32 %v4588, 0.0
        %v4739 = vmax.f32 %v4593, 0.0
        %v4740 = vmax.f32 %v4596, 0.0
        %v4741 = vmax.f32 %v4601, 0.0
        %v4742 = vmax.f32 %v4604, 0.0
        %v4743 = vmax.f32 %v4609, 0.0
        %v4744 = vmax.f32 %v4612, 0.0
        %v4745 = vmax.f32 %v4617, 0.0
        %v4746 = vmax.f32 %v4620, 0.0
        %v4747 = vmax.f32 %v4625, 0.0
        %v4748 = vmax.f32 %v4628, 0.0
        %v4749 = vmax.f32 %v4633, 0.0
        %v4750 = vmax.f32 %v4636, 0.0
        %v4751 = vmax.f32 %v4641, 0.0
        %v4752 = vmax.f32 %v4644, 0.0
        %v4753 = vmax.f32 %v4649, 0.0
        %v4754 = vmax.f32 %v4652, 0.0
        %v4755 = vmax.f32 %v4657, 0.0
        %v4756 = vmax.f32 %v4660, 0.0
        %v4757 = vmax.f32 %v4665, 0.0
        %v4758 = vmax.f32 %v4668, 0.0
        %v4759 = vmax.f32 %v4673, 0.0
        %v4760 = vmax.f32 %v4676, 0.0
        %v4761 = vmax.f32 %v4681, 0.0
        %v4762 = vmax.f32 %v4684, 0.0
        %v4763 = vmax.f32 %v4689, 0.0
        %v4764 = vmax.f32 %v4692, 0.0
        %v4765 = vmax.f32 %v4697, 0.0
        %v4766 = vmax.f32 %v4700, 0.0
        %v4767 = vld [vmem:[%s7] sm:$0x1]
        %v4768 = vpack.c.bf16 %v4704, %v4703
        %v4769 = vpack.c.bf16 %v4706, %v4705
        %v4770 = vpack.c.bf16 %v4708, %v4707
        %v4771 = vpack.c.bf16 %v4710, %v4709
        %v4772 = vpack.c.bf16 %v4712, %v4711
        %v4773 = vpack.c.bf16 %v4714, %v4713
        %v4774 = vpack.c.bf16 %v4716, %v4715
        %v4775 = vpack.c.bf16 %v4718, %v4717
        %v4776 = vpack.c.bf16 %v4720, %v4719
        %v4777 = vpack.c.bf16 %v4722, %v4721
        %v4778 = vpack.c.bf16 %v4724, %v4723
        %v4779 = vpack.c.bf16 %v4726, %v4725
        %v4780 = vpack.c.bf16 %v4728, %v4727
        %v4781 = vpack.c.bf16 %v4730, %v4729
        %v4782 = vpack.c.bf16 %v4732, %v4731
        %v4783 = vpack.c.bf16 %v4734, %v4733
        %v4784 = vpack.c.bf16 %v4736, %v4735
        %v4785 = vpack.c.bf16 %v4738, %v4737
        %v4786 = vpack.c.bf16 %v4740, %v4739
        %v4787 = vpack.c.bf16 %v4742, %v4741
        %v4788 = vpack.c.bf16 %v4744, %v4743
        %v4789 = vpack.c.bf16 %v4746, %v4745
        %v4790 = vpack.c.bf16 %v4748, %v4747
        %v4791 = vpack.c.bf16 %v4750, %v4749
        %v4792 = vpack.c.bf16 %v4752, %v4751
        %v4793 = vpack.c.bf16 %v4754, %v4753
        %v4794 = vpack.c.bf16 %v4756, %v4755
        %v4795 = vpack.c.bf16 %v4758, %v4757
        %v4796 = vpack.c.bf16 %v4760, %v4759
        %v4797 = vpack.c.bf16 %v4762, %v4761
        %v4798 = vpack.c.bf16 %v4764, %v4763
        %v4799 = vpack.c.bf16 %v4766, %v4765
        %4801 = vset.pattern.permute.xlu0 0
        %4802 = vperm.xlu0 %4801, %v365
        %v4803 = vpop.permute.xlu0 %4802
        %v4804 = vrot.slane %v4803, 2
        %vm4806 = vcmask 64512
        %v4808 = vsel %vm4806, %v4767, 0
        %v4811 = vsel %vm4806, %v4768, 0
        %v4814 = vsel %vm4806, %v4769, 0
        %v4817 = vsel %vm4806, %v4770, 0
        %v4820 = vsel %vm4806, %v4771, 0
        %v4823 = vsel %vm4806, %v4772, 0
        %v4826 = vsel %vm4806, %v4773, 0
        %v4829 = vsel %vm4806, %v4774, 0
        %v4832 = vsel %vm4806, %v4775, 0
        %v4835 = vsel %vm4806, %v4776, 0
        %v4838 = vsel %vm4806, %v4777, 0
        %v4841 = vsel %vm4806, %v4778, 0
        %v4844 = vsel %vm4806, %v4779, 0
        %v4847 = vsel %vm4806, %v4780, 0
        %v4850 = vsel %vm4806, %v4781, 0
        %v4853 = vsel %vm4806, %v4782, 0
        %v4856 = vsel %vm4806, %v4783, 0
        %v4859 = vsel %vm4806, %v4784, 0
        %v4862 = vsel %vm4806, %v4785, 0
        %v4865 = vsel %vm4806, %v4786, 0
        %v4868 = vsel %vm4806, %v4787, 0
        %v4871 = vsel %vm4806, %v4788, 0
        %v4874 = vsel %vm4806, %v4789, 0
        %v4877 = vsel %vm4806, %v4790, 0
        %v4880 = vsel %vm4806, %v4791, 0
        %v4883 = vsel %vm4806, %v4792, 0
        %v4886 = vsel %vm4806, %v4793, 0
        %v4889 = vsel %vm4806, %v4794, 0
        %v4892 = vsel %vm4806, %v4795, 0
        %v4895 = vsel %vm4806, %v4796, 0
        %v4898 = vsel %vm4806, %v4797, 0
        %v4901 = vsel %vm4806, %v4798, 0
        %v4904 = vsel %vm4806, %v4799, 0
        %4906 = vmatprep.subr.bf16.mxu0 0
        %4907 = vmatpush1.bf16.xpose.msra.mxu0 %v4832
        %4908 = vmatprep.subr.bf16.mxu0 0
        %4909 = vmatpush1.bf16.xpose.msra.mxu0 %v4829
        %4910 = vmatprep.subr.bf16.mxu0 0
        %4911 = vmatpush1.bf16.xpose.msra.mxu0 %v4826
        %4912 = vmatprep.subr.bf16.mxu0 0
        %4913 = vmatpush1.bf16.xpose.msra.mxu0 %v4823
        %4914 = vmatprep.subr.bf16.mxu0 0
        %4915 = vmatpush1.bf16.xpose.msra.mxu0 %v4820
        %4916 = vmatprep.subr.bf16.mxu0 0
        %4917 = vmatpush1.bf16.xpose.msra.mxu0 %v4817
        %4918 = vmatprep.subr.bf16.mxu0 0
        %4919 = vmatpush1.bf16.xpose.msra.mxu0 %v4814
        %4920 = vmatprep.subr.bf16.mxu0 0
        %4921 = vmatpush1.bf16.xpose.msra.mxu0 %v4811
        %4922 = vmatprep.subr.bf16.mxu0 0
        %4923 = vmatpush2.bf16.xpose.msra.mxu0 %v4856
        %4924 = vmatprep.subr.bf16.mxu0 0
        %4925 = vmatpush2.bf16.xpose.msra.mxu0 %v4853
        %4926 = vmatprep.subr.bf16.mxu0 0
        %4927 = vmatpush2.bf16.xpose.msra.mxu0 %v4850
        %4928 = vmatprep.subr.bf16.mxu0 0
        %4929 = vmatpush2.bf16.xpose.msra.mxu0 %v4847
        %4930 = vmatprep.subr.bf16.mxu0 0
        %4931 = vmatpush2.bf16.xpose.msra.mxu0 %v4844
        %4932 = vmatprep.subr.bf16.mxu0 0
        %4933 = vmatpush2.bf16.xpose.msra.mxu0 %v4841
        %4934 = vmatprep.subr.bf16.mxu0 0
        %4935 = vmatpush2.bf16.xpose.msra.mxu0 %v4838
        %4936 = vmatprep.subr.bf16.mxu0 0
        %4937 = vmatpush2.bf16.xpose.msra.mxu0 %v4835
        %4938 = vmatprep.mubr.bf16.mxu0 0
        %4939 = vmatmul.mubr.bf16.gmra.mxu0 %v4808
        %v4940 = vpop.f32.mrf.mxu0
        %v4941 = vadd.f32 %v4804, %v4940
        %v4942 = vpop.f32.mrf.mxu0
        %v4943 = vadd.f32 %v4804, %v4942
        %v4944 = vpop.f32.mrf.mxu0
        %v4945 = vpop.f32.mrf.mxu0
        %4946 = vdwg.mxu0
        %4947 = vmatprep.subr.bf16.mxu0 0
        %4948 = vmatpush1.bf16.xpose.msra.mxu0 %v4880
        %4949 = vmatprep.subr.bf16.mxu0 0
        %4950 = vmatpush1.bf16.xpose.msra.mxu0 %v4877
        %4951 = vmatprep.subr.bf16.mxu0 0
        %4952 = vmatpush1.bf16.xpose.msra.mxu0 %v4874
        %4953 = vmatprep.subr.bf16.mxu0 0
        %4954 = vmatpush1.bf16.xpose.msra.mxu0 %v4871
        %4955 = vmatprep.subr.bf16.mxu0 0
        %4956 = vmatpush1.bf16.xpose.msra.mxu0 %v4868
        %4957 = vmatprep.subr.bf16.mxu0 0
        %4958 = vmatpush1.bf16.xpose.msra.mxu0 %v4865
        %4959 = vmatprep.subr.bf16.mxu0 0
        %4960 = vmatpush1.bf16.xpose.msra.mxu0 %v4862
        %4961 = vmatprep.subr.bf16.mxu0 0
        %4962 = vmatpush1.bf16.xpose.msra.mxu0 %v4859
        %4963 = vmatprep.subr.bf16.mxu0 0
        %4964 = vmatpush2.bf16.xpose.msra.mxu0 %v4904
        %4965 = vmatprep.subr.bf16.mxu0 0
        %4966 = vmatpush2.bf16.xpose.msra.mxu0 %v4901
        %4967 = vmatprep.subr.bf16.mxu0 0
        %4968 = vmatpush2.bf16.xpose.msra.mxu0 %v4898
        %4969 = vmatprep.subr.bf16.mxu0 0
        %4970 = vmatpush2.bf16.xpose.msra.mxu0 %v4895
        %4971 = vmatprep.subr.bf16.mxu0 0
        %4972 = vmatpush2.bf16.xpose.msra.mxu0 %v4892
        %4973 = vmatprep.subr.bf16.mxu0 0
        %4974 = vmatpush2.bf16.xpose.msra.mxu0 %v4889
        %4975 = vmatprep.subr.bf16.mxu0 0
        %4976 = vmatpush2.bf16.xpose.msra.mxu0 %v4886
        %4977 = vmatprep.subr.bf16.mxu0 0
        %4978 = vmatpush2.bf16.xpose.msra.mxu0 %v4883
        %4979 = vmatprep.mubr.bf16.mxu0 0
        %4980 = vmatmul.mubr.bf16.gmra.mxu0 %v4808
        %v4981 = vpop.f32.mrf.mxu0
        %v4982 = vadd.f32 %v4804, %v4981
        %v4983 = vpop.f32.mrf.mxu0
        %v4984 = vadd.f32 %v4804, %v4983
        %v4985 = vpop.f32.mrf.mxu0
        %v4986 = vpop.f32.mrf.mxu0
        %4987 = vdwg.mxu0
        %s4988 = sld [smem:[#allocation2]]
        %v4989 = vstv %s4988
        %v4990 = vadd.f32 %v4941, %v4989
        %v4991 = vadd.f32 %v4943, %v4989
        %v4992 = vadd.f32 %v4982, %v4989
        %v4993 = vadd.f32 %v4984, %v4989
        %v4998 = vcombine.low %v4990, %v4991
        %v4999 = vcombine.low %v4992, %v4993
        %v5001 = vunpack.c.l.s4 1966171168
        %v5002 = vunpack.c.0.s8 %v5001
        %v5003 = vlaneseq
        %v5004 = vshrl.u32 %v5003, 7
        %v5005 = vsub.s32 %v5002, %v5004
        %v5006 = vrot.slane %v4998, %v5005
        %v5008 = vunpack.c.l.s4 1966171168
        %v5009 = vunpack.c.0.s8 %v5008
        %v5010 = vlaneseq
        %v5011 = vshrl.u32 %v5010, 7
        %v5012 = vsub.s32 %v5009, %v5011
        %v5013 = vrot.slane %v4999, %v5012
        %v5014 = vcombine.low %v5006, %v5013
        %v5016 = vunpack.c.l.s4 1966171168
        %v5017 = vunpack.c.0.s8 %v5016
        %v5018 = vlaneseq
        %v5019 = vshrl.u32 %v5018, 7
        %v5020 = vsub.s32 %v5017, %v5019
        %v5021 = vrot.slane %v5014, %v5020
        %v5023 = vlaneseq
        %vm5024 = vcmp.ge.s32.totalorder %v5023, 0
        %vm5025 = vcmp.lt.s32.totalorder %v5023, 512
        %vm5026 = vmand %vm5024, %vm5025
        %5027 = vst.msk [vmem:[%s354] sm:$0xf] %vm5026, %v5021
        %s5028 = sand.u32 %s248, 1
        %s5029 = scalar_lea.sflag [#allocation4], %s5028
        %s5030 = sand.u32 %s248, 1
        %s5031 = smul.addr %s5030, 4
        %s5032 = scalar_lea.vmem [#allocation3], %s5031
        // Predicated region
        $region61: #{tpu_custom_call.1} parent=59 // pred_check
          %p5033 = pneg %p258
        $region62: #{tpu_custom_call.1} parent=59 // pred_check_branch
          %5035 = sbr.rel (%p5033) target = $region64
        $region63: #{tpu_custom_call.1} parent=59 // pred_region
          %s5036 = smul.u32 4, %s25
          %s5038 = ssub.s32 64, 64
          %5039 = vsyncadd %s5029, %s5038
          %s5040 = smul.addr %s5036, 16
          %s5041 = scalar_lea.hbm %s10, %s5040
          %s5043 = sshll.u32 %s5032, 4
          %s5044 = int_to_ptr.vmem [resolvable:$true] %s5043
          %5046 = dma.vmem_to_hbm [thread:$0]  %s5044, 64, %s5041, %s5029
        $region64: #{tpu_custom_call.1} parent=59 // pred_fallthru
          _
      $region60: #{tpu_custom_call.1} parent=5 // pred_fallthru
        _
      %p5047 = scmp.le.s32.totalorder 2, %s20
      // Predicated region
      $region65: #{tpu_custom_call.1} parent=5 // pred_check
        %p5048 = pneg %p5047
      $region66: #{tpu_custom_call.1} parent=5 // pred_check_branch
        %5050 = sbr.rel (%p5048) target = $region68
      $region67: #{tpu_custom_call.1} parent=5 // pred_region
        %s5051 = ssub.s32 %s20, 2
        // Predicated region
        $region69: #{tpu_custom_call.1} parent=67 // pred_check
          %p5052 = pneg %p264
        $region70: #{tpu_custom_call.1} parent=67 // pred_check_branch
          %5054 = sbr.rel (%p5052) target = $region72
        $region71: #{tpu_custom_call.1} parent=67 // pred_region
          %s5055 = sand.u32 %s249, 1
          %s5056 = scalar_lea.sflag [#allocation4], %s5055
          %s5057 = sand.u32 %s249, 1
          %s5058 = smul.addr %s5057, 4
          %s5059 = scalar_lea.vmem [#allocation3], %s5058
          %5060 = dma.done %s5056, 64
        $region72: #{tpu_custom_call.1} parent=67 // pred_fallthru
          _
      $region68: #{tpu_custom_call.1} parent=5 // pred_fallthru
        _
    $region6: #{tpu_custom_call.1} parent=1 // loop_footer
      %s24 = sadd.s32 1, %s20
    $region7: #{tpu_custom_call.1} parent=1 // loop_footer_branch
      %19 = sbr.rel target = $region3
    $region8: #{tpu_custom_call.1} parent=1 // loop_exit
      _
    %5061 = vsyncpa [#allocation4], 1
    %s5062 = scalar_lea.sflag [#allocation4], 1
    %5063 = vsyncpa %s5062, 1

</llo_original>
